<compile_context>
chip_gen: v6e
topology: v6e:2x2x1
jax: 0.10.0
libtpu: 0.0.40
codegen_flags: <defaults>
</compile_context>

<pallas_src>
import functools

import jax
import jax.numpy as jnp
from jax.experimental import pallas as pl
from jax.experimental.pallas import tpu as pltpu


def _round_up(x, m):
    return (x + m - 1) // m * m


# ----------------------------- Pallas kernels -----------------------------

def _conv_relu_pool_kernel(p_ref, w_ref, b_ref, o_ref, *, fold, bt, r):
    """Fused conv (im2col matmul) + 2x2 maxpool + bias + ReLU for a block of images.

    p_ref: [4, Bt, R, Kp]  pool-quadrant im2col patches (bf16)
    w_ref: [Kp, Np]        weight, K/N zero-padded (bf16)
    b_ref: [1, Np]         bias (f32)
    o_ref: [Bt, R, Np]     pooled activation (bf16)
    """
    w = w_ref[...]
    kp = w.shape[0]
    np_ = w.shape[1]
    if fold:
        # One big matmul over all 4 quadrants, then max on the VPU.
        p = p_ref[...].reshape(4 * bt * r, kp)
        y = jnp.dot(p, w, preferred_element_type=jnp.float32)
        y = y.reshape(4, bt * r, np_)
        z = jnp.maximum(jnp.maximum(y[0], y[1]), jnp.maximum(y[2], y[3]))
    else:
        # Running max over 4 matmuls (M already large; avoids a 4x f32 temporary).
        z = jnp.dot(p_ref[0].reshape(bt * r, kp), w,
                    preferred_element_type=jnp.float32)
        for q in range(1, 4):
            z = jnp.maximum(
                z, jnp.dot(p_ref[q].reshape(bt * r, kp), w,
                           preferred_element_type=jnp.float32))
    # bias is per-channel, so max-then-bias == bias-then-max; relu commutes with max.
    z = jnp.maximum(z + b_ref[...], 0.0)
    o_ref[...] = z.reshape(bt, r, np_).astype(o_ref.dtype)


def _fc_head_kernel(x_ref, w1_ref, b1_ref, w2_ref, b2_ref, o_ref):
    """log_softmax(relu(x@W1+b1) @ W2 + b2), all intermediates resident in VMEM.

    Padded fc2 lanes carry bias -1e30 so they vanish from the softmax max/sum.
    """
    h = jnp.dot(x_ref[...], w1_ref[...],
                preferred_element_type=jnp.float32) + b1_ref[...]
    h = jnp.maximum(h, 0.0).astype(w2_ref.dtype)
    y = jnp.dot(h, w2_ref[...],
                preferred_element_type=jnp.float32) + b2_ref[...]
    m = jnp.max(y, axis=-1, keepdims=True)
    s = y - m
    lse = jnp.log(jnp.sum(jnp.exp(s), axis=-1, keepdims=True))
    o_ref[...] = s - lse


# ----------------------------- pallas_call wrappers -----------------------------

def conv_relu_pool(patches, w_pad, b_pad, *, bt_cap=16, out_dtype=jnp.bfloat16):
    """patches: [4, B, R, Kp] (bf16); w_pad: [Kp, Np] (bf16); b_pad: [1, Np] (f32)
    -> [B, R, Np] (out_dtype)."""
    _, B, R, Kp = patches.shape
    Np = w_pad.shape[1]
    bt = B if B <= bt_cap else bt_cap
    pad_b = (-B) % bt
    if pad_b:
        patches = jnp.pad(patches, ((0, 0), (0, pad_b), (0, 0), (0, 0)))
    Bp = B + pad_b
    fold = (bt * R) < 512

    kernel = functools.partial(_conv_relu_pool_kernel, fold=fold, bt=bt, r=R)
    flops = 2 * Bp * 4 * R * Kp * Np
    bytes_acc = (patches.size * 2 + w_pad.size * 2 + b_pad.size * 4
                 + Bp * R * Np * 2)

    out = pl.pallas_call(
        kernel,
        out_shape=jax.ShapeDtypeStruct((Bp, R, Np), out_dtype),
        grid=(Bp // bt,),
        in_specs=[
            pl.BlockSpec((4, bt, R, Kp), lambda i: (0, i, 0, 0)),
            pl.BlockSpec((Kp, Np), lambda i: (0, 0)),
            pl.BlockSpec((1, Np), lambda i: (0, 0)),
        ],
        out_specs=pl.BlockSpec((bt, R, Np), lambda i: (i, 0, 0)),
        compiler_params=pltpu.CompilerParams(dimension_semantics=("parallel",)),
        cost_estimate=pl.CostEstimate(flops=flops, transcendentals=0,
                                      bytes_accessed=bytes_acc),
    )(patches, w_pad, b_pad)
    return out[:B] if pad_b else out


def fc_head(x, w1, b1, w2, b2):
    """Fused fc1+relu+fc2+log_softmax.

    x: [M, 800] bf16 -> [M, 128] f32 log-probs (first 10 lanes real).
    """
    M, K = x.shape
    K1, N1 = w1.shape          # 896, 512
    N2 = w2.shape[1]           # 128
    if M >= 512:
        tm = 256
    elif M >= 128:
        tm = 128
    else:
        tm = _round_up(M, 8)
    m_pad = _round_up(M, tm)
    x = jnp.pad(x, ((0, m_pad - M), (0, K1 - K)))      # pad K 800 -> 896 too

    flops = 2 * m_pad * (K1 * N1 + N1 * N2)
    bytes_acc = (x.size * 2 + w1.size * 2 + b1.size * 4 + w2.size * 2
                 + b2.size * 4 + m_pad * N2 * 4)

    out = pl.pallas_call(
        _fc_head_kernel,
        out_shape=jax.ShapeDtypeStruct((m_pad, N2), jnp.float32),
        grid=(m_pad // tm,),
        in_specs=[
            pl.BlockSpec((tm, K1), lambda i: (i, 0)),
            pl.BlockSpec((K1, N1), lambda i: (0, 0)),
            pl.BlockSpec((1, N1), lambda i: (0, 0)),
            pl.BlockSpec((N1, N2), lambda i: (0, 0)),
            pl.BlockSpec((1, N2), lambda i: (0, 0)),
        ],
        out_specs=pl.BlockSpec((tm, N2), lambda i: (i, 0)),
        compiler_params=pltpu.CompilerParams(dimension_semantics=("parallel",)),
        cost_estimate=pl.CostEstimate(flops=flops, transcendentals=m_pad * N2,
                                      bytes_accessed=bytes_acc),
    )(x, w1, b1, w2, b2)
    return out[:M]


# ----------------------------- JAX glue (layout only) -----------------------------

def im2col_pool_quadrants(x, k):
    """x: [B,H,W,C] -> [4, B, PH*PW, k*k*C] im2col patches grouped by 2x2-pool quadrant.

    Quadrant (dy,dx), row i*PW+j holds the conv patch for output position (2i+dy, 2j+dx);
    K is ordered (ky, kx, ci).  Max over the quadrant axis == maxpool2x2 of the conv output.
    """
    B, H, W, C = x.shape
    OH, OW = H - k + 1, W - k + 1
    PH, PW = OH // 2, OW // 2
    quads = []
    for dy in range(2):
        for dx in range(2):
            taps = []
            for ky in range(k):
                for kx in range(k):
                    taps.append(x[:, dy + ky: dy + ky + 2 * PH: 2,
                                     dx + kx: dx + kx + 2 * PW: 2, :])
            patch = jnp.stack(taps, axis=3)               # [B, PH, PW, k*k, C]
            quads.append(patch.reshape(B, PH * PW, k * k * C))
    return jnp.stack(quads, axis=0), PH, PW               # [4, B, PH*PW, k*k*C]


def _prep_conv_params(w, b, k_pad, n_pad):
    """torch conv weight [Cout,Cin,KH,KW] -> padded bf16 [k_pad, n_pad], K=(ky,kx,ci)."""
    cout, cin, kh, kw = w.shape
    w2 = jnp.transpose(w, (2, 3, 1, 0)).reshape(kh * kw * cin, cout)
    w2 = jnp.pad(w2, ((0, k_pad - kh * kw * cin), (0, n_pad - cout)))
    b2 = jnp.pad(b, (0, n_pad - cout)).reshape(1, n_pad).astype(jnp.float32)
    return w2.astype(jnp.bfloat16), b2


def _prep_fc_params(params):
    # fc1: K 800 -> 896 (multiple of 128), N 500 -> 512; bf16 weights, f32 biases.
    w1 = jnp.pad(params["fc1_w"].T, ((0, 896 - 800), (0, 512 - 500)))
    b1 = jnp.pad(params["fc1_b"], (0, 512 - 500)).reshape(1, 512).astype(jnp.float32)
    # fc2: K 500 -> 512, N 10 -> 128; padded logit lanes get bias -1e30 (f32-safe).
    w2 = jnp.pad(params["fc2_w"].T, ((0, 512 - 500), (0, 128 - 10)))
    b2 = jnp.concatenate(
        [params["fc2_b"], jnp.full((128 - 10,), -1e30, jnp.float32)]).reshape(1, 128)
    return w1.astype(jnp.bfloat16), b1, w2.astype(jnp.bfloat16), b2


def init_params(key):
    """Deterministic synthetic parameters (torch default-init-like uniform)."""
    ks = jax.random.split(key, 8)

    def u(k, shape, fan_in):
        bound = 1.0 / jnp.sqrt(jnp.float32(fan_in))
        return jax.random.uniform(k, shape, jnp.float32, -bound, bound)

    return {
        "conv1_w": u(ks[0], (20, 1, 5, 5), 1 * 5 * 5),
        "conv1_b": u(ks[1], (20,), 1 * 5 * 5),
        "conv2_w": u(ks[2], (50, 20, 5, 5), 20 * 5 * 5),
        "conv2_b": u(ks[3], (50,), 20 * 5 * 5),
        "fc1_w": u(ks[4], (500, 800), 800),     # torch Linear: [out, in]
        "fc1_b": u(ks[5], (500,), 800),
        "fc2_w": u(ks[6], (10, 500), 500),
        "fc2_b": u(ks[7], (10,), 500),
    }


def net_forward(params, x_nchw):
    B = x_nchw.shape[0]
    x = jnp.transpose(x_nchw, (0, 2, 3, 1)).astype(jnp.bfloat16)      # NCHW -> NHWC, bf16

    # conv1 + relu + pool: [B,28,28,1] -> [B,12,12,20]  (kernel output [B,144,32], 20 real)
    p1, ph1, pw1 = im2col_pool_quadrants(x, 5)                        # [4,B,144,25]
    p1 = jnp.pad(p1, ((0, 0), (0, 0), (0, 0), (0, 32 - 25)))
    w1c, b1c = _prep_conv_params(params["conv1_w"], params["conv1_b"], 32, 32)
    h1 = conv_relu_pool(p1, w1c, b1c)                                 # [B,144,32] bf16
    h1 = h1[:, :, :20].reshape(B, ph1, pw1, 20)                       # [B,12,12,20]

    # conv2 + relu + pool: [B,12,12,20] -> [B,4,4,50]  (kernel output [B,16,128], lane-dense)
    p2, _, _ = im2col_pool_quadrants(h1, 5)                           # [4,B,16,500]
    p2 = jnp.pad(p2, ((0, 0), (0, 0), (0, 0), (0, 512 - 500)))
    w2c, b2c = _prep_conv_params(params["conv2_w"], params["conv2_b"], 512, 128)
    h2 = conv_relu_pool(p2, w2c, b2c)                                 # [B,16,128] bf16

    # flatten in torch (C, H, W) order: index = c*16 + i*4 + j  (matches x.view(-1, 4*4*50))
    flat = jnp.transpose(h2[:, :, :50], (0, 2, 1)).reshape(B, 4 * 4 * 50)   # [B,800] bf16

    fw1, fb1, fw2, fb2 = _prep_fc_params(params)
    logp = fc_head(flat, fw1, fb1, fw2, fb2)                          # [B,128] f32
    return logp[:, :10]                                               # [B,10] log-probs


def reference_forward(params, x_nchw):
    """Pure-XLA f32 reference of the same forward pass (for a numerical cross-check)."""
    x = jnp.transpose(x_nchw, (0, 2, 3, 1))

    def conv(h, w, b):
        y = jax.lax.conv_general_dilated(
            h, jnp.transpose(w, (2, 3, 1, 0)), (1, 1), "VALID",
            dimension_numbers=("NHWC", "HWIO", "NHWC"))
        return jax.nn.relu(y + b)

    def pool(h):
        return jnp.max(jnp.stack([h[:, 0::2, 0::2, :], h[:, 0::2, 1::2, :],
                                  h[:, 1::2, 0::2, :], h[:, 1::2, 1::2, :]]), axis=0)

    h = pool(conv(x, params["conv1_w"], params["conv1_b"]))
    h = pool(conv(h, params["conv2_w"], params["conv2_b"]))
    B = x.shape[0]
    flat = jnp.transpose(h, (0, 3, 1, 2)).reshape(B, 4 * 4 * 50)
    h = jax.nn.relu(flat @ params["fc1_w"].T + params["fc1_b"])
    y = h @ params["fc2_w"].T + params["fc2_b"]
    return jax.nn.log_softmax(y, axis=-1)


if __name__ == "__main__":
    key = jax.random.PRNGKey(0)
    pkey, xkey = jax.random.split(key)
    params = init_params(pkey)
    # MNIST-shaped input (28x28 is required by the hardcoded 4*4*50 flatten); small batch=2.
    x = jax.random.normal(xkey, (2, 1, 28, 28), dtype=jnp.float32)

    out = jax.jit(net_forward)(params, x)
    out = jax.block_until_ready(out)

    assert out.shape == (2, 10)
    assert bool(jnp.all(jnp.isfinite(out)))
    # log_softmax rows exponentiate-sum to 1
    assert jnp.allclose(jnp.sum(jnp.exp(out), axis=-1), 1.0, atol=1e-3)
    # cross-check against a pure-XLA f32 reference (loose tol: bf16 operands on MXU)
    ref = jax.block_until_ready(jax.jit(reference_forward)(params, x))
    assert float(jnp.max(jnp.abs(out - ref))) < 1e-1
    print("KERNEL_OK")
</pallas_src>

<mosaic_0001>
module attributes {stable_mosaic.version = 11 : i64} {
  func.func @_conv_relu_pool_kernel(%arg0: i32, %arg1: memref<4x2x144x32xbf16, #tpu.memory_space<vmem>>, %arg2: memref<32x32xbf16, #tpu.memory_space<vmem>>, %arg3: memref<1x32xf32, #tpu.memory_space<vmem>>, %arg4: memref<2x144x32xbf16, #tpu.memory_space<vmem>>) attributes {dimension_semantics = [#tpu.dimension_semantics<parallel>], iteration_bounds = array<i64: 1>, scalar_prefetch = 0 : i64, scratch_operands = 0 : i64, tpu.core_type = #tpu.core_type<tc>, window_params = [{transform_indices = @transform_0, window_bounds = array<i64: 4, 2, 144, 32>}, {pipeline_mode = #tpu.pipeline_mode<synchronous>, transform_indices = @transform_1, window_bounds = array<i64: 32, 32>}, {pipeline_mode = #tpu.pipeline_mode<synchronous>, transform_indices = @transform_2, window_bounds = array<i64: 1, 32>}, {transform_indices = @transform_3, window_bounds = array<i64: 2, 144, 32>}]} {
    %c0 = arith.constant 0 : index
    %c0_0 = arith.constant 0 : index
    %0 = vector.load %arg2[%c0, %c0_0] : memref<32x32xbf16, #tpu.memory_space<vmem>>, vector<32x32xbf16>
    %c0_1 = arith.constant 0 : index
    %c0_2 = arith.constant 0 : index
    %c0_3 = arith.constant 0 : index
    %c0_4 = arith.constant 0 : index
    %1 = vector.load %arg1[%c0_1, %c0_2, %c0_3, %c0_4] : memref<4x2x144x32xbf16, #tpu.memory_space<vmem>>, vector<4x2x144x32xbf16>
    %2 = vector.shape_cast %1 : vector<4x2x144x32xbf16> to vector<1152x32xbf16>
    %cst = arith.constant dense<0.000000e+00> : vector<1152x32xf32>
    %3 = tpu.matmul %2, %0, %cst {dimension_numbers = #tpu.dot_dimension_numbers<[1], [0], [0], [1], [0, 0, 1, 1], [], []>} : vector<1152x32xbf16>, vector<32x32xbf16>, vector<1152x32xf32> -> vector<1152x32xf32>
    %4 = vector.shape_cast %3 : vector<1152x32xf32> to vector<4x288x32xf32>
    %5 = vector.extract_strided_slice %4 {offsets = [0, 0, 0], sizes = [1, 288, 32], strides = [1, 1, 1]} : vector<4x288x32xf32> to vector<1x288x32xf32>
    %6 = vector.shape_cast %5 : vector<1x288x32xf32> to vector<288x32xf32>
    %7 = vector.extract_strided_slice %4 {offsets = [1, 0, 0], sizes = [1, 288, 32], strides = [1, 1, 1]} : vector<4x288x32xf32> to vector<1x288x32xf32>
    %8 = vector.shape_cast %7 : vector<1x288x32xf32> to vector<288x32xf32>
    %9 = arith.maximumf %6, %8 : vector<288x32xf32>
    %10 = vector.extract_strided_slice %4 {offsets = [2, 0, 0], sizes = [1, 288, 32], strides = [1, 1, 1]} : vector<4x288x32xf32> to vector<1x288x32xf32>
    %11 = vector.shape_cast %10 : vector<1x288x32xf32> to vector<288x32xf32>
    %12 = vector.extract_strided_slice %4 {offsets = [3, 0, 0], sizes = [1, 288, 32], strides = [1, 1, 1]} : vector<4x288x32xf32> to vector<1x288x32xf32>
    %13 = vector.shape_cast %12 : vector<1x288x32xf32> to vector<288x32xf32>
    %14 = arith.maximumf %11, %13 : vector<288x32xf32>
    %15 = arith.maximumf %9, %14 : vector<288x32xf32>
    %c0_5 = arith.constant 0 : index
    %c0_6 = arith.constant 0 : index
    %16 = vector.load %arg3[%c0_5, %c0_6] : memref<1x32xf32, #tpu.memory_space<vmem>>, vector<1x32xf32>
    %17 = vector.broadcast %16 : vector<1x32xf32> to vector<288x32xf32>
    %18 = arith.addf %15, %17 : vector<288x32xf32>
    %cst_7 = arith.constant 0.000000e+00 : f32
    %19 = vector.broadcast %cst_7 : f32 to vector<288x32xf32>
    %20 = arith.maximumf %18, %19 : vector<288x32xf32>
    %21 = vector.shape_cast %20 : vector<288x32xf32> to vector<2x144x32xf32>
    %22 = arith.truncf %21 : vector<2x144x32xf32> to vector<2x144x32xbf16>
    %c0_8 = arith.constant 0 : index
    %c0_9 = arith.constant 0 : index
    %c0_10 = arith.constant 0 : index
    %23 = vector.load %arg4[%c0_8, %c0_9, %c0_10] : memref<2x144x32xbf16, #tpu.memory_space<vmem>>, vector<2x144x32xbf16>
    tpu.vector_store %arg4[%c0_8, %c0_9, %c0_10], %22 {strides = array<i32>} : memref<2x144x32xbf16, #tpu.memory_space<vmem>>, vector<2x144x32xbf16>,
    return
  }
  func.func @transform_0(%arg0: i32) -> (i32, i32, i32, i32) {
    %c0_i32 = arith.constant 0 : i32
    %c0_i32_0 = arith.constant 0 : i32
    %c0_i32_1 = arith.constant 0 : i32
    %c0_i32_2 = arith.constant 0 : i32
    return %c0_i32, %arg0, %c0_i32_0, %c0_i32_1 : i32, i32, i32, i32
  }
  func.func @transform_1(%arg0: i32) -> (i32, i32) {
    %c0_i32 = arith.constant 0 : i32
    %c0_i32_0 = arith.constant 0 : i32
    %c0_i32_1 = arith.constant 0 : i32
    return %c0_i32, %c0_i32_0 : i32, i32
  }
  func.func @transform_2(%arg0: i32) -> (i32, i32) {
    %c0_i32 = arith.constant 0 : i32
    %c0_i32_0 = arith.constant 0 : i32
    %c0_i32_1 = arith.constant 0 : i32
    return %c0_i32, %c0_i32_0 : i32, i32
  }
  func.func @transform_3(%arg0: i32) -> (i32, i32, i32) {
    %c0_i32 = arith.constant 0 : i32
    %c0_i32_0 = arith.constant 0 : i32
    %c0_i32_1 = arith.constant 0 : i32
    return %arg0, %c0_i32, %c0_i32_0 : i32, i32, i32
  }
}

module attributes {stable_mosaic.version = 11 : i64} {
  func.func @_conv_relu_pool_kernel(%arg0: i32, %arg1: memref<4x2x16x512xbf16, #tpu.memory_space<vmem>>, %arg2: memref<512x128xbf16, #tpu.memory_space<vmem>>, %arg3: memref<1x128xf32, #tpu.memory_space<vmem>>, %arg4: memref<2x16x128xbf16, #tpu.memory_space<vmem>>) attributes {dimension_semantics = [#tpu.dimension_semantics<parallel>], iteration_bounds = array<i64: 1>, scalar_prefetch = 0 : i64, scratch_operands = 0 : i64, tpu.core_type = #tpu.core_type<tc>, window_params = [{transform_indices = @transform_0, window_bounds = array<i64: 4, 2, 16, 512>}, {pipeline_mode = #tpu.pipeline_mode<synchronous>, transform_indices = @transform_1, window_bounds = array<i64: 512, 128>}, {pipeline_mode = #tpu.pipeline_mode<synchronous>, transform_indices = @transform_2, window_bounds = array<i64: 1, 128>}, {transform_indices = @transform_3, window_bounds = array<i64: 2, 16, 128>}]} {
    %c0 = arith.constant 0 : index
    %c0_0 = arith.constant 0 : index
    %0 = vector.load %arg2[%c0, %c0_0] : memref<512x128xbf16, #tpu.memory_space<vmem>>, vector<512x128xbf16>
    %c0_1 = arith.constant 0 : index
    %c0_2 = arith.constant 0 : index
    %c0_3 = arith.constant 0 : index
    %c0_4 = arith.constant 0 : index
    %1 = vector.load %arg1[%c0_1, %c0_2, %c0_3, %c0_4] : memref<4x2x16x512xbf16, #tpu.memory_space<vmem>>, vector<4x2x16x512xbf16>
    %2 = vector.shape_cast %1 : vector<4x2x16x512xbf16> to vector<128x512xbf16>
    %cst = arith.constant dense<0.000000e+00> : vector<128x128xf32>
    %3 = tpu.matmul %2, %0, %cst {dimension_numbers = #tpu.dot_dimension_numbers<[1], [0], [0], [1], [0, 0, 1, 1], [], []>} : vector<128x512xbf16>, vector<512x128xbf16>, vector<128x128xf32> -> vector<128x128xf32>
    %4 = vector.shape_cast %3 : vector<128x128xf32> to vector<4x32x128xf32>
    %5 = vector.extract_strided_slice %4 {offsets = [0, 0, 0], sizes = [1, 32, 128], strides = [1, 1, 1]} : vector<4x32x128xf32> to vector<1x32x128xf32>
    %6 = vector.shape_cast %5 : vector<1x32x128xf32> to vector<32x128xf32>
    %7 = vector.extract_strided_slice %4 {offsets = [1, 0, 0], sizes = [1, 32, 128], strides = [1, 1, 1]} : vector<4x32x128xf32> to vector<1x32x128xf32>
    %8 = vector.shape_cast %7 : vector<1x32x128xf32> to vector<32x128xf32>
    %9 = arith.maximumf %6, %8 : vector<32x128xf32>
    %10 = vector.extract_strided_slice %4 {offsets = [2, 0, 0], sizes = [1, 32, 128], strides = [1, 1, 1]} : vector<4x32x128xf32> to vector<1x32x128xf32>
    %11 = vector.shape_cast %10 : vector<1x32x128xf32> to vector<32x128xf32>
    %12 = vector.extract_strided_slice %4 {offsets = [3, 0, 0], sizes = [1, 32, 128], strides = [1, 1, 1]} : vector<4x32x128xf32> to vector<1x32x128xf32>
    %13 = vector.shape_cast %12 : vector<1x32x128xf32> to vector<32x128xf32>
    %14 = arith.maximumf %11, %13 : vector<32x128xf32>
    %15 = arith.maximumf %9, %14 : vector<32x128xf32>
    %c0_5 = arith.constant 0 : index
    %c0_6 = arith.constant 0 : index
    %16 = vector.load %arg3[%c0_5, %c0_6] : memref<1x128xf32, #tpu.memory_space<vmem>>, vector<1x128xf32>
    %17 = vector.broadcast %16 : vector<1x128xf32> to vector<32x128xf32>
    %18 = arith.addf %15, %17 : vector<32x128xf32>
    %cst_7 = arith.constant 0.000000e+00 : f32
    %19 = vector.broadcast %cst_7 : f32 to vector<32x128xf32>
    %20 = arith.maximumf %18, %19 : vector<32x128xf32>
    %21 = vector.shape_cast %20 : vector<32x128xf32> to vector<2x16x128xf32>
    %22 = arith.truncf %21 : vector<2x16x128xf32> to vector<2x16x128xbf16>
    %c0_8 = arith.constant 0 : index
    %c0_9 = arith.constant 0 : index
    %c0_10 = arith.constant 0 : index
    %23 = vector.load %arg4[%c0_8, %c0_9, %c0_10] : memref<2x16x128xbf16, #tpu.memory_space<vmem>>, vector<2x16x128xbf16>
    tpu.vector_store %arg4[%c0_8, %c0_9, %c0_10], %22 {strides = array<i32>} : memref<2x16x128xbf16, #tpu.memory_space<vmem>>, vector<2x16x128xbf16>,
    return
  }
  func.func @transform_0(%arg0: i32) -> (i32, i32, i32, i32) {
    %c0_i32 = arith.constant 0 : i32
    %c0_i32_0 = arith.constant 0 : i32
    %c0_i32_1 = arith.constant 0 : i32
    %c0_i32_2 = arith.constant 0 : i32
    return %c0_i32, %arg0, %c0_i32_0, %c0_i32_1 : i32, i32, i32, i32
  }
  func.func @transform_1(%arg0: i32) -> (i32, i32) {
    %c0_i32 = arith.constant 0 : i32
    %c0_i32_0 = arith.constant 0 : i32
    %c0_i32_1 = arith.constant 0 : i32
    return %c0_i32, %c0_i32_0 : i32, i32
  }
  func.func @transform_2(%arg0: i32) -> (i32, i32) {
    %c0_i32 = arith.constant 0 : i32
    %c0_i32_0 = arith.constant 0 : i32
    %c0_i32_1 = arith.constant 0 : i32
    return %c0_i32, %c0_i32_0 : i32, i32
  }
  func.func @transform_3(%arg0: i32) -> (i32, i32, i32) {
    %c0_i32 = arith.constant 0 : i32
    %c0_i32_0 = arith.constant 0 : i32
    %c0_i32_1 = arith.constant 0 : i32
    return %arg0, %c0_i32, %c0_i32_0 : i32, i32, i32
  }
}

module attributes {stable_mosaic.version = 11 : i64} {
  func.func @_fc_head_kernel(%arg0: i32, %arg1: memref<8x896xbf16, #tpu.memory_space<vmem>>, %arg2: memref<896x512xbf16, #tpu.memory_space<vmem>>, %arg3: memref<1x512xf32, #tpu.memory_space<vmem>>, %arg4: memref<512x128xbf16, #tpu.memory_space<vmem>>, %arg5: memref<1x128xf32, #tpu.memory_space<vmem>>, %arg6: memref<8x128xf32, #tpu.memory_space<vmem>>) attributes {dimension_semantics = [#tpu.dimension_semantics<parallel>], iteration_bounds = array<i64: 1>, scalar_prefetch = 0 : i64, scratch_operands = 0 : i64, tpu.core_type = #tpu.core_type<tc>, window_params = [{transform_indices = @transform_0, window_bounds = array<i64: 8, 896>}, {pipeline_mode = #tpu.pipeline_mode<synchronous>, transform_indices = @transform_1, window_bounds = array<i64: 896, 512>}, {pipeline_mode = #tpu.pipeline_mode<synchronous>, transform_indices = @transform_2, window_bounds = array<i64: 1, 512>}, {pipeline_mode = #tpu.pipeline_mode<synchronous>, transform_indices = @transform_3, window_bounds = array<i64: 512, 128>}, {pipeline_mode = #tpu.pipeline_mode<synchronous>, transform_indices = @transform_4, window_bounds = array<i64: 1, 128>}, {transform_indices = @transform_5, window_bounds = array<i64: 8, 128>}]} {
    %c0 = arith.constant 0 : index
    %c0_0 = arith.constant 0 : index
    %0 = vector.load %arg1[%c0, %c0_0] : memref<8x896xbf16, #tpu.memory_space<vmem>>, vector<8x896xbf16>
    %c0_1 = arith.constant 0 : index
    %c0_2 = arith.constant 0 : index
    %1 = vector.load %arg2[%c0_1, %c0_2] : memref<896x512xbf16, #tpu.memory_space<vmem>>, vector<896x512xbf16>
    %cst = arith.constant dense<0.000000e+00> : vector<8x512xf32>
    %2 = tpu.matmul %0, %1, %cst {dimension_numbers = #tpu.dot_dimension_numbers<[1], [0], [0], [1], [0, 0, 1, 1], [], []>} : vector<8x896xbf16>, vector<896x512xbf16>, vector<8x512xf32> -> vector<8x512xf32>
    %c0_3 = arith.constant 0 : index
    %c0_4 = arith.constant 0 : index
    %3 = vector.load %arg3[%c0_3, %c0_4] : memref<1x512xf32, #tpu.memory_space<vmem>>, vector<1x512xf32>
    %4 = vector.broadcast %3 : vector<1x512xf32> to vector<8x512xf32>
    %5 = arith.addf %2, %4 : vector<8x512xf32>
    %cst_5 = arith.constant 0.000000e+00 : f32
    %6 = vector.broadcast %cst_5 : f32 to vector<8x512xf32>
    %7 = arith.maximumf %5, %6 : vector<8x512xf32>
    %8 = arith.truncf %7 : vector<8x512xf32> to vector<8x512xbf16>
    %c0_6 = arith.constant 0 : index
    %c0_7 = arith.constant 0 : index
    %9 = vector.load %arg4[%c0_6, %c0_7] : memref<512x128xbf16, #tpu.memory_space<vmem>>, vector<512x128xbf16>
    %cst_8 = arith.constant dense<0.000000e+00> : vector<8x128xf32>
    %10 = tpu.matmul %8, %9, %cst_8 {dimension_numbers = #tpu.dot_dimension_numbers<[1], [0], [0], [1], [0, 0, 1, 1], [], []>} : vector<8x512xbf16>, vector<512x128xbf16>, vector<8x128xf32> -> vector<8x128xf32>
    %c0_9 = arith.constant 0 : index
    %c0_10 = arith.constant 0 : index
    %11 = vector.load %arg5[%c0_9, %c0_10] : memref<1x128xf32, #tpu.memory_space<vmem>>, vector<1x128xf32>
    %12 = vector.broadcast %11 : vector<1x128xf32> to vector<8x128xf32>
    %13 = arith.addf %10, %12 : vector<8x128xf32>
    %cst_11 = arith.constant dense<0xFF800000> : vector<8xf32>
    %14 = vector.multi_reduction <maximumf>, %13, %cst_11 [1] : vector<8x128xf32> to vector<8xf32>
    %15 = vector.shape_cast %14 : vector<8xf32> to vector<8x1xf32>
    %16 = vector.broadcast %15 : vector<8x1xf32> to vector<8x128xf32>
    %17 = arith.subf %13, %16 : vector<8x128xf32>
    %18 = math.exp %17 : vector<8x128xf32>
    %cst_12 = arith.constant dense<0.000000e+00> : vector<8xf32>
    %19 = vector.multi_reduction <add>, %18, %cst_12 [1] : vector<8x128xf32> to vector<8xf32>
    %20 = vector.shape_cast %19 : vector<8xf32> to vector<8x1xf32>
    %21 = math.log %20 : vector<8x1xf32>
    %22 = vector.broadcast %21 : vector<8x1xf32> to vector<8x128xf32>
    %23 = arith.subf %17, %22 : vector<8x128xf32>
    %c0_13 = arith.constant 0 : index
    %c0_14 = arith.constant 0 : index
    %24 = vector.load %arg6[%c0_13, %c0_14] : memref<8x128xf32, #tpu.memory_space<vmem>>, vector<8x128xf32>
    tpu.vector_store %arg6[%c0_13, %c0_14], %23 {strides = array<i32>} : memref<8x128xf32, #tpu.memory_space<vmem>>, vector<8x128xf32>,
    return
  }
  func.func @transform_0(%arg0: i32) -> (i32, i32) {
    %c0_i32 = arith.constant 0 : i32
    %c0_i32_0 = arith.constant 0 : i32
    return %arg0, %c0_i32 : i32, i32
  }
  func.func @transform_1(%arg0: i32) -> (i32, i32) {
    %c0_i32 = arith.constant 0 : i32
    %c0_i32_0 = arith.constant 0 : i32
    %c0_i32_1 = arith.constant 0 : i32
    return %c0_i32, %c0_i32_0 : i32, i32
  }
  func.func @transform_2(%arg0: i32) -> (i32, i32) {
    %c0_i32 = arith.constant 0 : i32
    %c0_i32_0 = arith.constant 0 : i32
    %c0_i32_1 = arith.constant 0 : i32
    return %c0_i32, %c0_i32_0 : i32, i32
  }
  func.func @transform_3(%arg0: i32) -> (i32, i32) {
    %c0_i32 = arith.constant 0 : i32
    %c0_i32_0 = arith.constant 0 : i32
    %c0_i32_1 = arith.constant 0 : i32
    return %c0_i32, %c0_i32_0 : i32, i32
  }
  func.func @transform_4(%arg0: i32) -> (i32, i32) {
    %c0_i32 = arith.constant 0 : i32
    %c0_i32_0 = arith.constant 0 : i32
    %c0_i32_1 = arith.constant 0 : i32
    return %c0_i32, %c0_i32_0 : i32, i32
  }
  func.func @transform_5(%arg0: i32) -> (i32, i32) {
    %c0_i32 = arith.constant 0 : i32
    %c0_i32_0 = arith.constant 0 : i32
    return %arg0, %c0_i32 : i32, i32
  }
}

</mosaic_0001>

<llo_original>
// kernel: net_forward.3
$region0: #{net_forward.3}
  #allocation0 [shape = 'u32[]', space=smem, size = 0x4, offset = 0x4, fixed_abs, tag = 'smem constant byte address 0x4 - core index']
  #allocation1 [shape = 'u32[144,128]{1,0:T(1,128)}', space=vmem, size = 0x12000, scoped, tag = 'internal scratch']
  %s0 = inlined_call_operand.vmem [shape: bf16[4,2,144,32], index: 0, kind: input, shape index: {}]
  %s1 = inlined_call_operand.vmem [shape: bf16[32,32], index: 1, kind: input, shape index: {}]
  %s2 = inlined_call_operand.vmem [shape: f32[1,32], index: 2, kind: input, shape index: {}]
  %s3 = inlined_call_operand.vmem [shape: bf16[2,144,32], index: 3, kind: output, shape index: {}]
  %s4 = sld [smem:[#allocation0]]
  $region22: #{net_forward.3} parent=0
    _
  %s6 = ssub.s32 1, %s4
  %s7 = scalar_select 0, %s6, %s4
  // Predicated region
  $region2: #{net_forward.3} parent=0 // pred_check
    _
  $region3: #{net_forward.3} parent=0 // pred_check_branch
    %9 = sbr.rel (0) target = $region5
  $region4: #{net_forward.3} parent=0 // pred_region
    _
  $region5: #{net_forward.3} parent=0 // pred_fallthru
    _
  // Predicated region
  $region6: #{net_forward.3} parent=0 // pred_check
    _
  $region7: #{net_forward.3} parent=0 // pred_check_branch
    %11 = sbr.rel (0) target = $region9
  $region8: #{net_forward.3} parent=0 // pred_region
    _
  $region9: #{net_forward.3} parent=0 // pred_fallthru
    _
  // Predicated region
  $region10: #{net_forward.3} parent=0 // pred_check
    _
  $region11: #{net_forward.3} parent=0 // pred_check_branch
    %13 = sbr.rel (0) target = $region13
  $region12: #{net_forward.3} parent=0 // pred_region
    _
  $region13: #{net_forward.3} parent=0 // pred_fallthru
    _
  %v15 = vld [vmem:[%s1] sm:$0xf]
  %v16 = vld [vmem:[%s1 + $0x4] sm:$0xf]
  %v17 = vld [vmem:[%s1 + $0x8] sm:$0xf]
  %v18 = vld [vmem:[%s1 + $0xc] sm:$0xf]
  %v19 = vld [vmem:[%s0] sm:$0xf]
  %v20 = vld [vmem:[%s0 + $0x4] sm:$0xf]
  %v21 = vld [vmem:[%s0 + $0x8] sm:$0xf]
  %v22 = vld [vmem:[%s0 + $0xc] sm:$0xf]
  %v23 = vld [vmem:[%s0 + $0x10] sm:$0xf]
  %v24 = vld [vmem:[%s0 + $0x14] sm:$0xf]
  %v25 = vld [vmem:[%s0 + $0x18] sm:$0xf]
  %v26 = vld [vmem:[%s0 + $0x1c] sm:$0xf]
  %v27 = vld [vmem:[%s0 + $0x20] sm:$0xf]
  %v28 = vld [vmem:[%s0 + $0x24] sm:$0xf]
  %v29 = vld [vmem:[%s0 + $0x28] sm:$0xf]
  %v30 = vld [vmem:[%s0 + $0x2c] sm:$0xf]
  %v31 = vld [vmem:[%s0 + $0x30] sm:$0xf]
  %v32 = vld [vmem:[%s0 + $0x34] sm:$0xf]
  %v33 = vld [vmem:[%s0 + $0x38] sm:$0xf]
  %v34 = vld [vmem:[%s0 + $0x3c] sm:$0xf]
  %v35 = vld [vmem:[%s0 + $0x40] sm:$0xf]
  %v36 = vld [vmem:[%s0 + $0x44] sm:$0xf]
  %v37 = vld [vmem:[%s0 + $0x48] sm:$0xf]
  %v38 = vld [vmem:[%s0 + $0x4c] sm:$0xf]
  %v39 = vld [vmem:[%s0 + $0x50] sm:$0xf]
  %v40 = vld [vmem:[%s0 + $0x54] sm:$0xf]
  %v41 = vld [vmem:[%s0 + $0x58] sm:$0xf]
  %v42 = vld [vmem:[%s0 + $0x5c] sm:$0xf]
  %v43 = vld [vmem:[%s0 + $0x60] sm:$0xf]
  %v44 = vld [vmem:[%s0 + $0x64] sm:$0xf]
  %v45 = vld [vmem:[%s0 + $0x68] sm:$0xf]
  %v46 = vld [vmem:[%s0 + $0x6c] sm:$0xf]
  %v47 = vld [vmem:[%s0 + $0x70] sm:$0xf]
  %v48 = vld [vmem:[%s0 + $0x74] sm:$0xf]
  %v49 = vld [vmem:[%s0 + $0x78] sm:$0xf]
  %v50 = vld [vmem:[%s0 + $0x7c] sm:$0xf]
  %v51 = vld [vmem:[%s0 + $0x80] sm:$0xf]
  %v52 = vld [vmem:[%s0 + $0x84] sm:$0xf]
  %v53 = vld [vmem:[%s0 + $0x88] sm:$0xf]
  %v54 = vld [vmem:[%s0 + $0x8c] sm:$0xf]
  %v55 = vld [vmem:[%s0 + $0x90] sm:$0xf]
  %v56 = vld [vmem:[%s0 + $0x94] sm:$0xf]
  %v57 = vld [vmem:[%s0 + $0x98] sm:$0xf]
  %v58 = vld [vmem:[%s0 + $0x9c] sm:$0xf]
  %v59 = vld [vmem:[%s0 + $0xa0] sm:$0xf]
  %v60 = vld [vmem:[%s0 + $0xa4] sm:$0xf]
  %v61 = vld [vmem:[%s0 + $0xa8] sm:$0xf]
  %v62 = vld [vmem:[%s0 + $0xac] sm:$0xf]
  %v63 = vld [vmem:[%s0 + $0xb0] sm:$0xf]
  %v64 = vld [vmem:[%s0 + $0xb4] sm:$0xf]
  %v65 = vld [vmem:[%s0 + $0xb8] sm:$0xf]
  %v66 = vld [vmem:[%s0 + $0xbc] sm:$0xf]
  %v67 = vld [vmem:[%s0 + $0xc0] sm:$0xf]
  %v68 = vld [vmem:[%s0 + $0xc4] sm:$0xf]
  %v69 = vld [vmem:[%s0 + $0xc8] sm:$0xf]
  %v70 = vld [vmem:[%s0 + $0xcc] sm:$0xf]
  %v71 = vld [vmem:[%s0 + $0xd0] sm:$0xf]
  %v72 = vld [vmem:[%s0 + $0xd4] sm:$0xf]
  %v73 = vld [vmem:[%s0 + $0xd8] sm:$0xf]
  %v74 = vld [vmem:[%s0 + $0xdc] sm:$0xf]
  %v75 = vld [vmem:[%s0 + $0xe0] sm:$0xf]
  %v76 = vld [vmem:[%s0 + $0xe4] sm:$0xf]
  %v77 = vld [vmem:[%s0 + $0xe8] sm:$0xf]
  %v78 = vld [vmem:[%s0 + $0xec] sm:$0xf]
  %v79 = vld [vmem:[%s0 + $0xf0] sm:$0xf]
  %v80 = vld [vmem:[%s0 + $0xf4] sm:$0xf]
  %v81 = vld [vmem:[%s0 + $0xf8] sm:$0xf]
  %v82 = vld [vmem:[%s0 + $0xfc] sm:$0xf]
  %v83 = vld [vmem:[%s0 + $0x100] sm:$0xf]
  %v84 = vld [vmem:[%s0 + $0x104] sm:$0xf]
  %v85 = vld [vmem:[%s0 + $0x108] sm:$0xf]
  %v86 = vld [vmem:[%s0 + $0x10c] sm:$0xf]
  %v87 = vld [vmem:[%s0 + $0x110] sm:$0xf]
  %v88 = vld [vmem:[%s0 + $0x114] sm:$0xf]
  %v89 = vld [vmem:[%s0 + $0x118] sm:$0xf]
  %v90 = vld [vmem:[%s0 + $0x11c] sm:$0xf]
  %v91 = vld [vmem:[%s0 + $0x120] sm:$0xf]
  %v92 = vld [vmem:[%s0 + $0x124] sm:$0xf]
  %v93 = vld [vmem:[%s0 + $0x128] sm:$0xf]
  %v94 = vld [vmem:[%s0 + $0x12c] sm:$0xf]
  %v95 = vld [vmem:[%s0 + $0x130] sm:$0xf]
  %v96 = vld [vmem:[%s0 + $0x134] sm:$0xf]
  %v97 = vld [vmem:[%s0 + $0x138] sm:$0xf]
  %v98 = vld [vmem:[%s0 + $0x13c] sm:$0xf]
  %v99 = vld [vmem:[%s0 + $0x140] sm:$0xf]
  %v100 = vld [vmem:[%s0 + $0x144] sm:$0xf]
  %v101 = vld [vmem:[%s0 + $0x148] sm:$0xf]
  %v102 = vld [vmem:[%s0 + $0x14c] sm:$0xf]
  %v103 = vld [vmem:[%s0 + $0x150] sm:$0xf]
  %v104 = vld [vmem:[%s0 + $0x154] sm:$0xf]
  %v105 = vld [vmem:[%s0 + $0x158] sm:$0xf]
  %v106 = vld [vmem:[%s0 + $0x15c] sm:$0xf]
  %v107 = vld [vmem:[%s0 + $0x160] sm:$0xf]
  %v108 = vld [vmem:[%s0 + $0x164] sm:$0xf]
  %v109 = vld [vmem:[%s0 + $0x168] sm:$0xf]
  %v110 = vld [vmem:[%s0 + $0x16c] sm:$0xf]
  %v111 = vld [vmem:[%s0 + $0x170] sm:$0xf]
  %v112 = vld [vmem:[%s0 + $0x174] sm:$0xf]
  %v113 = vld [vmem:[%s0 + $0x178] sm:$0xf]
  %v114 = vld [vmem:[%s0 + $0x17c] sm:$0xf]
  %v115 = vld [vmem:[%s0 + $0x180] sm:$0xf]
  %v116 = vld [vmem:[%s0 + $0x184] sm:$0xf]
  %v117 = vld [vmem:[%s0 + $0x188] sm:$0xf]
  %v118 = vld [vmem:[%s0 + $0x18c] sm:$0xf]
  %v119 = vld [vmem:[%s0 + $0x190] sm:$0xf]
  %v120 = vld [vmem:[%s0 + $0x194] sm:$0xf]
  %v121 = vld [vmem:[%s0 + $0x198] sm:$0xf]
  %v122 = vld [vmem:[%s0 + $0x19c] sm:$0xf]
  %v123 = vld [vmem:[%s0 + $0x1a0] sm:$0xf]
  %v124 = vld [vmem:[%s0 + $0x1a4] sm:$0xf]
  %v125 = vld [vmem:[%s0 + $0x1a8] sm:$0xf]
  %v126 = vld [vmem:[%s0 + $0x1ac] sm:$0xf]
  %v127 = vld [vmem:[%s0 + $0x1b0] sm:$0xf]
  %v128 = vld [vmem:[%s0 + $0x1b4] sm:$0xf]
  %v129 = vld [vmem:[%s0 + $0x1b8] sm:$0xf]
  %v130 = vld [vmem:[%s0 + $0x1bc] sm:$0xf]
  %v131 = vld [vmem:[%s0 + $0x1c0] sm:$0xf]
  %v132 = vld [vmem:[%s0 + $0x1c4] sm:$0xf]
  %v133 = vld [vmem:[%s0 + $0x1c8] sm:$0xf]
  %v134 = vld [vmem:[%s0 + $0x1cc] sm:$0xf]
  %v135 = vld [vmem:[%s0 + $0x1d0] sm:$0xf]
  %v136 = vld [vmem:[%s0 + $0x1d4] sm:$0xf]
  %v137 = vld [vmem:[%s0 + $0x1d8] sm:$0xf]
  %v138 = vld [vmem:[%s0 + $0x1dc] sm:$0xf]
  %v139 = vld [vmem:[%s0 + $0x1e0] sm:$0xf]
  %v140 = vld [vmem:[%s0 + $0x1e4] sm:$0xf]
  %v141 = vld [vmem:[%s0 + $0x1e8] sm:$0xf]
  %v142 = vld [vmem:[%s0 + $0x1ec] sm:$0xf]
  %v143 = vld [vmem:[%s0 + $0x1f0] sm:$0xf]
  %v144 = vld [vmem:[%s0 + $0x1f4] sm:$0xf]
  %v145 = vld [vmem:[%s0 + $0x1f8] sm:$0xf]
  %v146 = vld [vmem:[%s0 + $0x1fc] sm:$0xf]
  %v147 = vld [vmem:[%s0 + $0x200] sm:$0xf]
  %v148 = vld [vmem:[%s0 + $0x204] sm:$0xf]
  %v149 = vld [vmem:[%s0 + $0x208] sm:$0xf]
  %v150 = vld [vmem:[%s0 + $0x20c] sm:$0xf]
  %v151 = vld [vmem:[%s0 + $0x210] sm:$0xf]
  %v152 = vld [vmem:[%s0 + $0x214] sm:$0xf]
  %v153 = vld [vmem:[%s0 + $0x218] sm:$0xf]
  %v154 = vld [vmem:[%s0 + $0x21c] sm:$0xf]
  %v155 = vld [vmem:[%s0 + $0x220] sm:$0xf]
  %v156 = vld [vmem:[%s0 + $0x224] sm:$0xf]
  %v157 = vld [vmem:[%s0 + $0x228] sm:$0xf]
  %v158 = vld [vmem:[%s0 + $0x22c] sm:$0xf]
  %v159 = vld [vmem:[%s0 + $0x230] sm:$0xf]
  %v160 = vld [vmem:[%s0 + $0x234] sm:$0xf]
  %v161 = vld [vmem:[%s0 + $0x238] sm:$0xf]
  %v162 = vld [vmem:[%s0 + $0x23c] sm:$0xf]
  %v307 = vunpack.c.l.b16 %v19
  %v308 = vunpack.c.l.b16 %v20
  %v309 = vunpack.c.l.b16 %v21
  %v310 = vunpack.c.l.b16 %v22
  %v311 = vunpack.c.l.b16 %v23
  %v312 = vunpack.c.l.b16 %v24
  %v313 = vunpack.c.l.b16 %v25
  %v314 = vunpack.c.l.b16 %v26
  %v315 = vunpack.c.l.b16 %v27
  %v316 = vunpack.c.l.b16 %v28
  %v317 = vunpack.c.l.b16 %v29
  %v318 = vunpack.c.l.b16 %v30
  %v319 = vunpack.c.l.b16 %v31
  %v320 = vunpack.c.l.b16 %v32
  %v321 = vunpack.c.l.b16 %v33
  %v322 = vunpack.c.l.b16 %v34
  %v323 = vunpack.c.l.b16 %v35
  %v324 = vunpack.c.l.b16 %v36
  %v325 = vunpack.c.l.b16 %v37
  %v326 = vunpack.c.l.b16 %v38
  %v327 = vunpack.c.l.b16 %v39
  %v328 = vunpack.c.l.b16 %v40
  %v329 = vunpack.c.l.b16 %v41
  %v330 = vunpack.c.l.b16 %v42
  %v331 = vunpack.c.l.b16 %v43
  %v332 = vunpack.c.l.b16 %v44
  %v333 = vunpack.c.l.b16 %v45
  %v334 = vunpack.c.l.b16 %v46
  %v335 = vunpack.c.l.b16 %v47
  %v336 = vunpack.c.l.b16 %v48
  %v337 = vunpack.c.l.b16 %v49
  %v338 = vunpack.c.l.b16 %v50
  %v339 = vunpack.c.l.b16 %v51
  %v340 = vunpack.c.l.b16 %v52
  %v341 = vunpack.c.l.b16 %v53
  %v342 = vunpack.c.l.b16 %v54
  %v343 = vunpack.c.l.b16 %v55
  %v344 = vunpack.c.l.b16 %v56
  %v345 = vunpack.c.l.b16 %v57
  %v346 = vunpack.c.l.b16 %v58
  %v347 = vunpack.c.l.b16 %v59
  %v348 = vunpack.c.l.b16 %v60
  %v349 = vunpack.c.l.b16 %v61
  %v350 = vunpack.c.l.b16 %v62
  %v351 = vunpack.c.l.b16 %v63
  %v352 = vunpack.c.l.b16 %v64
  %v353 = vunpack.c.l.b16 %v65
  %v354 = vunpack.c.l.b16 %v66
  %v355 = vunpack.c.l.b16 %v67
  %v356 = vunpack.c.l.b16 %v68
  %v357 = vunpack.c.l.b16 %v69
  %v358 = vunpack.c.l.b16 %v70
  %v359 = vunpack.c.l.b16 %v71
  %v360 = vunpack.c.l.b16 %v72
  %v361 = vunpack.c.l.b16 %v73
  %v362 = vunpack.c.l.b16 %v74
  %v363 = vunpack.c.l.b16 %v75
  %v364 = vunpack.c.l.b16 %v76
  %v365 = vunpack.c.l.b16 %v77
  %v366 = vunpack.c.l.b16 %v78
  %v367 = vunpack.c.l.b16 %v79
  %v368 = vunpack.c.l.b16 %v80
  %v369 = vunpack.c.l.b16 %v81
  %v370 = vunpack.c.l.b16 %v82
  %v371 = vunpack.c.l.b16 %v83
  %v372 = vunpack.c.l.b16 %v84
  %v373 = vunpack.c.l.b16 %v85
  %v374 = vunpack.c.l.b16 %v86
  %v375 = vunpack.c.l.b16 %v87
  %v376 = vunpack.c.l.b16 %v88
  %v377 = vunpack.c.l.b16 %v89
  %v378 = vunpack.c.l.b16 %v90
  %v379 = vunpack.c.l.b16 %v91
  %v380 = vunpack.c.l.b16 %v92
  %v381 = vunpack.c.l.b16 %v93
  %v382 = vunpack.c.l.b16 %v94
  %v383 = vunpack.c.l.b16 %v95
  %v384 = vunpack.c.l.b16 %v96
  %v385 = vunpack.c.l.b16 %v97
  %v386 = vunpack.c.l.b16 %v98
  %v387 = vunpack.c.l.b16 %v99
  %v388 = vunpack.c.l.b16 %v100
  %v389 = vunpack.c.l.b16 %v101
  %v390 = vunpack.c.l.b16 %v102
  %v391 = vunpack.c.l.b16 %v103
  %v392 = vunpack.c.l.b16 %v104
  %v393 = vunpack.c.l.b16 %v105
  %v394 = vunpack.c.l.b16 %v106
  %v395 = vunpack.c.l.b16 %v107
  %v396 = vunpack.c.l.b16 %v108
  %v397 = vunpack.c.l.b16 %v109
  %v398 = vunpack.c.l.b16 %v110
  %v399 = vunpack.c.l.b16 %v111
  %v400 = vunpack.c.l.b16 %v112
  %v401 = vunpack.c.l.b16 %v113
  %v402 = vunpack.c.l.b16 %v114
  %v403 = vunpack.c.l.b16 %v115
  %v404 = vunpack.c.l.b16 %v116
  %v405 = vunpack.c.l.b16 %v117
  %v406 = vunpack.c.l.b16 %v118
  %v407 = vunpack.c.l.b16 %v119
  %v408 = vunpack.c.l.b16 %v120
  %v409 = vunpack.c.l.b16 %v121
  %v410 = vunpack.c.l.b16 %v122
  %v411 = vunpack.c.l.b16 %v123
  %v412 = vunpack.c.l.b16 %v124
  %v413 = vunpack.c.l.b16 %v125
  %v414 = vunpack.c.l.b16 %v126
  %v415 = vunpack.c.l.b16 %v127
  %v416 = vunpack.c.l.b16 %v128
  %v417 = vunpack.c.l.b16 %v129
  %v418 = vunpack.c.l.b16 %v130
  %v419 = vunpack.c.l.b16 %v131
  %v420 = vunpack.c.l.b16 %v132
  %v421 = vunpack.c.l.b16 %v133
  %v422 = vunpack.c.l.b16 %v134
  %v423 = vunpack.c.l.b16 %v135
  %v424 = vunpack.c.l.b16 %v136
  %v425 = vunpack.c.l.b16 %v137
  %v426 = vunpack.c.l.b16 %v138
  %v427 = vunpack.c.l.b16 %v139
  %v428 = vunpack.c.l.b16 %v140
  %v429 = vunpack.c.l.b16 %v141
  %v430 = vunpack.c.l.b16 %v142
  %v431 = vunpack.c.l.b16 %v143
  %v432 = vunpack.c.l.b16 %v144
  %v433 = vunpack.c.l.b16 %v145
  %v434 = vunpack.c.l.b16 %v146
  %v435 = vunpack.c.l.b16 %v147
  %v436 = vunpack.c.l.b16 %v148
  %v437 = vunpack.c.l.b16 %v149
  %v438 = vunpack.c.l.b16 %v150
  %v439 = vunpack.c.l.b16 %v151
  %v440 = vunpack.c.l.b16 %v152
  %v441 = vunpack.c.l.b16 %v153
  %v442 = vunpack.c.l.b16 %v154
  %v443 = vunpack.c.l.b16 %v155
  %v444 = vunpack.c.l.b16 %v156
  %v445 = vunpack.c.l.b16 %v157
  %v446 = vunpack.c.l.b16 %v158
  %v447 = vunpack.c.l.b16 %v159
  %v448 = vunpack.c.l.b16 %v160
  %v449 = vunpack.c.l.b16 %v161
  %v450 = vunpack.c.l.b16 %v162
  %v451 = vpack.c.b16 %v308, %v307
  %v452 = vpack.c.b16 %v310, %v309
  %v453 = vpack.c.b16 %v312, %v311
  %v454 = vpack.c.b16 %v314, %v313
  %v455 = vpack.c.b16 %v316, %v315
  %v456 = vpack.c.b16 %v318, %v317
  %v457 = vpack.c.b16 %v320, %v319
  %v458 = vpack.c.b16 %v322, %v321
  %v459 = vpack.c.b16 %v324, %v323
  %v460 = vpack.c.b16 %v326, %v325
  %v461 = vpack.c.b16 %v328, %v327
  %v462 = vpack.c.b16 %v330, %v329
  %v463 = vpack.c.b16 %v332, %v331
  %v464 = vpack.c.b16 %v334, %v333
  %v465 = vpack.c.b16 %v336, %v335
  %v466 = vpack.c.b16 %v338, %v337
  %v467 = vpack.c.b16 %v340, %v339
  %v468 = vpack.c.b16 %v342, %v341
  %v469 = vpack.c.b16 %v344, %v343
  %v470 = vpack.c.b16 %v346, %v345
  %v471 = vpack.c.b16 %v348, %v347
  %v472 = vpack.c.b16 %v350, %v349
  %v473 = vpack.c.b16 %v352, %v351
  %v474 = vpack.c.b16 %v354, %v353
  %v475 = vpack.c.b16 %v356, %v355
  %v476 = vpack.c.b16 %v358, %v357
  %v477 = vpack.c.b16 %v360, %v359
  %v478 = vpack.c.b16 %v362, %v361
  %v479 = vpack.c.b16 %v364, %v363
  %v480 = vpack.c.b16 %v366, %v365
  %v481 = vpack.c.b16 %v368, %v367
  %v482 = vpack.c.b16 %v370, %v369
  %v483 = vpack.c.b16 %v372, %v371
  %v484 = vpack.c.b16 %v374, %v373
  %v485 = vpack.c.b16 %v376, %v375
  %v486 = vpack.c.b16 %v378, %v377
  %v487 = vpack.c.b16 %v380, %v379
  %v488 = vpack.c.b16 %v382, %v381
  %v489 = vpack.c.b16 %v384, %v383
  %v490 = vpack.c.b16 %v386, %v385
  %v491 = vpack.c.b16 %v388, %v387
  %v492 = vpack.c.b16 %v390, %v389
  %v493 = vpack.c.b16 %v392, %v391
  %v494 = vpack.c.b16 %v394, %v393
  %v495 = vpack.c.b16 %v396, %v395
  %v496 = vpack.c.b16 %v398, %v397
  %v497 = vpack.c.b16 %v400, %v399
  %v498 = vpack.c.b16 %v402, %v401
  %v499 = vpack.c.b16 %v404, %v403
  %v500 = vpack.c.b16 %v406, %v405
  %v501 = vpack.c.b16 %v408, %v407
  %v502 = vpack.c.b16 %v410, %v409
  %v503 = vpack.c.b16 %v412, %v411
  %v504 = vpack.c.b16 %v414, %v413
  %v505 = vpack.c.b16 %v416, %v415
  %v506 = vpack.c.b16 %v418, %v417
  %v507 = vpack.c.b16 %v420, %v419
  %v508 = vpack.c.b16 %v422, %v421
  %v509 = vpack.c.b16 %v424, %v423
  %v510 = vpack.c.b16 %v426, %v425
  %v511 = vpack.c.b16 %v428, %v427
  %v512 = vpack.c.b16 %v430, %v429
  %v513 = vpack.c.b16 %v432, %v431
  %v514 = vpack.c.b16 %v434, %v433
  %v515 = vpack.c.b16 %v436, %v435
  %v516 = vpack.c.b16 %v438, %v437
  %v517 = vpack.c.b16 %v440, %v439
  %v518 = vpack.c.b16 %v442, %v441
  %v519 = vpack.c.b16 %v444, %v443
  %v520 = vpack.c.b16 %v446, %v445
  %v521 = vpack.c.b16 %v448, %v447
  %v522 = vpack.c.b16 %v450, %v449
  %v527 = vunpack.c.l.b16 %v15
  %v528 = vunpack.c.l.b16 %v16
  %v529 = vunpack.c.l.b16 %v17
  %v530 = vunpack.c.l.b16 %v18
  %v531 = vpack.c.b16 %v528, %v527
  %v532 = vpack.c.b16 %v530, %v529
  %vm535 = vcmask 261120
  %v537 = vsel %vm535, %v451, 0
  %v540 = vsel %vm535, %v452, 0
  %v543 = vsel %vm535, %v453, 0
  %v546 = vsel %vm535, %v454, 0
  %v549 = vsel %vm535, %v455, 0
  %v552 = vsel %vm535, %v456, 0
  %v555 = vsel %vm535, %v457, 0
  %v558 = vsel %vm535, %v458, 0
  %v561 = vsel %vm535, %v459, 0
  %v564 = vsel %vm535, %v460, 0
  %v567 = vsel %vm535, %v461, 0
  %v570 = vsel %vm535, %v462, 0
  %v573 = vsel %vm535, %v463, 0
  %v576 = vsel %vm535, %v464, 0
  %v579 = vsel %vm535, %v465, 0
  %v582 = vsel %vm535, %v466, 0
  %v585 = vsel %vm535, %v467, 0
  %v588 = vsel %vm535, %v468, 0
  %v591 = vsel %vm535, %v469, 0
  %v594 = vsel %vm535, %v470, 0
  %v597 = vsel %vm535, %v471, 0
  %v600 = vsel %vm535, %v472, 0
  %v603 = vsel %vm535, %v473, 0
  %v606 = vsel %vm535, %v474, 0
  %v609 = vsel %vm535, %v475, 0
  %v612 = vsel %vm535, %v476, 0
  %v615 = vsel %vm535, %v477, 0
  %v618 = vsel %vm535, %v478, 0
  %v621 = vsel %vm535, %v479, 0
  %v624 = vsel %vm535, %v480, 0
  %v627 = vsel %vm535, %v481, 0
  %v630 = vsel %vm535, %v482, 0
  %v633 = vsel %vm535, %v483, 0
  %v636 = vsel %vm535, %v484, 0
  %v639 = vsel %vm535, %v485, 0
  %v642 = vsel %vm535, %v486, 0
  %v645 = vsel %vm535, %v487, 0
  %v648 = vsel %vm535, %v488, 0
  %v651 = vsel %vm535, %v489, 0
  %v654 = vsel %vm535, %v490, 0
  %v657 = vsel %vm535, %v491, 0
  %v660 = vsel %vm535, %v492, 0
  %v663 = vsel %vm535, %v493, 0
  %v666 = vsel %vm535, %v494, 0
  %v669 = vsel %vm535, %v495, 0
  %v672 = vsel %vm535, %v496, 0
  %v675 = vsel %vm535, %v497, 0
  %v678 = vsel %vm535, %v498, 0
  %v681 = vsel %vm535, %v499, 0
  %v684 = vsel %vm535, %v500, 0
  %v687 = vsel %vm535, %v501, 0
  %v690 = vsel %vm535, %v502, 0
  %v693 = vsel %vm535, %v503, 0
  %v696 = vsel %vm535, %v504, 0
  %v699 = vsel %vm535, %v505, 0
  %v702 = vsel %vm535, %v506, 0
  %v705 = vsel %vm535, %v507, 0
  %v708 = vsel %vm535, %v508, 0
  %v711 = vsel %vm535, %v509, 0
  %v714 = vsel %vm535, %v510, 0
  %v717 = vsel %vm535, %v511, 0
  %v720 = vsel %vm535, %v512, 0
  %v723 = vsel %vm535, %v513, 0
  %v726 = vsel %vm535, %v514, 0
  %v729 = vsel %vm535, %v515, 0
  %v732 = vsel %vm535, %v516, 0
  %v735 = vsel %vm535, %v517, 0
  %v738 = vsel %vm535, %v518, 0
  %v741 = vsel %vm535, %v519, 0
  %v744 = vsel %vm535, %v520, 0
  %v747 = vsel %vm535, %v521, 0
  %v750 = vsel %vm535, %v522, 0
  %752 = vmatprep.subr.bf16.mxu0 0
  %753 = vmatpush1.bf16.msra.mxu0 0
  %754 = vmatprep.subr.bf16.mxu0 0
  %755 = vmatpush1.bf16.msra.mxu0 0
  %756 = vmatprep.subr.bf16.mxu0 0
  %757 = vmatpush1.bf16.msra.mxu0 0
  %758 = vmatprep.subr.bf16.mxu0 0
  %759 = vmatpush1.bf16.msra.mxu0 0
  %760 = vmatprep.subr.bf16.mxu0 0
  %761 = vmatpush1.bf16.msra.mxu0 0
  %762 = vmatprep.subr.bf16.mxu0 0
  %763 = vmatpush1.bf16.msra.mxu0 0
  %764 = vmatprep.subr.bf16.mxu0 0
  %765 = vmatpush1.bf16.msra.mxu0 %v532
  %766 = vmatprep.subr.bf16.mxu0 0
  %767 = vmatpush1.bf16.msra.mxu0 %v531
  %768 = vmatprep.subr.bf16.mxu0 0
  %769 = vmatpush2.bf16.msra.mxu0 0
  %770 = vmatprep.subr.bf16.mxu0 0
  %771 = vmatpush2.bf16.msra.mxu0 0
  %772 = vmatprep.subr.bf16.mxu0 0
  %773 = vmatpush2.bf16.msra.mxu0 0
  %774 = vmatprep.subr.bf16.mxu0 0
  %775 = vmatpush2.bf16.msra.mxu0 0
  %776 = vmatprep.subr.bf16.mxu0 0
  %777 = vmatpush2.bf16.msra.mxu0 0
  %778 = vmatprep.subr.bf16.mxu0 0
  %779 = vmatpush2.bf16.msra.mxu0 0
  %780 = vmatprep.subr.bf16.mxu0 0
  %781 = vmatpush2.bf16.msra.mxu0 0
  %782 = vmatprep.subr.bf16.mxu0 0
  %783 = vmatpush2.bf16.msra.mxu0 0
  %784 = vmatprep.mubr.bf16.mxu0 0
  %785 = vmatmul.mubr.bf16.gmra.mxu0 %v537
  %v786 = vpop.f32.mrf.mxu0
  %v787 = vadd.f32 0.0, %v786
  %v788 = vpop.f32.mrf.mxu0
  %v789 = vpop.f32.mrf.mxu0
  %v790 = vadd.f32 0.0, %v789
  %v791 = vpop.f32.mrf.mxu0
  %792 = vmatprep.mubr.bf16.mxu0 0
  %793 = vmatmul.mubr.bf16.gmra.mxu0 %v540
  %v794 = vpop.f32.mrf.mxu0
  %v795 = vadd.f32 0.0, %v794
  %v796 = vpop.f32.mrf.mxu0
  %v797 = vpop.f32.mrf.mxu0
  %v798 = vadd.f32 0.0, %v797
  %v799 = vpop.f32.mrf.mxu0
  %800 = vmatprep.mubr.bf16.mxu0 0
  %801 = vmatmul.mubr.bf16.gmra.mxu0 %v543
  %v802 = vpop.f32.mrf.mxu0
  %v803 = vadd.f32 0.0, %v802
  %v804 = vpop.f32.mrf.mxu0
  %v805 = vpop.f32.mrf.mxu0
  %v806 = vadd.f32 0.0, %v805
  %v807 = vpop.f32.mrf.mxu0
  %808 = vmatprep.mubr.bf16.mxu0 0
  %809 = vmatmul.mubr.bf16.gmra.mxu0 %v546
  %v810 = vpop.f32.mrf.mxu0
  %v811 = vadd.f32 0.0, %v810
  %v812 = vpop.f32.mrf.mxu0
  %v813 = vpop.f32.mrf.mxu0
  %v814 = vadd.f32 0.0, %v813
  %v815 = vpop.f32.mrf.mxu0
  %816 = vmatprep.mubr.bf16.mxu0 0
  %817 = vmatmul.mubr.bf16.gmra.mxu0 %v549
  %v818 = vpop.f32.mrf.mxu0
  %v819 = vadd.f32 0.0, %v818
  %v820 = vpop.f32.mrf.mxu0
  %v821 = vpop.f32.mrf.mxu0
  %v822 = vadd.f32 0.0, %v821
  %v823 = vpop.f32.mrf.mxu0
  %824 = vmatprep.mubr.bf16.mxu0 0
  %825 = vmatmul.mubr.bf16.gmra.mxu0 %v552
  %v826 = vpop.f32.mrf.mxu0
  %v827 = vadd.f32 0.0, %v826
  %v828 = vpop.f32.mrf.mxu0
  %v829 = vpop.f32.mrf.mxu0
  %v830 = vadd.f32 0.0, %v829
  %v831 = vpop.f32.mrf.mxu0
  %832 = vmatprep.mubr.bf16.mxu0 0
  %833 = vmatmul.mubr.bf16.gmra.mxu0 %v555
  %v834 = vpop.f32.mrf.mxu0
  %v835 = vadd.f32 0.0, %v834
  %v836 = vpop.f32.mrf.mxu0
  %v837 = vpop.f32.mrf.mxu0
  %v838 = vadd.f32 0.0, %v837
  %v839 = vpop.f32.mrf.mxu0
  %840 = vmatprep.mubr.bf16.mxu0 0
  %841 = vmatmul.mubr.bf16.gmra.mxu0 %v558
  %v842 = vpop.f32.mrf.mxu0
  %v843 = vadd.f32 0.0, %v842
  %v844 = vpop.f32.mrf.mxu0
  %v845 = vpop.f32.mrf.mxu0
  %v846 = vadd.f32 0.0, %v845
  %v847 = vpop.f32.mrf.mxu0
  %848 = vmatprep.mubr.bf16.mxu0 0
  %849 = vmatmul.mubr.bf16.gmra.mxu0 %v561
  %v850 = vpop.f32.mrf.mxu0
  %v851 = vadd.f32 0.0, %v850
  %v852 = vpop.f32.mrf.mxu0
  %v853 = vpop.f32.mrf.mxu0
  %v854 = vadd.f32 0.0, %v853
  %v855 = vpop.f32.mrf.mxu0
  %856 = vmatprep.mubr.bf16.mxu0 0
  %857 = vmatmul.mubr.bf16.gmra.mxu0 %v564
  %v858 = vpop.f32.mrf.mxu0
  %v859 = vadd.f32 0.0, %v858
  %v860 = vpop.f32.mrf.mxu0
  %v861 = vpop.f32.mrf.mxu0
  %v862 = vadd.f32 0.0, %v861
  %v863 = vpop.f32.mrf.mxu0
  %864 = vmatprep.mubr.bf16.mxu0 0
  %865 = vmatmul.mubr.bf16.gmra.mxu0 %v567
  %v866 = vpop.f32.mrf.mxu0
  %v867 = vadd.f32 0.0, %v866
  %v868 = vpop.f32.mrf.mxu0
  %v869 = vpop.f32.mrf.mxu0
  %v870 = vadd.f32 0.0, %v869
  %v871 = vpop.f32.mrf.mxu0
  %872 = vmatprep.mubr.bf16.mxu0 0
  %873 = vmatmul.mubr.bf16.gmra.mxu0 %v570
  %v874 = vpop.f32.mrf.mxu0
  %v875 = vadd.f32 0.0, %v874
  %v876 = vpop.f32.mrf.mxu0
  %v877 = vpop.f32.mrf.mxu0
  %v878 = vadd.f32 0.0, %v877
  %v879 = vpop.f32.mrf.mxu0
  %880 = vmatprep.mubr.bf16.mxu0 0
  %881 = vmatmul.mubr.bf16.gmra.mxu0 %v573
  %v882 = vpop.f32.mrf.mxu0
  %v883 = vadd.f32 0.0, %v882
  %v884 = vpop.f32.mrf.mxu0
  %v885 = vpop.f32.mrf.mxu0
  %v886 = vadd.f32 0.0, %v885
  %v887 = vpop.f32.mrf.mxu0
  %888 = vmatprep.mubr.bf16.mxu0 0
  %889 = vmatmul.mubr.bf16.gmra.mxu0 %v576
  %v890 = vpop.f32.mrf.mxu0
  %v891 = vadd.f32 0.0, %v890
  %v892 = vpop.f32.mrf.mxu0
  %v893 = vpop.f32.mrf.mxu0
  %v894 = vadd.f32 0.0, %v893
  %v895 = vpop.f32.mrf.mxu0
  %896 = vmatprep.mubr.bf16.mxu0 0
  %897 = vmatmul.mubr.bf16.gmra.mxu0 %v579
  %v898 = vpop.f32.mrf.mxu0
  %v899 = vadd.f32 0.0, %v898
  %v900 = vpop.f32.mrf.mxu0
  %v901 = vpop.f32.mrf.mxu0
  %v902 = vadd.f32 0.0, %v901
  %v903 = vpop.f32.mrf.mxu0
  %904 = vmatprep.mubr.bf16.mxu0 0
  %905 = vmatmul.mubr.bf16.gmra.mxu0 %v582
  %v906 = vpop.f32.mrf.mxu0
  %v907 = vadd.f32 0.0, %v906
  %v908 = vpop.f32.mrf.mxu0
  %v909 = vpop.f32.mrf.mxu0
  %v910 = vadd.f32 0.0, %v909
  %v911 = vpop.f32.mrf.mxu0
  %912 = vmatprep.mubr.bf16.mxu0 0
  %913 = vmatmul.mubr.bf16.gmra.mxu0 %v585
  %v914 = vpop.f32.mrf.mxu0
  %v915 = vadd.f32 0.0, %v914
  %v916 = vpop.f32.mrf.mxu0
  %v917 = vpop.f32.mrf.mxu0
  %v918 = vadd.f32 0.0, %v917
  %v919 = vpop.f32.mrf.mxu0
  %920 = vmatprep.mubr.bf16.mxu0 0
  %921 = vmatmul.mubr.bf16.gmra.mxu0 %v588
  %v922 = vpop.f32.mrf.mxu0
  %v923 = vadd.f32 0.0, %v922
  %v924 = vpop.f32.mrf.mxu0
  %v925 = vpop.f32.mrf.mxu0
  %v926 = vadd.f32 0.0, %v925
  %v927 = vpop.f32.mrf.mxu0
  %928 = vmatprep.mubr.bf16.mxu0 0
  %929 = vmatmul.mubr.bf16.gmra.mxu0 %v591
  %v930 = vpop.f32.mrf.mxu0
  %v931 = vadd.f32 0.0, %v930
  %v932 = vpop.f32.mrf.mxu0
  %v933 = vpop.f32.mrf.mxu0
  %v934 = vadd.f32 0.0, %v933
  %v935 = vpop.f32.mrf.mxu0
  %936 = vmatprep.mubr.bf16.mxu0 0
  %937 = vmatmul.mubr.bf16.gmra.mxu0 %v594
  %v938 = vpop.f32.mrf.mxu0
  %v939 = vadd.f32 0.0, %v938
  %v940 = vpop.f32.mrf.mxu0
  %v941 = vpop.f32.mrf.mxu0
  %v942 = vadd.f32 0.0, %v941
  %v943 = vpop.f32.mrf.mxu0
  %944 = vmatprep.mubr.bf16.mxu0 0
  %945 = vmatmul.mubr.bf16.gmra.mxu0 %v597
  %v946 = vpop.f32.mrf.mxu0
  %v947 = vadd.f32 0.0, %v946
  %v948 = vpop.f32.mrf.mxu0
  %v949 = vpop.f32.mrf.mxu0
  %v950 = vadd.f32 0.0, %v949
  %v951 = vpop.f32.mrf.mxu0
  %952 = vmatprep.mubr.bf16.mxu0 0
  %953 = vmatmul.mubr.bf16.gmra.mxu0 %v600
  %v954 = vpop.f32.mrf.mxu0
  %v955 = vadd.f32 0.0, %v954
  %v956 = vpop.f32.mrf.mxu0
  %v957 = vpop.f32.mrf.mxu0
  %v958 = vadd.f32 0.0, %v957
  %v959 = vpop.f32.mrf.mxu0
  %960 = vmatprep.mubr.bf16.mxu0 0
  %961 = vmatmul.mubr.bf16.gmra.mxu0 %v603
  %v962 = vpop.f32.mrf.mxu0
  %v963 = vadd.f32 0.0, %v962
  %v964 = vpop.f32.mrf.mxu0
  %v965 = vpop.f32.mrf.mxu0
  %v966 = vadd.f32 0.0, %v965
  %v967 = vpop.f32.mrf.mxu0
  %968 = vmatprep.mubr.bf16.mxu0 0
  %969 = vmatmul.mubr.bf16.gmra.mxu0 %v606
  %v970 = vpop.f32.mrf.mxu0
  %v971 = vadd.f32 0.0, %v970
  %v972 = vpop.f32.mrf.mxu0
  %v973 = vpop.f32.mrf.mxu0
  %v974 = vadd.f32 0.0, %v973
  %v975 = vpop.f32.mrf.mxu0
  %976 = vmatprep.mubr.bf16.mxu0 0
  %977 = vmatmul.mubr.bf16.gmra.mxu0 %v609
  %v978 = vpop.f32.mrf.mxu0
  %v979 = vadd.f32 0.0, %v978
  %v980 = vpop.f32.mrf.mxu0
  %v981 = vpop.f32.mrf.mxu0
  %v982 = vadd.f32 0.0, %v981
  %v983 = vpop.f32.mrf.mxu0
  %984 = vmatprep.mubr.bf16.mxu0 0
  %985 = vmatmul.mubr.bf16.gmra.mxu0 %v612
  %v986 = vpop.f32.mrf.mxu0
  %v987 = vadd.f32 0.0, %v986
  %v988 = vpop.f32.mrf.mxu0
  %v989 = vpop.f32.mrf.mxu0
  %v990 = vadd.f32 0.0, %v989
  %v991 = vpop.f32.mrf.mxu0
  %992 = vmatprep.mubr.bf16.mxu0 0
  %993 = vmatmul.mubr.bf16.gmra.mxu0 %v615
  %v994 = vpop.f32.mrf.mxu0
  %v995 = vadd.f32 0.0, %v994
  %v996 = vpop.f32.mrf.mxu0
  %v997 = vpop.f32.mrf.mxu0
  %v998 = vadd.f32 0.0, %v997
  %v999 = vpop.f32.mrf.mxu0
  %1000 = vmatprep.mubr.bf16.mxu0 0
  %1001 = vmatmul.mubr.bf16.gmra.mxu0 %v618
  %v1002 = vpop.f32.mrf.mxu0
  %v1003 = vadd.f32 0.0, %v1002
  %v1004 = vpop.f32.mrf.mxu0
  %v1005 = vpop.f32.mrf.mxu0
  %v1006 = vadd.f32 0.0, %v1005
  %v1007 = vpop.f32.mrf.mxu0
  %1008 = vmatprep.mubr.bf16.mxu0 0
  %1009 = vmatmul.mubr.bf16.gmra.mxu0 %v621
  %v1010 = vpop.f32.mrf.mxu0
  %v1011 = vadd.f32 0.0, %v1010
  %v1012 = vpop.f32.mrf.mxu0
  %v1013 = vpop.f32.mrf.mxu0
  %v1014 = vadd.f32 0.0, %v1013
  %v1015 = vpop.f32.mrf.mxu0
  %1016 = vmatprep.mubr.bf16.mxu0 0
  %1017 = vmatmul.mubr.bf16.gmra.mxu0 %v624
  %v1018 = vpop.f32.mrf.mxu0
  %v1019 = vadd.f32 0.0, %v1018
  %v1020 = vpop.f32.mrf.mxu0
  %v1021 = vpop.f32.mrf.mxu0
  %v1022 = vadd.f32 0.0, %v1021
  %v1023 = vpop.f32.mrf.mxu0
  %1024 = vmatprep.mubr.bf16.mxu0 0
  %1025 = vmatmul.mubr.bf16.gmra.mxu0 %v627
  %v1026 = vpop.f32.mrf.mxu0
  %v1027 = vadd.f32 0.0, %v1026
  %v1028 = vpop.f32.mrf.mxu0
  %v1029 = vpop.f32.mrf.mxu0
  %v1030 = vadd.f32 0.0, %v1029
  %v1031 = vpop.f32.mrf.mxu0
  %1032 = vmatprep.mubr.bf16.mxu0 0
  %1033 = vmatmul.mubr.bf16.gmra.mxu0 %v630
  %v1034 = vpop.f32.mrf.mxu0
  %v1035 = vadd.f32 0.0, %v1034
  %v1036 = vpop.f32.mrf.mxu0
  %v1037 = vpop.f32.mrf.mxu0
  %v1038 = vadd.f32 0.0, %v1037
  %v1039 = vpop.f32.mrf.mxu0
  %1040 = vmatprep.mubr.bf16.mxu0 0
  %1041 = vmatmul.mubr.bf16.gmra.mxu0 %v633
  %v1042 = vpop.f32.mrf.mxu0
  %v1043 = vadd.f32 0.0, %v1042
  %v1044 = vpop.f32.mrf.mxu0
  %v1045 = vpop.f32.mrf.mxu0
  %v1046 = vadd.f32 0.0, %v1045
  %v1047 = vpop.f32.mrf.mxu0
  %1048 = vmatprep.mubr.bf16.mxu0 0
  %1049 = vmatmul.mubr.bf16.gmra.mxu0 %v636
  %v1050 = vpop.f32.mrf.mxu0
  %v1051 = vadd.f32 0.0, %v1050
  %v1052 = vpop.f32.mrf.mxu0
  %v1053 = vpop.f32.mrf.mxu0
  %v1054 = vadd.f32 0.0, %v1053
  %v1055 = vpop.f32.mrf.mxu0
  %1056 = vmatprep.mubr.bf16.mxu0 0
  %1057 = vmatmul.mubr.bf16.gmra.mxu0 %v639
  %v1058 = vpop.f32.mrf.mxu0
  %v1059 = vadd.f32 0.0, %v1058
  %v1060 = vpop.f32.mrf.mxu0
  %v1061 = vpop.f32.mrf.mxu0
  %v1062 = vadd.f32 0.0, %v1061
  %v1063 = vpop.f32.mrf.mxu0
  %1064 = vmatprep.mubr.bf16.mxu0 0
  %1065 = vmatmul.mubr.bf16.gmra.mxu0 %v642
  %v1066 = vpop.f32.mrf.mxu0
  %v1067 = vadd.f32 0.0, %v1066
  %v1068 = vpop.f32.mrf.mxu0
  %v1069 = vpop.f32.mrf.mxu0
  %v1070 = vadd.f32 0.0, %v1069
  %v1071 = vpop.f32.mrf.mxu0
  %1072 = vmatprep.mubr.bf16.mxu0 0
  %1073 = vmatmul.mubr.bf16.gmra.mxu0 %v645
  %v1074 = vpop.f32.mrf.mxu0
  %v1075 = vadd.f32 0.0, %v1074
  %v1076 = vpop.f32.mrf.mxu0
  %v1077 = vpop.f32.mrf.mxu0
  %v1078 = vadd.f32 0.0, %v1077
  %v1079 = vpop.f32.mrf.mxu0
  %1080 = vmatprep.mubr.bf16.mxu0 0
  %1081 = vmatmul.mubr.bf16.gmra.mxu0 %v648
  %v1082 = vpop.f32.mrf.mxu0
  %v1083 = vadd.f32 0.0, %v1082
  %v1084 = vpop.f32.mrf.mxu0
  %v1085 = vpop.f32.mrf.mxu0
  %v1086 = vadd.f32 0.0, %v1085
  %v1087 = vpop.f32.mrf.mxu0
  %1088 = vmatprep.mubr.bf16.mxu0 0
  %1089 = vmatmul.mubr.bf16.gmra.mxu0 %v651
  %v1090 = vpop.f32.mrf.mxu0
  %v1091 = vadd.f32 0.0, %v1090
  %v1092 = vpop.f32.mrf.mxu0
  %v1093 = vpop.f32.mrf.mxu0
  %v1094 = vadd.f32 0.0, %v1093
  %v1095 = vpop.f32.mrf.mxu0
  %1096 = vmatprep.mubr.bf16.mxu0 0
  %1097 = vmatmul.mubr.bf16.gmra.mxu0 %v654
  %v1098 = vpop.f32.mrf.mxu0
  %v1099 = vadd.f32 0.0, %v1098
  %v1100 = vpop.f32.mrf.mxu0
  %v1101 = vpop.f32.mrf.mxu0
  %v1102 = vadd.f32 0.0, %v1101
  %v1103 = vpop.f32.mrf.mxu0
  %1104 = vmatprep.mubr.bf16.mxu0 0
  %1105 = vmatmul.mubr.bf16.gmra.mxu0 %v657
  %v1106 = vpop.f32.mrf.mxu0
  %v1107 = vadd.f32 0.0, %v1106
  %v1108 = vpop.f32.mrf.mxu0
  %v1109 = vpop.f32.mrf.mxu0
  %v1110 = vadd.f32 0.0, %v1109
  %v1111 = vpop.f32.mrf.mxu0
  %1112 = vmatprep.mubr.bf16.mxu0 0
  %1113 = vmatmul.mubr.bf16.gmra.mxu0 %v660
  %v1114 = vpop.f32.mrf.mxu0
  %v1115 = vadd.f32 0.0, %v1114
  %v1116 = vpop.f32.mrf.mxu0
  %v1117 = vpop.f32.mrf.mxu0
  %v1118 = vadd.f32 0.0, %v1117
  %v1119 = vpop.f32.mrf.mxu0
  %1120 = vmatprep.mubr.bf16.mxu0 0
  %1121 = vmatmul.mubr.bf16.gmra.mxu0 %v663
  %v1122 = vpop.f32.mrf.mxu0
  %v1123 = vadd.f32 0.0, %v1122
  %v1124 = vpop.f32.mrf.mxu0
  %v1125 = vpop.f32.mrf.mxu0
  %v1126 = vadd.f32 0.0, %v1125
  %v1127 = vpop.f32.mrf.mxu0
  %1128 = vmatprep.mubr.bf16.mxu0 0
  %1129 = vmatmul.mubr.bf16.gmra.mxu0 %v666
  %v1130 = vpop.f32.mrf.mxu0
  %v1131 = vadd.f32 0.0, %v1130
  %v1132 = vpop.f32.mrf.mxu0
  %v1133 = vpop.f32.mrf.mxu0
  %v1134 = vadd.f32 0.0, %v1133
  %v1135 = vpop.f32.mrf.mxu0
  %1136 = vmatprep.mubr.bf16.mxu0 0
  %1137 = vmatmul.mubr.bf16.gmra.mxu0 %v669
  %v1138 = vpop.f32.mrf.mxu0
  %v1139 = vadd.f32 0.0, %v1138
  %v1140 = vpop.f32.mrf.mxu0
  %v1141 = vpop.f32.mrf.mxu0
  %v1142 = vadd.f32 0.0, %v1141
  %v1143 = vpop.f32.mrf.mxu0
  %1144 = vmatprep.mubr.bf16.mxu0 0
  %1145 = vmatmul.mubr.bf16.gmra.mxu0 %v672
  %v1146 = vpop.f32.mrf.mxu0
  %v1147 = vadd.f32 0.0, %v1146
  %v1148 = vpop.f32.mrf.mxu0
  %v1149 = vpop.f32.mrf.mxu0
  %v1150 = vadd.f32 0.0, %v1149
  %v1151 = vpop.f32.mrf.mxu0
  %1152 = vmatprep.mubr.bf16.mxu0 0
  %1153 = vmatmul.mubr.bf16.gmra.mxu0 %v675
  %v1154 = vpop.f32.mrf.mxu0
  %v1155 = vadd.f32 0.0, %v1154
  %v1156 = vpop.f32.mrf.mxu0
  %v1157 = vpop.f32.mrf.mxu0
  %v1158 = vadd.f32 0.0, %v1157
  %v1159 = vpop.f32.mrf.mxu0
  %1160 = vmatprep.mubr.bf16.mxu0 0
  %1161 = vmatmul.mubr.bf16.gmra.mxu0 %v678
  %v1162 = vpop.f32.mrf.mxu0
  %v1163 = vadd.f32 0.0, %v1162
  %v1164 = vpop.f32.mrf.mxu0
  %v1165 = vpop.f32.mrf.mxu0
  %v1166 = vadd.f32 0.0, %v1165
  %v1167 = vpop.f32.mrf.mxu0
  %1168 = vmatprep.mubr.bf16.mxu0 0
  %1169 = vmatmul.mubr.bf16.gmra.mxu0 %v681
  %v1170 = vpop.f32.mrf.mxu0
  %v1171 = vadd.f32 0.0, %v1170
  %v1172 = vpop.f32.mrf.mxu0
  %v1173 = vpop.f32.mrf.mxu0
  %v1174 = vadd.f32 0.0, %v1173
  %v1175 = vpop.f32.mrf.mxu0
  %1176 = vmatprep.mubr.bf16.mxu0 0
  %1177 = vmatmul.mubr.bf16.gmra.mxu0 %v684
  %v1178 = vpop.f32.mrf.mxu0
  %v1179 = vadd.f32 0.0, %v1178
  %v1180 = vpop.f32.mrf.mxu0
  %v1181 = vpop.f32.mrf.mxu0
  %v1182 = vadd.f32 0.0, %v1181
  %v1183 = vpop.f32.mrf.mxu0
  %1184 = vmatprep.mubr.bf16.mxu0 0
  %1185 = vmatmul.mubr.bf16.gmra.mxu0 %v687
  %v1186 = vpop.f32.mrf.mxu0
  %v1187 = vadd.f32 0.0, %v1186
  %v1188 = vpop.f32.mrf.mxu0
  %v1189 = vpop.f32.mrf.mxu0
  %v1190 = vadd.f32 0.0, %v1189
  %v1191 = vpop.f32.mrf.mxu0
  %1192 = vmatprep.mubr.bf16.mxu0 0
  %1193 = vmatmul.mubr.bf16.gmra.mxu0 %v690
  %v1194 = vpop.f32.mrf.mxu0
  %v1195 = vadd.f32 0.0, %v1194
  %v1196 = vpop.f32.mrf.mxu0
  %v1197 = vpop.f32.mrf.mxu0
  %v1198 = vadd.f32 0.0, %v1197
  %v1199 = vpop.f32.mrf.mxu0
  %1200 = vmatprep.mubr.bf16.mxu0 0
  %1201 = vmatmul.mubr.bf16.gmra.mxu0 %v693
  %v1202 = vpop.f32.mrf.mxu0
  %v1203 = vadd.f32 0.0, %v1202
  %v1204 = vpop.f32.mrf.mxu0
  %v1205 = vpop.f32.mrf.mxu0
  %v1206 = vadd.f32 0.0, %v1205
  %v1207 = vpop.f32.mrf.mxu0
  %1208 = vmatprep.mubr.bf16.mxu0 0
  %1209 = vmatmul.mubr.bf16.gmra.mxu0 %v696
  %v1210 = vpop.f32.mrf.mxu0
  %v1211 = vadd.f32 0.0, %v1210
  %v1212 = vpop.f32.mrf.mxu0
  %v1213 = vpop.f32.mrf.mxu0
  %v1214 = vadd.f32 0.0, %v1213
  %v1215 = vpop.f32.mrf.mxu0
  %1216 = vmatprep.mubr.bf16.mxu0 0
  %1217 = vmatmul.mubr.bf16.gmra.mxu0 %v699
  %v1218 = vpop.f32.mrf.mxu0
  %v1219 = vadd.f32 0.0, %v1218
  %v1220 = vpop.f32.mrf.mxu0
  %v1221 = vpop.f32.mrf.mxu0
  %v1222 = vadd.f32 0.0, %v1221
  %v1223 = vpop.f32.mrf.mxu0
  %1224 = vmatprep.mubr.bf16.mxu0 0
  %1225 = vmatmul.mubr.bf16.gmra.mxu0 %v702
  %v1226 = vpop.f32.mrf.mxu0
  %v1227 = vadd.f32 0.0, %v1226
  %v1228 = vpop.f32.mrf.mxu0
  %v1229 = vpop.f32.mrf.mxu0
  %v1230 = vadd.f32 0.0, %v1229
  %v1231 = vpop.f32.mrf.mxu0
  %1232 = vmatprep.mubr.bf16.mxu0 0
  %1233 = vmatmul.mubr.bf16.gmra.mxu0 %v705
  %v1234 = vpop.f32.mrf.mxu0
  %v1235 = vadd.f32 0.0, %v1234
  %v1236 = vpop.f32.mrf.mxu0
  %v1237 = vpop.f32.mrf.mxu0
  %v1238 = vadd.f32 0.0, %v1237
  %v1239 = vpop.f32.mrf.mxu0
  %1240 = vmatprep.mubr.bf16.mxu0 0
  %1241 = vmatmul.mubr.bf16.gmra.mxu0 %v708
  %v1242 = vpop.f32.mrf.mxu0
  %v1243 = vadd.f32 0.0, %v1242
  %v1244 = vpop.f32.mrf.mxu0
  %v1245 = vpop.f32.mrf.mxu0
  %v1246 = vadd.f32 0.0, %v1245
  %v1247 = vpop.f32.mrf.mxu0
  %1248 = vmatprep.mubr.bf16.mxu0 0
  %1249 = vmatmul.mubr.bf16.gmra.mxu0 %v711
  %v1250 = vpop.f32.mrf.mxu0
  %v1251 = vadd.f32 0.0, %v1250
  %v1252 = vpop.f32.mrf.mxu0
  %v1253 = vpop.f32.mrf.mxu0
  %v1254 = vadd.f32 0.0, %v1253
  %v1255 = vpop.f32.mrf.mxu0
  %1256 = vmatprep.mubr.bf16.mxu0 0
  %1257 = vmatmul.mubr.bf16.gmra.mxu0 %v714
  %v1258 = vpop.f32.mrf.mxu0
  %v1259 = vadd.f32 0.0, %v1258
  %v1260 = vpop.f32.mrf.mxu0
  %v1261 = vpop.f32.mrf.mxu0
  %v1262 = vadd.f32 0.0, %v1261
  %v1263 = vpop.f32.mrf.mxu0
  %1264 = vmatprep.mubr.bf16.mxu0 0
  %1265 = vmatmul.mubr.bf16.gmra.mxu0 %v717
  %v1266 = vpop.f32.mrf.mxu0
  %v1267 = vadd.f32 0.0, %v1266
  %v1268 = vpop.f32.mrf.mxu0
  %v1269 = vpop.f32.mrf.mxu0
  %v1270 = vadd.f32 0.0, %v1269
  %v1271 = vpop.f32.mrf.mxu0
  %1272 = vmatprep.mubr.bf16.mxu0 0
  %1273 = vmatmul.mubr.bf16.gmra.mxu0 %v720
  %v1274 = vpop.f32.mrf.mxu0
  %v1275 = vadd.f32 0.0, %v1274
  %v1276 = vpop.f32.mrf.mxu0
  %v1277 = vpop.f32.mrf.mxu0
  %v1278 = vadd.f32 0.0, %v1277
  %v1279 = vpop.f32.mrf.mxu0
  %1280 = vmatprep.mubr.bf16.mxu0 0
  %1281 = vmatmul.mubr.bf16.gmra.mxu0 %v723
  %v1282 = vpop.f32.mrf.mxu0
  %v1283 = vadd.f32 0.0, %v1282
  %v1284 = vpop.f32.mrf.mxu0
  %v1285 = vpop.f32.mrf.mxu0
  %v1286 = vadd.f32 0.0, %v1285
  %v1287 = vpop.f32.mrf.mxu0
  %1288 = vmatprep.mubr.bf16.mxu0 0
  %1289 = vmatmul.mubr.bf16.gmra.mxu0 %v726
  %v1290 = vpop.f32.mrf.mxu0
  %v1291 = vadd.f32 0.0, %v1290
  %v1292 = vpop.f32.mrf.mxu0
  %v1293 = vpop.f32.mrf.mxu0
  %v1294 = vadd.f32 0.0, %v1293
  %v1295 = vpop.f32.mrf.mxu0
  %1296 = vmatprep.mubr.bf16.mxu0 0
  %1297 = vmatmul.mubr.bf16.gmra.mxu0 %v729
  %v1298 = vpop.f32.mrf.mxu0
  %v1299 = vadd.f32 0.0, %v1298
  %v1300 = vpop.f32.mrf.mxu0
  %v1301 = vpop.f32.mrf.mxu0
  %v1302 = vadd.f32 0.0, %v1301
  %v1303 = vpop.f32.mrf.mxu0
  %1304 = vmatprep.mubr.bf16.mxu0 0
  %1305 = vmatmul.mubr.bf16.gmra.mxu0 %v732
  %v1306 = vpop.f32.mrf.mxu0
  %v1307 = vadd.f32 0.0, %v1306
  %v1308 = vpop.f32.mrf.mxu0
  %v1309 = vpop.f32.mrf.mxu0
  %v1310 = vadd.f32 0.0, %v1309
  %v1311 = vpop.f32.mrf.mxu0
  %1312 = vmatprep.mubr.bf16.mxu0 0
  %1313 = vmatmul.mubr.bf16.gmra.mxu0 %v735
  %v1314 = vpop.f32.mrf.mxu0
  %v1315 = vadd.f32 0.0, %v1314
  %v1316 = vpop.f32.mrf.mxu0
  %v1317 = vpop.f32.mrf.mxu0
  %v1318 = vadd.f32 0.0, %v1317
  %v1319 = vpop.f32.mrf.mxu0
  %1320 = vmatprep.mubr.bf16.mxu0 0
  %1321 = vmatmul.mubr.bf16.gmra.mxu0 %v738
  %v1322 = vpop.f32.mrf.mxu0
  %v1323 = vadd.f32 0.0, %v1322
  %v1324 = vpop.f32.mrf.mxu0
  %v1325 = vpop.f32.mrf.mxu0
  %v1326 = vadd.f32 0.0, %v1325
  %v1327 = vpop.f32.mrf.mxu0
  %1328 = vmatprep.mubr.bf16.mxu0 0
  %1329 = vmatmul.mubr.bf16.gmra.mxu0 %v741
  %v1330 = vpop.f32.mrf.mxu0
  %v1331 = vadd.f32 0.0, %v1330
  %v1332 = vpop.f32.mrf.mxu0
  %v1333 = vpop.f32.mrf.mxu0
  %v1334 = vadd.f32 0.0, %v1333
  %v1335 = vpop.f32.mrf.mxu0
  %1336 = vmatprep.mubr.bf16.mxu0 0
  %1337 = vmatmul.mubr.bf16.gmra.mxu0 %v744
  %v1338 = vpop.f32.mrf.mxu0
  %v1339 = vadd.f32 0.0, %v1338
  %v1340 = vpop.f32.mrf.mxu0
  %v1341 = vpop.f32.mrf.mxu0
  %v1342 = vadd.f32 0.0, %v1341
  %v1343 = vpop.f32.mrf.mxu0
  %1344 = vmatprep.mubr.bf16.mxu0 0
  %1345 = vmatmul.mubr.bf16.gmra.mxu0 %v747
  %v1346 = vpop.f32.mrf.mxu0
  %v1347 = vadd.f32 0.0, %v1346
  %v1348 = vpop.f32.mrf.mxu0
  %v1349 = vpop.f32.mrf.mxu0
  %v1350 = vadd.f32 0.0, %v1349
  %v1351 = vpop.f32.mrf.mxu0
  %1352 = vmatprep.mubr.bf16.mxu0 0
  %1353 = vmatmul.mubr.bf16.gmra.mxu0 %v750
  %v1354 = vpop.f32.mrf.mxu0
  %v1355 = vadd.f32 0.0, %v1354
  %v1356 = vpop.f32.mrf.mxu0
  %v1357 = vpop.f32.mrf.mxu0
  %v1358 = vadd.f32 0.0, %v1357
  %v1359 = vpop.f32.mrf.mxu0
  %1360 = vdwg.mxu0
  %v1361 = vmax.f32 %v787, %v931
  %v1362 = vmax.f32 %v790, %v934
  %v1363 = vmax.f32 %v795, %v939
  %v1364 = vmax.f32 %v798, %v942
  %v1365 = vmax.f32 %v803, %v947
  %v1366 = vmax.f32 %v806, %v950
  %v1367 = vmax.f32 %v811, %v955
  %v1368 = vmax.f32 %v814, %v958
  %v1369 = vmax.f32 %v819, %v963
  %v1370 = vmax.f32 %v822, %v966
  %v1371 = vmax.f32 %v827, %v971
  %v1372 = vmax.f32 %v830, %v974
  %v1373 = vmax.f32 %v835, %v979
  %v1374 = vmax.f32 %v838, %v982
  %v1375 = vmax.f32 %v843, %v987
  %v1376 = vmax.f32 %v846, %v990
  %v1377 = vmax.f32 %v851, %v995
  %v1378 = vmax.f32 %v854, %v998
  %v1379 = vmax.f32 %v859, %v1003
  %v1380 = vmax.f32 %v862, %v1006
  %v1381 = vmax.f32 %v867, %v1011
  %v1382 = vmax.f32 %v870, %v1014
  %v1383 = vmax.f32 %v875, %v1019
  %v1384 = vmax.f32 %v878, %v1022
  %v1385 = vmax.f32 %v883, %v1027
  %v1386 = vmax.f32 %v886, %v1030
  %v1387 = vmax.f32 %v891, %v1035
  %v1388 = vmax.f32 %v894, %v1038
  %v1389 = vmax.f32 %v899, %v1043
  %v1390 = vmax.f32 %v902, %v1046
  %v1391 = vmax.f32 %v907, %v1051
  %v1392 = vmax.f32 %v910, %v1054
  %v1393 = vmax.f32 %v915, %v1059
  %v1394 = vmax.f32 %v918, %v1062
  %v1395 = vmax.f32 %v923, %v1067
  %v1396 = vmax.f32 %v926, %v1070
  %v1397 = vmax.f32 %v1075, %v1219
  %v1398 = vmax.f32 %v1078, %v1222
  %v1399 = vmax.f32 %v1083, %v1227
  %v1400 = vmax.f32 %v1086, %v1230
  %v1401 = vmax.f32 %v1091, %v1235
  %v1402 = vmax.f32 %v1094, %v1238
  %v1403 = vmax.f32 %v1099, %v1243
  %v1404 = vmax.f32 %v1102, %v1246
  %v1405 = vmax.f32 %v1107, %v1251
  %v1406 = vmax.f32 %v1110, %v1254
  %v1407 = vmax.f32 %v1115, %v1259
  %v1408 = vmax.f32 %v1118, %v1262
  %v1409 = vmax.f32 %v1123, %v1267
  %v1410 = vmax.f32 %v1126, %v1270
  %v1411 = vmax.f32 %v1131, %v1275
  %v1412 = vmax.f32 %v1134, %v1278
  %v1413 = vmax.f32 %v1139, %v1283
  %v1414 = vmax.f32 %v1142, %v1286
  %v1415 = vmax.f32 %v1147, %v1291
  %v1416 = vmax.f32 %v1150, %v1294
  %v1417 = vmax.f32 %v1155, %v1299
  %v1418 = vmax.f32 %v1158, %v1302
  %v1419 = vmax.f32 %v1163, %v1307
  %v1420 = vmax.f32 %v1166, %v1310
  %v1421 = vmax.f32 %v1171, %v1315
  %v1422 = vmax.f32 %v1174, %v1318
  %v1423 = vmax.f32 %v1179, %v1323
  %v1424 = vmax.f32 %v1182, %v1326
  %v1425 = vmax.f32 %v1187, %v1331
  %v1426 = vmax.f32 %v1190, %v1334
  %v1427 = vmax.f32 %v1195, %v1339
  %v1428 = vmax.f32 %v1198, %v1342
  %v1429 = vmax.f32 %v1203, %v1347
  %v1430 = vmax.f32 %v1206, %v1350
  %v1431 = vmax.f32 %v1211, %v1355
  %v1432 = vmax.f32 %v1214, %v1358
  %v1433 = vmax.f32 %v1361, %v1397
  %v1434 = vmax.f32 %v1362, %v1398
  %v1435 = vmax.f32 %v1363, %v1399
  %v1436 = vmax.f32 %v1364, %v1400
  %v1437 = vmax.f32 %v1365, %v1401
  %v1438 = vmax.f32 %v1366, %v1402
  %v1439 = vmax.f32 %v1367, %v1403
  %v1440 = vmax.f32 %v1368, %v1404
  %v1441 = vmax.f32 %v1369, %v1405
  %v1442 = vmax.f32 %v1370, %v1406
  %v1443 = vmax.f32 %v1371, %v1407
  %v1444 = vmax.f32 %v1372, %v1408
  %v1445 = vmax.f32 %v1373, %v1409
  %v1446 = vmax.f32 %v1374, %v1410
  %v1447 = vmax.f32 %v1375, %v1411
  %v1448 = vmax.f32 %v1376, %v1412
  %v1449 = vmax.f32 %v1377, %v1413
  %v1450 = vmax.f32 %v1378, %v1414
  %v1451 = vmax.f32 %v1379, %v1415
  %v1452 = vmax.f32 %v1380, %v1416
  %v1453 = vmax.f32 %v1381, %v1417
  %v1454 = vmax.f32 %v1382, %v1418
  %v1455 = vmax.f32 %v1383, %v1419
  %v1456 = vmax.f32 %v1384, %v1420
  %v1457 = vmax.f32 %v1385, %v1421
  %v1458 = vmax.f32 %v1386, %v1422
  %v1459 = vmax.f32 %v1387, %v1423
  %v1460 = vmax.f32 %v1388, %v1424
  %v1461 = vmax.f32 %v1389, %v1425
  %v1462 = vmax.f32 %v1390, %v1426
  %v1463 = vmax.f32 %v1391, %v1427
  %v1464 = vmax.f32 %v1392, %v1428
  %v1465 = vmax.f32 %v1393, %v1429
  %v1466 = vmax.f32 %v1394, %v1430
  %v1467 = vmax.f32 %v1395, %v1431
  %v1468 = vmax.f32 %v1396, %v1432
  %v1469 = vld [vmem:[%s2] sm:$0x1]
  %v1471 = vlaneseq
  %v1472 = vshrl.u32 %v1471, 7
  %v1473 = vsub.s32 0, %v1472
  %v1474 = vrot.slane %v1469, %v1473
  %v1476 = vadd.f32 %v1433, %v1474
  %v1477 = vadd.f32 %v1434, %v1474
  %v1478 = vadd.f32 %v1435, %v1474
  %v1479 = vadd.f32 %v1436, %v1474
  %v1480 = vadd.f32 %v1437, %v1474
  %v1481 = vadd.f32 %v1438, %v1474
  %v1482 = vadd.f32 %v1439, %v1474
  %v1483 = vadd.f32 %v1440, %v1474
  %v1484 = vadd.f32 %v1441, %v1474
  %v1485 = vadd.f32 %v1442, %v1474
  %v1486 = vadd.f32 %v1443, %v1474
  %v1487 = vadd.f32 %v1444, %v1474
  %v1488 = vadd.f32 %v1445, %v1474
  %v1489 = vadd.f32 %v1446, %v1474
  %v1490 = vadd.f32 %v1447, %v1474
  %v1491 = vadd.f32 %v1448, %v1474
  %v1492 = vadd.f32 %v1449, %v1474
  %v1493 = vadd.f32 %v1450, %v1474
  %v1494 = vadd.f32 %v1451, %v1474
  %v1495 = vadd.f32 %v1452, %v1474
  %v1496 = vadd.f32 %v1453, %v1474
  %v1497 = vadd.f32 %v1454, %v1474
  %v1498 = vadd.f32 %v1455, %v1474
  %v1499 = vadd.f32 %v1456, %v1474
  %v1500 = vadd.f32 %v1457, %v1474
  %v1501 = vadd.f32 %v1458, %v1474
  %v1502 = vadd.f32 %v1459, %v1474
  %v1503 = vadd.f32 %v1460, %v1474
  %v1504 = vadd.f32 %v1461, %v1474
  %v1505 = vadd.f32 %v1462, %v1474
  %v1506 = vadd.f32 %v1463, %v1474
  %v1507 = vadd.f32 %v1464, %v1474
  %v1508 = vadd.f32 %v1465, %v1474
  %v1509 = vadd.f32 %v1466, %v1474
  %v1510 = vadd.f32 %v1467, %v1474
  %v1511 = vadd.f32 %v1468, %v1474
  %v1512 = vmax.f32 %v1476, 0.0
  %v1513 = vmax.f32 %v1477, 0.0
  %v1514 = vmax.f32 %v1478, 0.0
  %v1515 = vmax.f32 %v1479, 0.0
  %v1516 = vmax.f32 %v1480, 0.0
  %v1517 = vmax.f32 %v1481, 0.0
  %v1518 = vmax.f32 %v1482, 0.0
  %v1519 = vmax.f32 %v1483, 0.0
  %v1520 = vmax.f32 %v1484, 0.0
  %v1521 = vmax.f32 %v1485, 0.0
  %v1522 = vmax.f32 %v1486, 0.0
  %v1523 = vmax.f32 %v1487, 0.0
  %v1524 = vmax.f32 %v1488, 0.0
  %v1525 = vmax.f32 %v1489, 0.0
  %v1526 = vmax.f32 %v1490, 0.0
  %v1527 = vmax.f32 %v1491, 0.0
  %v1528 = vmax.f32 %v1492, 0.0
  %v1529 = vmax.f32 %v1493, 0.0
  %v1530 = vmax.f32 %v1494, 0.0
  %v1531 = vmax.f32 %v1495, 0.0
  %v1532 = vmax.f32 %v1496, 0.0
  %v1533 = vmax.f32 %v1497, 0.0
  %v1534 = vmax.f32 %v1498, 0.0
  %v1535 = vmax.f32 %v1499, 0.0
  %v1536 = vmax.f32 %v1500, 0.0
  %v1537 = vmax.f32 %v1501, 0.0
  %v1538 = vmax.f32 %v1502, 0.0
  %v1539 = vmax.f32 %v1503, 0.0
  %v1540 = vmax.f32 %v1504, 0.0
  %v1541 = vmax.f32 %v1505, 0.0
  %v1542 = vmax.f32 %v1506, 0.0
  %v1543 = vmax.f32 %v1507, 0.0
  %v1544 = vmax.f32 %v1508, 0.0
  %v1545 = vmax.f32 %v1509, 0.0
  %v1546 = vmax.f32 %v1510, 0.0
  %v1547 = vmax.f32 %v1511, 0.0
  %v1548 = vpack.c.bf16 %v1513, %v1512
  %v1549 = vpack.c.bf16 %v1515, %v1514
  %v1550 = vpack.c.bf16 %v1517, %v1516
  %v1551 = vpack.c.bf16 %v1519, %v1518
  %v1552 = vpack.c.bf16 %v1521, %v1520
  %v1553 = vpack.c.bf16 %v1523, %v1522
  %v1554 = vpack.c.bf16 %v1525, %v1524
  %v1555 = vpack.c.bf16 %v1527, %v1526
  %v1556 = vpack.c.bf16 %v1529, %v1528
  %v1557 = vpack.c.bf16 %v1531, %v1530
  %v1558 = vpack.c.bf16 %v1533, %v1532
  %v1559 = vpack.c.bf16 %v1535, %v1534
  %v1560 = vpack.c.bf16 %v1537, %v1536
  %v1561 = vpack.c.bf16 %v1539, %v1538
  %v1562 = vpack.c.bf16 %v1541, %v1540
  %v1563 = vpack.c.bf16 %v1543, %v1542
  %v1564 = vpack.c.bf16 %v1545, %v1544
  %v1565 = vpack.c.bf16 %v1547, %v1546
  %v1584 = vunpack.c.l.b16 %v1548
  %v1585 = vunpack.c.h.b16 %v1548
  %v1586 = vunpack.c.l.b16 %v1549
  %v1587 = vunpack.c.h.b16 %v1549
  %v1588 = vunpack.c.l.b16 %v1550
  %v1589 = vunpack.c.h.b16 %v1550
  %v1590 = vunpack.c.l.b16 %v1551
  %v1591 = vunpack.c.h.b16 %v1551
  %v1592 = vunpack.c.l.b16 %v1552
  %v1593 = vunpack.c.h.b16 %v1552
  %v1594 = vunpack.c.l.b16 %v1553
  %v1595 = vunpack.c.h.b16 %v1553
  %v1596 = vunpack.c.l.b16 %v1554
  %v1597 = vunpack.c.h.b16 %v1554
  %v1598 = vunpack.c.l.b16 %v1555
  %v1599 = vunpack.c.h.b16 %v1555
  %v1600 = vunpack.c.l.b16 %v1556
  %v1601 = vunpack.c.h.b16 %v1556
  %v1602 = vunpack.c.l.b16 %v1557
  %v1603 = vunpack.c.h.b16 %v1557
  %v1604 = vunpack.c.l.b16 %v1558
  %v1605 = vunpack.c.h.b16 %v1558
  %v1606 = vunpack.c.l.b16 %v1559
  %v1607 = vunpack.c.h.b16 %v1559
  %v1608 = vunpack.c.l.b16 %v1560
  %v1609 = vunpack.c.h.b16 %v1560
  %v1610 = vunpack.c.l.b16 %v1561
  %v1611 = vunpack.c.h.b16 %v1561
  %v1612 = vunpack.c.l.b16 %v1562
  %v1613 = vunpack.c.h.b16 %v1562
  %v1614 = vunpack.c.l.b16 %v1563
  %v1615 = vunpack.c.h.b16 %v1563
  %v1616 = vunpack.c.l.b16 %v1564
  %v1617 = vunpack.c.h.b16 %v1564
  %v1618 = vunpack.c.l.b16 %v1565
  %v1619 = vunpack.c.h.b16 %v1565
  %v1620 = vpack.c.b16 %v1584, %v1584
  %v1621 = vpack.c.b16 %v1585, %v1585
  %v1622 = vpack.c.b16 %v1586, %v1586
  %v1623 = vpack.c.b16 %v1587, %v1587
  %v1624 = vpack.c.b16 %v1588, %v1588
  %v1625 = vpack.c.b16 %v1589, %v1589
  %v1626 = vpack.c.b16 %v1590, %v1590
  %v1627 = vpack.c.b16 %v1591, %v1591
  %v1628 = vpack.c.b16 %v1592, %v1592
  %v1629 = vpack.c.b16 %v1593, %v1593
  %v1630 = vpack.c.b16 %v1594, %v1594
  %v1631 = vpack.c.b16 %v1595, %v1595
  %v1632 = vpack.c.b16 %v1596, %v1596
  %v1633 = vpack.c.b16 %v1597, %v1597
  %v1634 = vpack.c.b16 %v1598, %v1598
  %v1635 = vpack.c.b16 %v1599, %v1599
  %v1636 = vpack.c.b16 %v1600, %v1600
  %v1637 = vpack.c.b16 %v1601, %v1601
  %v1638 = vpack.c.b16 %v1602, %v1602
  %v1639 = vpack.c.b16 %v1603, %v1603
  %v1640 = vpack.c.b16 %v1604, %v1604
  %v1641 = vpack.c.b16 %v1605, %v1605
  %v1642 = vpack.c.b16 %v1606, %v1606
  %v1643 = vpack.c.b16 %v1607, %v1607
  %v1644 = vpack.c.b16 %v1608, %v1608
  %v1645 = vpack.c.b16 %v1609, %v1609
  %v1646 = vpack.c.b16 %v1610, %v1610
  %v1647 = vpack.c.b16 %v1611, %v1611
  %v1648 = vpack.c.b16 %v1612, %v1612
  %v1649 = vpack.c.b16 %v1613, %v1613
  %v1650 = vpack.c.b16 %v1614, %v1614
  %v1651 = vpack.c.b16 %v1615, %v1615
  %v1652 = vpack.c.b16 %v1616, %v1616
  %v1653 = vpack.c.b16 %v1617, %v1617
  %v1654 = vpack.c.b16 %v1618, %v1618
  %v1655 = vpack.c.b16 %v1619, %v1619
  %vm1692 = vcmask 257024
  %1693 = vst.msk [vmem:[%s3] sm:$0xf] %vm1692, %v1620
  %1694 = vst.msk [vmem:[%s3 + $0x4] sm:$0xf] %vm1692, %v1621
  %1695 = vst.msk [vmem:[%s3 + $0x8] sm:$0xf] %vm1692, %v1622
  %1696 = vst.msk [vmem:[%s3 + $0xc] sm:$0xf] %vm1692, %v1623
  %1697 = vst.msk [vmem:[%s3 + $0x10] sm:$0xf] %vm1692, %v1624
  %1698 = vst.msk [vmem:[%s3 + $0x14] sm:$0xf] %vm1692, %v1625
  %1699 = vst.msk [vmem:[%s3 + $0x18] sm:$0xf] %vm1692, %v1626
  %1700 = vst.msk [vmem:[%s3 + $0x1c] sm:$0xf] %vm1692, %v1627
  %1701 = vst.msk [vmem:[%s3 + $0x20] sm:$0xf] %vm1692, %v1628
  %1702 = vst.msk [vmem:[%s3 + $0x24] sm:$0xf] %vm1692, %v1629
  %1703 = vst.msk [vmem:[%s3 + $0x28] sm:$0xf] %vm1692, %v1630
  %1704 = vst.msk [vmem:[%s3 + $0x2c] sm:$0xf] %vm1692, %v1631
  %1705 = vst.msk [vmem:[%s3 + $0x30] sm:$0xf] %vm1692, %v1632
  %1706 = vst.msk [vmem:[%s3 + $0x34] sm:$0xf] %vm1692, %v1633
  %1707 = vst.msk [vmem:[%s3 + $0x38] sm:$0xf] %vm1692, %v1634
  %1708 = vst.msk [vmem:[%s3 + $0x3c] sm:$0xf] %vm1692, %v1635
  %1709 = vst.msk [vmem:[%s3 + $0x40] sm:$0xf] %vm1692, %v1636
  %1710 = vst.msk [vmem:[%s3 + $0x44] sm:$0xf] %vm1692, %v1637
  %1711 = vst.msk [vmem:[%s3 + $0x48] sm:$0xf] %vm1692, %v1638
  %1712 = vst.msk [vmem:[%s3 + $0x4c] sm:$0xf] %vm1692, %v1639
  %1713 = vst.msk [vmem:[%s3 + $0x50] sm:$0xf] %vm1692, %v1640
  %1714 = vst.msk [vmem:[%s3 + $0x54] sm:$0xf] %vm1692, %v1641
  %1715 = vst.msk [vmem:[%s3 + $0x58] sm:$0xf] %vm1692, %v1642
  %1716 = vst.msk [vmem:[%s3 + $0x5c] sm:$0xf] %vm1692, %v1643
  %1717 = vst.msk [vmem:[%s3 + $0x60] sm:$0xf] %vm1692, %v1644
  %1718 = vst.msk [vmem:[%s3 + $0x64] sm:$0xf] %vm1692, %v1645
  %1719 = vst.msk [vmem:[%s3 + $0x68] sm:$0xf] %vm1692, %v1646
  %1720 = vst.msk [vmem:[%s3 + $0x6c] sm:$0xf] %vm1692, %v1647
  %1721 = vst.msk [vmem:[%s3 + $0x70] sm:$0xf] %vm1692, %v1648
  %1722 = vst.msk [vmem:[%s3 + $0x74] sm:$0xf] %vm1692, %v1649
  %1723 = vst.msk [vmem:[%s3 + $0x78] sm:$0xf] %vm1692, %v1650
  %1724 = vst.msk [vmem:[%s3 + $0x7c] sm:$0xf] %vm1692, %v1651
  %1725 = vst.msk [vmem:[%s3 + $0x80] sm:$0xf] %vm1692, %v1652
  %1726 = vst.msk [vmem:[%s3 + $0x84] sm:$0xf] %vm1692, %v1653
  %1727 = vst.msk [vmem:[%s3 + $0x88] sm:$0xf] %vm1692, %v1654
  %1728 = vst.msk [vmem:[%s3 + $0x8c] sm:$0xf] %vm1692, %v1655
  // Predicated region
  $region14: #{net_forward.3} parent=0 // pred_check
    _
  $region15: #{net_forward.3} parent=0 // pred_check_branch
    %1730 = sbr.rel (0) target = $region17
  $region16: #{net_forward.3} parent=0 // pred_region
    _
  $region17: #{net_forward.3} parent=0 // pred_fallthru
    _
  // Predicated region
  $region18: #{net_forward.3} parent=0 // pred_check
    _
  $region19: #{net_forward.3} parent=0 // pred_check_branch
    %1732 = sbr.rel (0) target = $region21
  $region20: #{net_forward.3} parent=0 // pred_region
    _
  $region21: #{net_forward.3} parent=0 // pred_fallthru
    _

// kernel: net_forward.4
$region0: #{net_forward.4}
  #allocation0 [shape = 'u32[]', space=smem, size = 0x4, offset = 0x4, fixed_abs, tag = 'smem constant byte address 0x4 - core index']
  #allocation1 [shape = 'u32[144,128]{1,0:T(1,128)}', space=vmem, size = 0x12000, scoped, tag = 'internal scratch']
  %s0 = inlined_call_operand.vmem [shape: bf16[4,2,16,512], index: 0, kind: input, shape index: {}]
  %s1 = inlined_call_operand.vmem [shape: bf16[512,128], index: 1, kind: input, shape index: {}]
  %s2 = inlined_call_operand.vmem [shape: f32[1,128], index: 2, kind: input, shape index: {}]
  %s3 = inlined_call_operand.vmem [shape: bf16[2,16,128], index: 3, kind: output, shape index: {}]
  %s4 = sld [smem:[#allocation0]]
  $region22: #{net_forward.4} parent=0
    _
  %s6 = ssub.s32 1, %s4
  %s7 = scalar_select 0, %s6, %s4
  // Predicated region
  $region2: #{net_forward.4} parent=0 // pred_check
    _
  $region3: #{net_forward.4} parent=0 // pred_check_branch
    %9 = sbr.rel (0) target = $region5
  $region4: #{net_forward.4} parent=0 // pred_region
    _
  $region5: #{net_forward.4} parent=0 // pred_fallthru
    _
  // Predicated region
  $region6: #{net_forward.4} parent=0 // pred_check
    _
  $region7: #{net_forward.4} parent=0 // pred_check_branch
    %11 = sbr.rel (0) target = $region9
  $region8: #{net_forward.4} parent=0 // pred_region
    _
  $region9: #{net_forward.4} parent=0 // pred_fallthru
    _
  // Predicated region
  $region10: #{net_forward.4} parent=0 // pred_check
    _
  $region11: #{net_forward.4} parent=0 // pred_check_branch
    %13 = sbr.rel (0) target = $region13
  $region12: #{net_forward.4} parent=0 // pred_region
    _
  $region13: #{net_forward.4} parent=0 // pred_fallthru
    _
  %v15 = vld [vmem:[%s1] sm:$0xf]
  %v16 = vld [vmem:[%s1 + $0x4] sm:$0xf]
  %v17 = vld [vmem:[%s1 + $0x8] sm:$0xf]
  %v18 = vld [vmem:[%s1 + $0xc] sm:$0xf]
  %v19 = vld [vmem:[%s1 + $0x10] sm:$0xf]
  %v20 = vld [vmem:[%s1 + $0x14] sm:$0xf]
  %v21 = vld [vmem:[%s1 + $0x18] sm:$0xf]
  %v22 = vld [vmem:[%s1 + $0x1c] sm:$0xf]
  %v23 = vld [vmem:[%s1 + $0x20] sm:$0xf]
  %v24 = vld [vmem:[%s1 + $0x24] sm:$0xf]
  %v25 = vld [vmem:[%s1 + $0x28] sm:$0xf]
  %v26 = vld [vmem:[%s1 + $0x2c] sm:$0xf]
  %v27 = vld [vmem:[%s1 + $0x30] sm:$0xf]
  %v28 = vld [vmem:[%s1 + $0x34] sm:$0xf]
  %v29 = vld [vmem:[%s1 + $0x38] sm:$0xf]
  %v30 = vld [vmem:[%s1 + $0x3c] sm:$0xf]
  %v31 = vld [vmem:[%s1 + $0x40] sm:$0xf]
  %v32 = vld [vmem:[%s1 + $0x44] sm:$0xf]
  %v33 = vld [vmem:[%s1 + $0x48] sm:$0xf]
  %v34 = vld [vmem:[%s1 + $0x4c] sm:$0xf]
  %v35 = vld [vmem:[%s1 + $0x50] sm:$0xf]
  %v36 = vld [vmem:[%s1 + $0x54] sm:$0xf]
  %v37 = vld [vmem:[%s1 + $0x58] sm:$0xf]
  %v38 = vld [vmem:[%s1 + $0x5c] sm:$0xf]
  %v39 = vld [vmem:[%s1 + $0x60] sm:$0xf]
  %v40 = vld [vmem:[%s1 + $0x64] sm:$0xf]
  %v41 = vld [vmem:[%s1 + $0x68] sm:$0xf]
  %v42 = vld [vmem:[%s1 + $0x6c] sm:$0xf]
  %v43 = vld [vmem:[%s1 + $0x70] sm:$0xf]
  %v44 = vld [vmem:[%s1 + $0x74] sm:$0xf]
  %v45 = vld [vmem:[%s1 + $0x78] sm:$0xf]
  %v46 = vld [vmem:[%s1 + $0x7c] sm:$0xf]
  %v47 = vld [vmem:[%s1 + $0x80] sm:$0xf]
  %v48 = vld [vmem:[%s1 + $0x84] sm:$0xf]
  %v49 = vld [vmem:[%s1 + $0x88] sm:$0xf]
  %v50 = vld [vmem:[%s1 + $0x8c] sm:$0xf]
  %v51 = vld [vmem:[%s1 + $0x90] sm:$0xf]
  %v52 = vld [vmem:[%s1 + $0x94] sm:$0xf]
  %v53 = vld [vmem:[%s1 + $0x98] sm:$0xf]
  %v54 = vld [vmem:[%s1 + $0x9c] sm:$0xf]
  %v55 = vld [vmem:[%s1 + $0xa0] sm:$0xf]
  %v56 = vld [vmem:[%s1 + $0xa4] sm:$0xf]
  %v57 = vld [vmem:[%s1 + $0xa8] sm:$0xf]
  %v58 = vld [vmem:[%s1 + $0xac] sm:$0xf]
  %v59 = vld [vmem:[%s1 + $0xb0] sm:$0xf]
  %v60 = vld [vmem:[%s1 + $0xb4] sm:$0xf]
  %v61 = vld [vmem:[%s1 + $0xb8] sm:$0xf]
  %v62 = vld [vmem:[%s1 + $0xbc] sm:$0xf]
  %v63 = vld [vmem:[%s1 + $0xc0] sm:$0xf]
  %v64 = vld [vmem:[%s1 + $0xc4] sm:$0xf]
  %v65 = vld [vmem:[%s1 + $0xc8] sm:$0xf]
  %v66 = vld [vmem:[%s1 + $0xcc] sm:$0xf]
  %v67 = vld [vmem:[%s1 + $0xd0] sm:$0xf]
  %v68 = vld [vmem:[%s1 + $0xd4] sm:$0xf]
  %v69 = vld [vmem:[%s1 + $0xd8] sm:$0xf]
  %v70 = vld [vmem:[%s1 + $0xdc] sm:$0xf]
  %v71 = vld [vmem:[%s1 + $0xe0] sm:$0xf]
  %v72 = vld [vmem:[%s1 + $0xe4] sm:$0xf]
  %v73 = vld [vmem:[%s1 + $0xe8] sm:$0xf]
  %v74 = vld [vmem:[%s1 + $0xec] sm:$0xf]
  %v75 = vld [vmem:[%s1 + $0xf0] sm:$0xf]
  %v76 = vld [vmem:[%s1 + $0xf4] sm:$0xf]
  %v77 = vld [vmem:[%s1 + $0xf8] sm:$0xf]
  %v78 = vld [vmem:[%s1 + $0xfc] sm:$0xf]
  %v79 = vld [vmem:[%s0] sm:$0xff]
  %v80 = vld [vmem:[%s0 + $0x8] sm:$0xff]
  %v81 = vld [vmem:[%s0 + $0x10] sm:$0xff]
  %v82 = vld [vmem:[%s0 + $0x18] sm:$0xff]
  %v83 = vld [vmem:[%s0 + $0x20] sm:$0xff]
  %v84 = vld [vmem:[%s0 + $0x28] sm:$0xff]
  %v85 = vld [vmem:[%s0 + $0x30] sm:$0xff]
  %v86 = vld [vmem:[%s0 + $0x38] sm:$0xff]
  %v87 = vld [vmem:[%s0 + $0x40] sm:$0xff]
  %v88 = vld [vmem:[%s0 + $0x48] sm:$0xff]
  %v89 = vld [vmem:[%s0 + $0x50] sm:$0xff]
  %v90 = vld [vmem:[%s0 + $0x58] sm:$0xff]
  %v91 = vld [vmem:[%s0 + $0x60] sm:$0xff]
  %v92 = vld [vmem:[%s0 + $0x68] sm:$0xff]
  %v93 = vld [vmem:[%s0 + $0x70] sm:$0xff]
  %v94 = vld [vmem:[%s0 + $0x78] sm:$0xff]
  %v95 = vld [vmem:[%s0 + $0x80] sm:$0xff]
  %v96 = vld [vmem:[%s0 + $0x88] sm:$0xff]
  %v97 = vld [vmem:[%s0 + $0x90] sm:$0xff]
  %v98 = vld [vmem:[%s0 + $0x98] sm:$0xff]
  %v99 = vld [vmem:[%s0 + $0xa0] sm:$0xff]
  %v100 = vld [vmem:[%s0 + $0xa8] sm:$0xff]
  %v101 = vld [vmem:[%s0 + $0xb0] sm:$0xff]
  %v102 = vld [vmem:[%s0 + $0xb8] sm:$0xff]
  %v103 = vld [vmem:[%s0 + $0xc0] sm:$0xff]
  %v104 = vld [vmem:[%s0 + $0xc8] sm:$0xff]
  %v105 = vld [vmem:[%s0 + $0xd0] sm:$0xff]
  %v106 = vld [vmem:[%s0 + $0xd8] sm:$0xff]
  %v107 = vld [vmem:[%s0 + $0xe0] sm:$0xff]
  %v108 = vld [vmem:[%s0 + $0xe8] sm:$0xff]
  %v109 = vld [vmem:[%s0 + $0xf0] sm:$0xff]
  %v110 = vld [vmem:[%s0 + $0xf8] sm:$0xff]
  %v143 = vunpack.c.l.b16 %v79
  %v144 = vunpack.c.h.b16 %v79
  %v145 = vunpack.c.l.b16 %v80
  %v146 = vunpack.c.h.b16 %v80
  %v147 = vunpack.c.l.b16 %v81
  %v148 = vunpack.c.h.b16 %v81
  %v149 = vunpack.c.l.b16 %v82
  %v150 = vunpack.c.h.b16 %v82
  %v151 = vunpack.c.l.b16 %v83
  %v152 = vunpack.c.h.b16 %v83
  %v153 = vunpack.c.l.b16 %v84
  %v154 = vunpack.c.h.b16 %v84
  %v155 = vunpack.c.l.b16 %v85
  %v156 = vunpack.c.h.b16 %v85
  %v157 = vunpack.c.l.b16 %v86
  %v158 = vunpack.c.h.b16 %v86
  %v159 = vunpack.c.l.b16 %v87
  %v160 = vunpack.c.h.b16 %v87
  %v161 = vunpack.c.l.b16 %v88
  %v162 = vunpack.c.h.b16 %v88
  %v163 = vunpack.c.l.b16 %v89
  %v164 = vunpack.c.h.b16 %v89
  %v165 = vunpack.c.l.b16 %v90
  %v166 = vunpack.c.h.b16 %v90
  %v167 = vunpack.c.l.b16 %v91
  %v168 = vunpack.c.h.b16 %v91
  %v169 = vunpack.c.l.b16 %v92
  %v170 = vunpack.c.h.b16 %v92
  %v171 = vunpack.c.l.b16 %v93
  %v172 = vunpack.c.h.b16 %v93
  %v173 = vunpack.c.l.b16 %v94
  %v174 = vunpack.c.h.b16 %v94
  %v175 = vunpack.c.l.b16 %v95
  %v176 = vunpack.c.h.b16 %v95
  %v177 = vunpack.c.l.b16 %v96
  %v178 = vunpack.c.h.b16 %v96
  %v179 = vunpack.c.l.b16 %v97
  %v180 = vunpack.c.h.b16 %v97
  %v181 = vunpack.c.l.b16 %v98
  %v182 = vunpack.c.h.b16 %v98
  %v183 = vunpack.c.l.b16 %v99
  %v184 = vunpack.c.h.b16 %v99
  %v185 = vunpack.c.l.b16 %v100
  %v186 = vunpack.c.h.b16 %v100
  %v187 = vunpack.c.l.b16 %v101
  %v188 = vunpack.c.h.b16 %v101
  %v189 = vunpack.c.l.b16 %v102
  %v190 = vunpack.c.h.b16 %v102
  %v191 = vunpack.c.l.b16 %v103
  %v192 = vunpack.c.h.b16 %v103
  %v193 = vunpack.c.l.b16 %v104
  %v194 = vunpack.c.h.b16 %v104
  %v195 = vunpack.c.l.b16 %v105
  %v196 = vunpack.c.h.b16 %v105
  %v197 = vunpack.c.l.b16 %v106
  %v198 = vunpack.c.h.b16 %v106
  %v199 = vunpack.c.l.b16 %v107
  %v200 = vunpack.c.h.b16 %v107
  %v201 = vunpack.c.l.b16 %v108
  %v202 = vunpack.c.h.b16 %v108
  %v203 = vunpack.c.l.b16 %v109
  %v204 = vunpack.c.h.b16 %v109
  %v205 = vunpack.c.l.b16 %v110
  %v206 = vunpack.c.h.b16 %v110
  %v207 = vpack.c.b16 %v147, %v143
  %v208 = vpack.c.b16 %v148, %v144
  %v209 = vpack.c.b16 %v149, %v145
  %v210 = vpack.c.b16 %v150, %v146
  %v211 = vpack.c.b16 %v155, %v151
  %v212 = vpack.c.b16 %v156, %v152
  %v213 = vpack.c.b16 %v157, %v153
  %v214 = vpack.c.b16 %v158, %v154
  %v215 = vpack.c.b16 %v163, %v159
  %v216 = vpack.c.b16 %v164, %v160
  %v217 = vpack.c.b16 %v165, %v161
  %v218 = vpack.c.b16 %v166, %v162
  %v219 = vpack.c.b16 %v171, %v167
  %v220 = vpack.c.b16 %v172, %v168
  %v221 = vpack.c.b16 %v173, %v169
  %v222 = vpack.c.b16 %v174, %v170
  %v223 = vpack.c.b16 %v179, %v175
  %v224 = vpack.c.b16 %v180, %v176
  %v225 = vpack.c.b16 %v181, %v177
  %v226 = vpack.c.b16 %v182, %v178
  %v227 = vpack.c.b16 %v187, %v183
  %v228 = vpack.c.b16 %v188, %v184
  %v229 = vpack.c.b16 %v189, %v185
  %v230 = vpack.c.b16 %v190, %v186
  %v231 = vpack.c.b16 %v195, %v191
  %v232 = vpack.c.b16 %v196, %v192
  %v233 = vpack.c.b16 %v197, %v193
  %v234 = vpack.c.b16 %v198, %v194
  %v235 = vpack.c.b16 %v203, %v199
  %v236 = vpack.c.b16 %v204, %v200
  %v237 = vpack.c.b16 %v205, %v201
  %v238 = vpack.c.b16 %v206, %v202
  %v335 = vunpack.c.l.b16 %v15
  %v336 = vunpack.c.l.b16 %v16
  %v337 = vunpack.c.l.b16 %v17
  %v338 = vunpack.c.l.b16 %v18
  %v339 = vunpack.c.l.b16 %v19
  %v340 = vunpack.c.l.b16 %v20
  %v341 = vunpack.c.l.b16 %v21
  %v342 = vunpack.c.l.b16 %v22
  %v343 = vunpack.c.l.b16 %v23
  %v344 = vunpack.c.l.b16 %v24
  %v345 = vunpack.c.l.b16 %v25
  %v346 = vunpack.c.l.b16 %v26
  %v347 = vunpack.c.l.b16 %v27
  %v348 = vunpack.c.l.b16 %v28
  %v349 = vunpack.c.l.b16 %v29
  %v350 = vunpack.c.l.b16 %v30
  %v351 = vunpack.c.l.b16 %v31
  %v352 = vunpack.c.l.b16 %v32
  %v353 = vunpack.c.l.b16 %v33
  %v354 = vunpack.c.l.b16 %v34
  %v355 = vunpack.c.l.b16 %v35
  %v356 = vunpack.c.l.b16 %v36
  %v357 = vunpack.c.l.b16 %v37
  %v358 = vunpack.c.l.b16 %v38
  %v359 = vunpack.c.l.b16 %v39
  %v360 = vunpack.c.l.b16 %v40
  %v361 = vunpack.c.l.b16 %v41
  %v362 = vunpack.c.l.b16 %v42
  %v363 = vunpack.c.l.b16 %v43
  %v364 = vunpack.c.l.b16 %v44
  %v365 = vunpack.c.l.b16 %v45
  %v366 = vunpack.c.l.b16 %v46
  %v367 = vunpack.c.l.b16 %v47
  %v368 = vunpack.c.l.b16 %v48
  %v369 = vunpack.c.l.b16 %v49
  %v370 = vunpack.c.l.b16 %v50
  %v371 = vunpack.c.l.b16 %v51
  %v372 = vunpack.c.l.b16 %v52
  %v373 = vunpack.c.l.b16 %v53
  %v374 = vunpack.c.l.b16 %v54
  %v375 = vunpack.c.l.b16 %v55
  %v376 = vunpack.c.l.b16 %v56
  %v377 = vunpack.c.l.b16 %v57
  %v378 = vunpack.c.l.b16 %v58
  %v379 = vunpack.c.l.b16 %v59
  %v380 = vunpack.c.l.b16 %v60
  %v381 = vunpack.c.l.b16 %v61
  %v382 = vunpack.c.l.b16 %v62
  %v383 = vunpack.c.l.b16 %v63
  %v384 = vunpack.c.l.b16 %v64
  %v385 = vunpack.c.l.b16 %v65
  %v386 = vunpack.c.l.b16 %v66
  %v387 = vunpack.c.l.b16 %v67
  %v388 = vunpack.c.l.b16 %v68
  %v389 = vunpack.c.l.b16 %v69
  %v390 = vunpack.c.l.b16 %v70
  %v391 = vunpack.c.l.b16 %v71
  %v392 = vunpack.c.l.b16 %v72
  %v393 = vunpack.c.l.b16 %v73
  %v394 = vunpack.c.l.b16 %v74
  %v395 = vunpack.c.l.b16 %v75
  %v396 = vunpack.c.l.b16 %v76
  %v397 = vunpack.c.l.b16 %v77
  %v398 = vunpack.c.l.b16 %v78
  %v399 = vpack.c.b16 %v336, %v335
  %v400 = vpack.c.b16 %v338, %v337
  %v401 = vpack.c.b16 %v340, %v339
  %v402 = vpack.c.b16 %v342, %v341
  %v403 = vpack.c.b16 %v344, %v343
  %v404 = vpack.c.b16 %v346, %v345
  %v405 = vpack.c.b16 %v348, %v347
  %v406 = vpack.c.b16 %v350, %v349
  %v407 = vpack.c.b16 %v352, %v351
  %v408 = vpack.c.b16 %v354, %v353
  %v409 = vpack.c.b16 %v356, %v355
  %v410 = vpack.c.b16 %v358, %v357
  %v411 = vpack.c.b16 %v360, %v359
  %v412 = vpack.c.b16 %v362, %v361
  %v413 = vpack.c.b16 %v364, %v363
  %v414 = vpack.c.b16 %v366, %v365
  %v415 = vpack.c.b16 %v368, %v367
  %v416 = vpack.c.b16 %v370, %v369
  %v417 = vpack.c.b16 %v372, %v371
  %v418 = vpack.c.b16 %v374, %v373
  %v419 = vpack.c.b16 %v376, %v375
  %v420 = vpack.c.b16 %v378, %v377
  %v421 = vpack.c.b16 %v380, %v379
  %v422 = vpack.c.b16 %v382, %v381
  %v423 = vpack.c.b16 %v384, %v383
  %v424 = vpack.c.b16 %v386, %v385
  %v425 = vpack.c.b16 %v388, %v387
  %v426 = vpack.c.b16 %v390, %v389
  %v427 = vpack.c.b16 %v392, %v391
  %v428 = vpack.c.b16 %v394, %v393
  %v429 = vpack.c.b16 %v396, %v395
  %v430 = vpack.c.b16 %v398, %v397
  %463 = vmatprep.subr.bf16.mxu0 0
  %464 = vmatpush1.bf16.msra.mxu0 %v406
  %465 = vmatprep.subr.bf16.mxu0 0
  %466 = vmatpush1.bf16.msra.mxu0 %v405
  %467 = vmatprep.subr.bf16.mxu0 0
  %468 = vmatpush1.bf16.msra.mxu0 %v404
  %469 = vmatprep.subr.bf16.mxu0 0
  %470 = vmatpush1.bf16.msra.mxu0 %v403
  %471 = vmatprep.subr.bf16.mxu0 0
  %472 = vmatpush1.bf16.msra.mxu0 %v402
  %473 = vmatprep.subr.bf16.mxu0 0
  %474 = vmatpush1.bf16.msra.mxu0 %v401
  %475 = vmatprep.subr.bf16.mxu0 0
  %476 = vmatpush1.bf16.msra.mxu0 %v400
  %477 = vmatprep.subr.bf16.mxu0 0
  %478 = vmatpush1.bf16.msra.mxu0 %v399
  %479 = vmatprep.subr.bf16.mxu0 0
  %480 = vmatpush2.bf16.msra.mxu0 %v414
  %481 = vmatprep.subr.bf16.mxu0 0
  %482 = vmatpush2.bf16.msra.mxu0 %v413
  %483 = vmatprep.subr.bf16.mxu0 0
  %484 = vmatpush2.bf16.msra.mxu0 %v412
  %485 = vmatprep.subr.bf16.mxu0 0
  %486 = vmatpush2.bf16.msra.mxu0 %v411
  %487 = vmatprep.subr.bf16.mxu0 0
  %488 = vmatpush2.bf16.msra.mxu0 %v410
  %489 = vmatprep.subr.bf16.mxu0 0
  %490 = vmatpush2.bf16.msra.mxu0 %v409
  %491 = vmatprep.subr.bf16.mxu0 0
  %492 = vmatpush2.bf16.msra.mxu0 %v408
  %493 = vmatprep.subr.bf16.mxu0 0
  %494 = vmatpush2.bf16.msra.mxu0 %v407
  %495 = vmatprep.mubr.bf16.mxu0 %v208
  %496 = vmatmul.mubr.bf16.gmra.mxu0 %v207
  %v497 = vpop.f32.mrf.mxu0
  %v498 = vadd.f32 0.0, %v497
  %v499 = vpop.f32.mrf.mxu0
  %v500 = vpop.f32.mrf.mxu0
  %v501 = vadd.f32 0.0, %v500
  %v502 = vpop.f32.mrf.mxu0
  %503 = vmatprep.mubr.bf16.mxu0 %v212
  %504 = vmatmul.mubr.bf16.gmra.mxu0 %v211
  %v505 = vpop.f32.mrf.mxu0
  %v506 = vadd.f32 0.0, %v505
  %v507 = vpop.f32.mrf.mxu0
  %v508 = vpop.f32.mrf.mxu0
  %v509 = vadd.f32 0.0, %v508
  %v510 = vpop.f32.mrf.mxu0
  %511 = vmatprep.mubr.bf16.mxu0 %v216
  %512 = vmatmul.mubr.bf16.gmra.mxu0 %v215
  %v513 = vpop.f32.mrf.mxu0
  %v514 = vadd.f32 0.0, %v513
  %v515 = vpop.f32.mrf.mxu0
  %v516 = vpop.f32.mrf.mxu0
  %v517 = vadd.f32 0.0, %v516
  %v518 = vpop.f32.mrf.mxu0
  %519 = vmatprep.mubr.bf16.mxu0 %v220
  %520 = vmatmul.mubr.bf16.gmra.mxu0 %v219
  %v521 = vpop.f32.mrf.mxu0
  %v522 = vadd.f32 0.0, %v521
  %v523 = vpop.f32.mrf.mxu0
  %v524 = vpop.f32.mrf.mxu0
  %v525 = vadd.f32 0.0, %v524
  %v526 = vpop.f32.mrf.mxu0
  %527 = vmatprep.mubr.bf16.mxu0 %v224
  %528 = vmatmul.mubr.bf16.gmra.mxu0 %v223
  %v529 = vpop.f32.mrf.mxu0
  %v530 = vadd.f32 0.0, %v529
  %v531 = vpop.f32.mrf.mxu0
  %v532 = vpop.f32.mrf.mxu0
  %v533 = vadd.f32 0.0, %v532
  %v534 = vpop.f32.mrf.mxu0
  %535 = vmatprep.mubr.bf16.mxu0 %v228
  %536 = vmatmul.mubr.bf16.gmra.mxu0 %v227
  %v537 = vpop.f32.mrf.mxu0
  %v538 = vadd.f32 0.0, %v537
  %v539 = vpop.f32.mrf.mxu0
  %v540 = vpop.f32.mrf.mxu0
  %v541 = vadd.f32 0.0, %v540
  %v542 = vpop.f32.mrf.mxu0
  %543 = vmatprep.mubr.bf16.mxu0 %v232
  %544 = vmatmul.mubr.bf16.gmra.mxu0 %v231
  %v545 = vpop.f32.mrf.mxu0
  %v546 = vadd.f32 0.0, %v545
  %v547 = vpop.f32.mrf.mxu0
  %v548 = vpop.f32.mrf.mxu0
  %v549 = vadd.f32 0.0, %v548
  %v550 = vpop.f32.mrf.mxu0
  %551 = vmatprep.mubr.bf16.mxu0 %v236
  %552 = vmatmul.mubr.bf16.gmra.mxu0 %v235
  %v553 = vpop.f32.mrf.mxu0
  %v554 = vadd.f32 0.0, %v553
  %v555 = vpop.f32.mrf.mxu0
  %v556 = vpop.f32.mrf.mxu0
  %v557 = vadd.f32 0.0, %v556
  %v558 = vpop.f32.mrf.mxu0
  %559 = vdwg.mxu0
  %560 = vmatprep.subr.bf16.mxu0 0
  %561 = vmatpush1.bf16.msra.mxu0 %v422
  %562 = vmatprep.subr.bf16.mxu0 0
  %563 = vmatpush1.bf16.msra.mxu0 %v421
  %564 = vmatprep.subr.bf16.mxu0 0
  %565 = vmatpush1.bf16.msra.mxu0 %v420
  %566 = vmatprep.subr.bf16.mxu0 0
  %567 = vmatpush1.bf16.msra.mxu0 %v419
  %568 = vmatprep.subr.bf16.mxu0 0
  %569 = vmatpush1.bf16.msra.mxu0 %v418
  %570 = vmatprep.subr.bf16.mxu0 0
  %571 = vmatpush1.bf16.msra.mxu0 %v417
  %572 = vmatprep.subr.bf16.mxu0 0
  %573 = vmatpush1.bf16.msra.mxu0 %v416
  %574 = vmatprep.subr.bf16.mxu0 0
  %575 = vmatpush1.bf16.msra.mxu0 %v415
  %576 = vmatprep.subr.bf16.mxu0 0
  %577 = vmatpush2.bf16.msra.mxu0 %v430
  %578 = vmatprep.subr.bf16.mxu0 0
  %579 = vmatpush2.bf16.msra.mxu0 %v429
  %580 = vmatprep.subr.bf16.mxu0 0
  %581 = vmatpush2.bf16.msra.mxu0 %v428
  %582 = vmatprep.subr.bf16.mxu0 0
  %583 = vmatpush2.bf16.msra.mxu0 %v427
  %584 = vmatprep.subr.bf16.mxu0 0
  %585 = vmatpush2.bf16.msra.mxu0 %v426
  %586 = vmatprep.subr.bf16.mxu0 0
  %587 = vmatpush2.bf16.msra.mxu0 %v425
  %588 = vmatprep.subr.bf16.mxu0 0
  %589 = vmatpush2.bf16.msra.mxu0 %v424
  %590 = vmatprep.subr.bf16.mxu0 0
  %591 = vmatpush2.bf16.msra.mxu0 %v423
  %592 = vmatprep.mubr.bf16.mxu0 %v210
  %593 = vmatmul.mubr.bf16.gmra.mxu0 %v209
  %v594 = vpop.f32.mrf.mxu0
  %v595 = vadd.f32 %v498, %v594
  %v596 = vpop.f32.mrf.mxu0
  %v597 = vpop.f32.mrf.mxu0
  %v598 = vadd.f32 %v501, %v597
  %v599 = vpop.f32.mrf.mxu0
  %600 = vmatprep.mubr.bf16.mxu0 %v214
  %601 = vmatmul.mubr.bf16.gmra.mxu0 %v213
  %v602 = vpop.f32.mrf.mxu0
  %v603 = vadd.f32 %v506, %v602
  %v604 = vpop.f32.mrf.mxu0
  %v605 = vpop.f32.mrf.mxu0
  %v606 = vadd.f32 %v509, %v605
  %v607 = vpop.f32.mrf.mxu0
  %608 = vmatprep.mubr.bf16.mxu0 %v218
  %609 = vmatmul.mubr.bf16.gmra.mxu0 %v217
  %v610 = vpop.f32.mrf.mxu0
  %v611 = vadd.f32 %v514, %v610
  %v612 = vpop.f32.mrf.mxu0
  %v613 = vpop.f32.mrf.mxu0
  %v614 = vadd.f32 %v517, %v613
  %v615 = vpop.f32.mrf.mxu0
  %616 = vmatprep.mubr.bf16.mxu0 %v222
  %617 = vmatmul.mubr.bf16.gmra.mxu0 %v221
  %v618 = vpop.f32.mrf.mxu0
  %v619 = vadd.f32 %v522, %v618
  %v620 = vpop.f32.mrf.mxu0
  %v621 = vpop.f32.mrf.mxu0
  %v622 = vadd.f32 %v525, %v621
  %v623 = vpop.f32.mrf.mxu0
  %624 = vmatprep.mubr.bf16.mxu0 %v226
  %625 = vmatmul.mubr.bf16.gmra.mxu0 %v225
  %v626 = vpop.f32.mrf.mxu0
  %v627 = vadd.f32 %v530, %v626
  %v628 = vpop.f32.mrf.mxu0
  %v629 = vpop.f32.mrf.mxu0
  %v630 = vadd.f32 %v533, %v629
  %v631 = vpop.f32.mrf.mxu0
  %632 = vmatprep.mubr.bf16.mxu0 %v230
  %633 = vmatmul.mubr.bf16.gmra.mxu0 %v229
  %v634 = vpop.f32.mrf.mxu0
  %v635 = vadd.f32 %v538, %v634
  %v636 = vpop.f32.mrf.mxu0
  %v637 = vpop.f32.mrf.mxu0
  %v638 = vadd.f32 %v541, %v637
  %v639 = vpop.f32.mrf.mxu0
  %640 = vmatprep.mubr.bf16.mxu0 %v234
  %641 = vmatmul.mubr.bf16.gmra.mxu0 %v233
  %v642 = vpop.f32.mrf.mxu0
  %v643 = vadd.f32 %v546, %v642
  %v644 = vpop.f32.mrf.mxu0
  %v645 = vpop.f32.mrf.mxu0
  %v646 = vadd.f32 %v549, %v645
  %v647 = vpop.f32.mrf.mxu0
  %648 = vmatprep.mubr.bf16.mxu0 %v238
  %649 = vmatmul.mubr.bf16.gmra.mxu0 %v237
  %v650 = vpop.f32.mrf.mxu0
  %v651 = vadd.f32 %v554, %v650
  %v652 = vpop.f32.mrf.mxu0
  %v653 = vpop.f32.mrf.mxu0
  %v654 = vadd.f32 %v557, %v653
  %v655 = vpop.f32.mrf.mxu0
  %656 = vdwg.mxu0
  %v657 = vmax.f32 %v595, %v611
  %v658 = vmax.f32 %v598, %v614
  %v659 = vmax.f32 %v603, %v619
  %v660 = vmax.f32 %v606, %v622
  %v661 = vmax.f32 %v627, %v643
  %v662 = vmax.f32 %v630, %v646
  %v663 = vmax.f32 %v635, %v651
  %v664 = vmax.f32 %v638, %v654
  %v665 = vmax.f32 %v657, %v661
  %v666 = vmax.f32 %v658, %v662
  %v667 = vmax.f32 %v659, %v663
  %v668 = vmax.f32 %v660, %v664
  %v669 = vld [vmem:[%s2] sm:$0x1]
  %v671 = vlaneseq
  %v672 = vshrl.u32 %v671, 7
  %v673 = vsub.s32 0, %v672
  %v674 = vrot.slane %v669, %v673
  %v676 = vadd.f32 %v665, %v674
  %v677 = vadd.f32 %v666, %v674
  %v678 = vadd.f32 %v667, %v674
  %v679 = vadd.f32 %v668, %v674
  %v680 = vmax.f32 %v676, 0.0
  %v681 = vmax.f32 %v677, 0.0
  %v682 = vmax.f32 %v678, 0.0
  %v683 = vmax.f32 %v679, 0.0
  %v684 = vpack.c.bf16 %v681, %v680
  %v685 = vpack.c.bf16 %v683, %v682
  %v688 = vunpack.c.l.b16 %v684
  %v689 = vunpack.c.h.b16 %v684
  %v690 = vunpack.c.l.b16 %v685
  %v691 = vunpack.c.h.b16 %v685
  %v692 = vpack.c.b16 %v688, %v688
  %v693 = vpack.c.b16 %v689, %v689
  %v694 = vpack.c.b16 %v690, %v690
  %v695 = vpack.c.b16 %v691, %v691
  %700 = vst [vmem:[%s3] sm:$0xf] %v692
  %701 = vst [vmem:[%s3 + $0x4] sm:$0xf] %v693
  %702 = vst [vmem:[%s3 + $0x8] sm:$0xf] %v694
  %703 = vst [vmem:[%s3 + $0xc] sm:$0xf] %v695
  // Predicated region
  $region14: #{net_forward.4} parent=0 // pred_check
    _
  $region15: #{net_forward.4} parent=0 // pred_check_branch
    %705 = sbr.rel (0) target = $region17
  $region16: #{net_forward.4} parent=0 // pred_region
    _
  $region17: #{net_forward.4} parent=0 // pred_fallthru
    _
  // Predicated region
  $region18: #{net_forward.4} parent=0 // pred_check
    _
  $region19: #{net_forward.4} parent=0 // pred_check_branch
    %707 = sbr.rel (0) target = $region21
  $region20: #{net_forward.4} parent=0 // pred_region
    _
  $region21: #{net_forward.4} parent=0 // pred_fallthru
    _

// kernel: net_forward.5
$region0: #{net_forward.5}
  #allocation0 [shape = 'u32[]', space=smem, size = 0x4, offset = 0x4, fixed_abs, tag = 'smem constant byte address 0x4 - core index']
  #allocation1 [shape = 'u32[144,128]{1,0:T(1,128)}', space=vmem, size = 0x12000, scoped, tag = 'internal scratch']
  %s0 = inlined_call_operand.vmem [shape: bf16[8,896], index: 0, kind: input, shape index: {}]
  %s1 = inlined_call_operand.vmem [shape: bf16[896,512], index: 1, kind: input, shape index: {}]
  %s2 = inlined_call_operand.vmem [shape: f32[1,512], index: 2, kind: input, shape index: {}]
  %s3 = inlined_call_operand.vmem [shape: bf16[512,128], index: 3, kind: input, shape index: {}]
  %s4 = inlined_call_operand.vmem [shape: f32[1,128], index: 4, kind: input, shape index: {}]
  %s5 = inlined_call_operand.vmem [shape: f32[8,128], index: 5, kind: output, shape index: {}]
  %s6 = sld [smem:[#allocation0]]
  $region30: #{net_forward.5} parent=0
    _
  %s8 = ssub.s32 1, %s6
  %s9 = scalar_select 0, %s8, %s6
  // Predicated region
  $region2: #{net_forward.5} parent=0 // pred_check
    _
  $region3: #{net_forward.5} parent=0 // pred_check_branch
    %11 = sbr.rel (0) target = $region5
  $region4: #{net_forward.5} parent=0 // pred_region
    _
  $region5: #{net_forward.5} parent=0 // pred_fallthru
    _
  // Predicated region
  $region6: #{net_forward.5} parent=0 // pred_check
    _
  $region7: #{net_forward.5} parent=0 // pred_check_branch
    %13 = sbr.rel (0) target = $region9
  $region8: #{net_forward.5} parent=0 // pred_region
    _
  $region9: #{net_forward.5} parent=0 // pred_fallthru
    _
  // Predicated region
  $region10: #{net_forward.5} parent=0 // pred_check
    _
  $region11: #{net_forward.5} parent=0 // pred_check_branch
    %15 = sbr.rel (0) target = $region13
  $region12: #{net_forward.5} parent=0 // pred_region
    _
  $region13: #{net_forward.5} parent=0 // pred_fallthru
    _
  // Predicated region
  $region14: #{net_forward.5} parent=0 // pred_check
    _
  $region15: #{net_forward.5} parent=0 // pred_check_branch
    %17 = sbr.rel (0) target = $region17
  $region16: #{net_forward.5} parent=0 // pred_region
    _
  $region17: #{net_forward.5} parent=0 // pred_fallthru
    _
  // Predicated region
  $region18: #{net_forward.5} parent=0 // pred_check
    _
  $region19: #{net_forward.5} parent=0 // pred_check_branch
    %19 = sbr.rel (0) target = $region21
  $region20: #{net_forward.5} parent=0 // pred_region
    _
  $region21: #{net_forward.5} parent=0 // pred_fallthru
    _
  %v21 = vld [vmem:[%s0] sm:$0xff]
  %v22 = vld [vmem:[%s0 + $0x8] sm:$0xff]
  %v23 = vld [vmem:[%s0 + $0x10] sm:$0xff]
  %v24 = vld [vmem:[%s0 + $0x18] sm:$0xf]
  %v25 = vld [vmem:[%s1] sm:$0xff]
  %v26 = vld [vmem:[%s1 + $0x8] sm:$0xff]
  %v27 = vld [vmem:[%s1 + $0x10] sm:$0xff]
  %v28 = vld [vmem:[%s1 + $0x18] sm:$0xff]
  %v29 = vld [vmem:[%s1 + $0x20] sm:$0xff]
  %v30 = vld [vmem:[%s1 + $0x28] sm:$0xff]
  %v31 = vld [vmem:[%s1 + $0x30] sm:$0xff]
  %v32 = vld [vmem:[%s1 + $0x38] sm:$0xff]
  %v33 = vld [vmem:[%s1 + $0x40] sm:$0xff]
  %v34 = vld [vmem:[%s1 + $0x48] sm:$0xff]
  %v35 = vld [vmem:[%s1 + $0x50] sm:$0xff]
  %v36 = vld [vmem:[%s1 + $0x58] sm:$0xff]
  %v37 = vld [vmem:[%s1 + $0x60] sm:$0xff]
  %v38 = vld [vmem:[%s1 + $0x68] sm:$0xff]
  %v39 = vld [vmem:[%s1 + $0x70] sm:$0xff]
  %v40 = vld [vmem:[%s1 + $0x78] sm:$0xff]
  %v41 = vld [vmem:[%s1 + $0x80] sm:$0xff]
  %v42 = vld [vmem:[%s1 + $0x88] sm:$0xff]
  %v43 = vld [vmem:[%s1 + $0x90] sm:$0xff]
  %v44 = vld [vmem:[%s1 + $0x98] sm:$0xff]
  %v45 = vld [vmem:[%s1 + $0xa0] sm:$0xff]
  %v46 = vld [vmem:[%s1 + $0xa8] sm:$0xff]
  %v47 = vld [vmem:[%s1 + $0xb0] sm:$0xff]
  %v48 = vld [vmem:[%s1 + $0xb8] sm:$0xff]
  %v49 = vld [vmem:[%s1 + $0xc0] sm:$0xff]
  %v50 = vld [vmem:[%s1 + $0xc8] sm:$0xff]
  %v51 = vld [vmem:[%s1 + $0xd0] sm:$0xff]
  %v52 = vld [vmem:[%s1 + $0xd8] sm:$0xff]
  %v53 = vld [vmem:[%s1 + $0xe0] sm:$0xff]
  %v54 = vld [vmem:[%s1 + $0xe8] sm:$0xff]
  %v55 = vld [vmem:[%s1 + $0xf0] sm:$0xff]
  %v56 = vld [vmem:[%s1 + $0xf8] sm:$0xff]
  %v57 = vld [vmem:[%s1 + $0x100] sm:$0xff]
  %v58 = vld [vmem:[%s1 + $0x108] sm:$0xff]
  %v59 = vld [vmem:[%s1 + $0x110] sm:$0xff]
  %v60 = vld [vmem:[%s1 + $0x118] sm:$0xff]
  %v61 = vld [vmem:[%s1 + $0x120] sm:$0xff]
  %v62 = vld [vmem:[%s1 + $0x128] sm:$0xff]
  %v63 = vld [vmem:[%s1 + $0x130] sm:$0xff]
  %v64 = vld [vmem:[%s1 + $0x138] sm:$0xff]
  %v65 = vld [vmem:[%s1 + $0x140] sm:$0xff]
  %v66 = vld [vmem:[%s1 + $0x148] sm:$0xff]
  %v67 = vld [vmem:[%s1 + $0x150] sm:$0xff]
  %v68 = vld [vmem:[%s1 + $0x158] sm:$0xff]
  %v69 = vld [vmem:[%s1 + $0x160] sm:$0xff]
  %v70 = vld [vmem:[%s1 + $0x168] sm:$0xff]
  %v71 = vld [vmem:[%s1 + $0x170] sm:$0xff]
  %v72 = vld [vmem:[%s1 + $0x178] sm:$0xff]
  %v73 = vld [vmem:[%s1 + $0x180] sm:$0xff]
  %v74 = vld [vmem:[%s1 + $0x188] sm:$0xff]
  %v75 = vld [vmem:[%s1 + $0x190] sm:$0xff]
  %v76 = vld [vmem:[%s1 + $0x198] sm:$0xff]
  %v77 = vld [vmem:[%s1 + $0x1a0] sm:$0xff]
  %v78 = vld [vmem:[%s1 + $0x1a8] sm:$0xff]
  %v79 = vld [vmem:[%s1 + $0x1b0] sm:$0xff]
  %v80 = vld [vmem:[%s1 + $0x1b8] sm:$0xff]
  %v81 = vld [vmem:[%s1 + $0x1c0] sm:$0xff]
  %v82 = vld [vmem:[%s1 + $0x1c8] sm:$0xff]
  %v83 = vld [vmem:[%s1 + $0x1d0] sm:$0xff]
  %v84 = vld [vmem:[%s1 + $0x1d8] sm:$0xff]
  %v85 = vld [vmem:[%s1 + $0x1e0] sm:$0xff]
  %v86 = vld [vmem:[%s1 + $0x1e8] sm:$0xff]
  %v87 = vld [vmem:[%s1 + $0x1f0] sm:$0xff]
  %v88 = vld [vmem:[%s1 + $0x1f8] sm:$0xff]
  %v89 = vld [vmem:[%s1 + $0x200] sm:$0xff]
  %v90 = vld [vmem:[%s1 + $0x208] sm:$0xff]
  %v91 = vld [vmem:[%s1 + $0x210] sm:$0xff]
  %v92 = vld [vmem:[%s1 + $0x218] sm:$0xff]
  %v93 = vld [vmem:[%s1 + $0x220] sm:$0xff]
  %v94 = vld [vmem:[%s1 + $0x228] sm:$0xff]
  %v95 = vld [vmem:[%s1 + $0x230] sm:$0xff]
  %v96 = vld [vmem:[%s1 + $0x238] sm:$0xff]
  %v97 = vld [vmem:[%s1 + $0x240] sm:$0xff]
  %v98 = vld [vmem:[%s1 + $0x248] sm:$0xff]
  %v99 = vld [vmem:[%s1 + $0x250] sm:$0xff]
  %v100 = vld [vmem:[%s1 + $0x258] sm:$0xff]
  %v101 = vld [vmem:[%s1 + $0x260] sm:$0xff]
  %v102 = vld [vmem:[%s1 + $0x268] sm:$0xff]
  %v103 = vld [vmem:[%s1 + $0x270] sm:$0xff]
  %v104 = vld [vmem:[%s1 + $0x278] sm:$0xff]
  %v105 = vld [vmem:[%s1 + $0x280] sm:$0xff]
  %v106 = vld [vmem:[%s1 + $0x288] sm:$0xff]
  %v107 = vld [vmem:[%s1 + $0x290] sm:$0xff]
  %v108 = vld [vmem:[%s1 + $0x298] sm:$0xff]
  %v109 = vld [vmem:[%s1 + $0x2a0] sm:$0xff]
  %v110 = vld [vmem:[%s1 + $0x2a8] sm:$0xff]
  %v111 = vld [vmem:[%s1 + $0x2b0] sm:$0xff]
  %v112 = vld [vmem:[%s1 + $0x2b8] sm:$0xff]
  %v113 = vld [vmem:[%s1 + $0x2c0] sm:$0xff]
  %v114 = vld [vmem:[%s1 + $0x2c8] sm:$0xff]
  %v115 = vld [vmem:[%s1 + $0x2d0] sm:$0xff]
  %v116 = vld [vmem:[%s1 + $0x2d8] sm:$0xff]
  %v117 = vld [vmem:[%s1 + $0x2e0] sm:$0xff]
  %v118 = vld [vmem:[%s1 + $0x2e8] sm:$0xff]
  %v119 = vld [vmem:[%s1 + $0x2f0] sm:$0xff]
  %v120 = vld [vmem:[%s1 + $0x2f8] sm:$0xff]
  %v121 = vld [vmem:[%s1 + $0x300] sm:$0xff]
  %v122 = vld [vmem:[%s1 + $0x308] sm:$0xff]
  %v123 = vld [vmem:[%s1 + $0x310] sm:$0xff]
  %v124 = vld [vmem:[%s1 + $0x318] sm:$0xff]
  %v125 = vld [vmem:[%s1 + $0x320] sm:$0xff]
  %v126 = vld [vmem:[%s1 + $0x328] sm:$0xff]
  %v127 = vld [vmem:[%s1 + $0x330] sm:$0xff]
  %v128 = vld [vmem:[%s1 + $0x338] sm:$0xff]
  %v129 = vld [vmem:[%s1 + $0x340] sm:$0xff]
  %v130 = vld [vmem:[%s1 + $0x348] sm:$0xff]
  %v131 = vld [vmem:[%s1 + $0x350] sm:$0xff]
  %v132 = vld [vmem:[%s1 + $0x358] sm:$0xff]
  %v133 = vld [vmem:[%s1 + $0x360] sm:$0xff]
  %v134 = vld [vmem:[%s1 + $0x368] sm:$0xff]
  %v135 = vld [vmem:[%s1 + $0x370] sm:$0xff]
  %v136 = vld [vmem:[%s1 + $0x378] sm:$0xff]
  %v137 = vld [vmem:[%s1 + $0x380] sm:$0xff]
  %v138 = vld [vmem:[%s1 + $0x388] sm:$0xff]
  %v139 = vld [vmem:[%s1 + $0x390] sm:$0xff]
  %v140 = vld [vmem:[%s1 + $0x398] sm:$0xff]
  %v141 = vld [vmem:[%s1 + $0x3a0] sm:$0xff]
  %v142 = vld [vmem:[%s1 + $0x3a8] sm:$0xff]
  %v143 = vld [vmem:[%s1 + $0x3b0] sm:$0xff]
  %v144 = vld [vmem:[%s1 + $0x3b8] sm:$0xff]
  %v145 = vld [vmem:[%s1 + $0x3c0] sm:$0xff]
  %v146 = vld [vmem:[%s1 + $0x3c8] sm:$0xff]
  %v147 = vld [vmem:[%s1 + $0x3d0] sm:$0xff]
  %v148 = vld [vmem:[%s1 + $0x3d8] sm:$0xff]
  %v149 = vld [vmem:[%s1 + $0x3e0] sm:$0xff]
  %v150 = vld [vmem:[%s1 + $0x3e8] sm:$0xff]
  %v151 = vld [vmem:[%s1 + $0x3f0] sm:$0xff]
  %v152 = vld [vmem:[%s1 + $0x3f8] sm:$0xff]
  %v153 = vld [vmem:[%s1 + $0x400] sm:$0xff]
  %v154 = vld [vmem:[%s1 + $0x408] sm:$0xff]
  %v155 = vld [vmem:[%s1 + $0x410] sm:$0xff]
  %v156 = vld [vmem:[%s1 + $0x418] sm:$0xff]
  %v157 = vld [vmem:[%s1 + $0x420] sm:$0xff]
  %v158 = vld [vmem:[%s1 + $0x428] sm:$0xff]
  %v159 = vld [vmem:[%s1 + $0x430] sm:$0xff]
  %v160 = vld [vmem:[%s1 + $0x438] sm:$0xff]
  %v161 = vld [vmem:[%s1 + $0x440] sm:$0xff]
  %v162 = vld [vmem:[%s1 + $0x448] sm:$0xff]
  %v163 = vld [vmem:[%s1 + $0x450] sm:$0xff]
  %v164 = vld [vmem:[%s1 + $0x458] sm:$0xff]
  %v165 = vld [vmem:[%s1 + $0x460] sm:$0xff]
  %v166 = vld [vmem:[%s1 + $0x468] sm:$0xff]
  %v167 = vld [vmem:[%s1 + $0x470] sm:$0xff]
  %v168 = vld [vmem:[%s1 + $0x478] sm:$0xff]
  %v169 = vld [vmem:[%s1 + $0x480] sm:$0xff]
  %v170 = vld [vmem:[%s1 + $0x488] sm:$0xff]
  %v171 = vld [vmem:[%s1 + $0x490] sm:$0xff]
  %v172 = vld [vmem:[%s1 + $0x498] sm:$0xff]
  %v173 = vld [vmem:[%s1 + $0x4a0] sm:$0xff]
  %v174 = vld [vmem:[%s1 + $0x4a8] sm:$0xff]
  %v175 = vld [vmem:[%s1 + $0x4b0] sm:$0xff]
  %v176 = vld [vmem:[%s1 + $0x4b8] sm:$0xff]
  %v177 = vld [vmem:[%s1 + $0x4c0] sm:$0xff]
  %v178 = vld [vmem:[%s1 + $0x4c8] sm:$0xff]
  %v179 = vld [vmem:[%s1 + $0x4d0] sm:$0xff]
  %v180 = vld [vmem:[%s1 + $0x4d8] sm:$0xff]
  %v181 = vld [vmem:[%s1 + $0x4e0] sm:$0xff]
  %v182 = vld [vmem:[%s1 + $0x4e8] sm:$0xff]
  %v183 = vld [vmem:[%s1 + $0x4f0] sm:$0xff]
  %v184 = vld [vmem:[%s1 + $0x4f8] sm:$0xff]
  %v185 = vld [vmem:[%s1 + $0x500] sm:$0xff]
  %v186 = vld [vmem:[%s1 + $0x508] sm:$0xff]
  %v187 = vld [vmem:[%s1 + $0x510] sm:$0xff]
  %v188 = vld [vmem:[%s1 + $0x518] sm:$0xff]
  %v189 = vld [vmem:[%s1 + $0x520] sm:$0xff]
  %v190 = vld [vmem:[%s1 + $0x528] sm:$0xff]
  %v191 = vld [vmem:[%s1 + $0x530] sm:$0xff]
  %v192 = vld [vmem:[%s1 + $0x538] sm:$0xff]
  %v193 = vld [vmem:[%s1 + $0x540] sm:$0xff]
  %v194 = vld [vmem:[%s1 + $0x548] sm:$0xff]
  %v195 = vld [vmem:[%s1 + $0x550] sm:$0xff]
  %v196 = vld [vmem:[%s1 + $0x558] sm:$0xff]
  %v197 = vld [vmem:[%s1 + $0x560] sm:$0xff]
  %v198 = vld [vmem:[%s1 + $0x568] sm:$0xff]
  %v199 = vld [vmem:[%s1 + $0x570] sm:$0xff]
  %v200 = vld [vmem:[%s1 + $0x578] sm:$0xff]
  %v201 = vld [vmem:[%s1 + $0x580] sm:$0xff]
  %v202 = vld [vmem:[%s1 + $0x588] sm:$0xff]
  %v203 = vld [vmem:[%s1 + $0x590] sm:$0xff]
  %v204 = vld [vmem:[%s1 + $0x598] sm:$0xff]
  %v205 = vld [vmem:[%s1 + $0x5a0] sm:$0xff]
  %v206 = vld [vmem:[%s1 + $0x5a8] sm:$0xff]
  %v207 = vld [vmem:[%s1 + $0x5b0] sm:$0xff]
  %v208 = vld [vmem:[%s1 + $0x5b8] sm:$0xff]
  %v209 = vld [vmem:[%s1 + $0x5c0] sm:$0xff]
  %v210 = vld [vmem:[%s1 + $0x5c8] sm:$0xff]
  %v211 = vld [vmem:[%s1 + $0x5d0] sm:$0xff]
  %v212 = vld [vmem:[%s1 + $0x5d8] sm:$0xff]
  %v213 = vld [vmem:[%s1 + $0x5e0] sm:$0xff]
  %v214 = vld [vmem:[%s1 + $0x5e8] sm:$0xff]
  %v215 = vld [vmem:[%s1 + $0x5f0] sm:$0xff]
  %v216 = vld [vmem:[%s1 + $0x5f8] sm:$0xff]
  %v217 = vld [vmem:[%s1 + $0x600] sm:$0xff]
  %v218 = vld [vmem:[%s1 + $0x608] sm:$0xff]
  %v219 = vld [vmem:[%s1 + $0x610] sm:$0xff]
  %v220 = vld [vmem:[%s1 + $0x618] sm:$0xff]
  %v221 = vld [vmem:[%s1 + $0x620] sm:$0xff]
  %v222 = vld [vmem:[%s1 + $0x628] sm:$0xff]
  %v223 = vld [vmem:[%s1 + $0x630] sm:$0xff]
  %v224 = vld [vmem:[%s1 + $0x638] sm:$0xff]
  %v225 = vld [vmem:[%s1 + $0x640] sm:$0xff]
  %v226 = vld [vmem:[%s1 + $0x648] sm:$0xff]
  %v227 = vld [vmem:[%s1 + $0x650] sm:$0xff]
  %v228 = vld [vmem:[%s1 + $0x658] sm:$0xff]
  %v229 = vld [vmem:[%s1 + $0x660] sm:$0xff]
  %v230 = vld [vmem:[%s1 + $0x668] sm:$0xff]
  %v231 = vld [vmem:[%s1 + $0x670] sm:$0xff]
  %v232 = vld [vmem:[%s1 + $0x678] sm:$0xff]
  %v233 = vld [vmem:[%s1 + $0x680] sm:$0xff]
  %v234 = vld [vmem:[%s1 + $0x688] sm:$0xff]
  %v235 = vld [vmem:[%s1 + $0x690] sm:$0xff]
  %v236 = vld [vmem:[%s1 + $0x698] sm:$0xff]
  %v237 = vld [vmem:[%s1 + $0x6a0] sm:$0xff]
  %v238 = vld [vmem:[%s1 + $0x6a8] sm:$0xff]
  %v239 = vld [vmem:[%s1 + $0x6b0] sm:$0xff]
  %v240 = vld [vmem:[%s1 + $0x6b8] sm:$0xff]
  %v241 = vld [vmem:[%s1 + $0x6c0] sm:$0xff]
  %v242 = vld [vmem:[%s1 + $0x6c8] sm:$0xff]
  %v243 = vld [vmem:[%s1 + $0x6d0] sm:$0xff]
  %v244 = vld [vmem:[%s1 + $0x6d8] sm:$0xff]
  %v245 = vld [vmem:[%s1 + $0x6e0] sm:$0xff]
  %v246 = vld [vmem:[%s1 + $0x6e8] sm:$0xff]
  %v247 = vld [vmem:[%s1 + $0x6f0] sm:$0xff]
  %v248 = vld [vmem:[%s1 + $0x6f8] sm:$0xff]
  %v249 = vld [vmem:[%s2] sm:$0xf]
  %v251 = vlaneseq
  %v252 = vshrl.u32 %v251, 7
  %v253 = vsub.s32 0, %v252
  %v254 = vrot.slane %v249, %v253
  %v255 = vlaneseq
  %v256 = vshrl.u32 %v255, 7
  %v257 = vsub.s32 1, %v256
  %v258 = vrot.slane %v249, %v257
  %v259 = vlaneseq
  %v260 = vshrl.u32 %v259, 7
  %v261 = vsub.s32 2, %v260
  %v262 = vrot.slane %v249, %v261
  %v263 = vlaneseq
  %v264 = vshrl.u32 %v263, 7
  %v265 = vsub.s32 3, %v264
  %v266 = vrot.slane %v249, %v265
  %v275 = vunpack.c.l.b16 %v21
  %v276 = vunpack.c.h.b16 %v21
  %v277 = vunpack.c.l.b16 %v22
  %v278 = vunpack.c.h.b16 %v22
  %v279 = vunpack.c.l.b16 %v23
  %v280 = vunpack.c.h.b16 %v23
  %v281 = vunpack.c.l.b16 %v24
  %v282 = vpack.c.b16 %v275, %v275
  %v283 = vpack.c.b16 %v276, %v276
  %v284 = vpack.c.b16 %v277, %v277
  %v285 = vpack.c.b16 %v278, %v278
  %v286 = vpack.c.b16 %v279, %v279
  %v287 = vpack.c.b16 %v280, %v280
  %v288 = vpack.c.b16 %v281, %v281
  %v520 = vunpack.c.l.b16 %v25
  %v521 = vunpack.c.h.b16 %v25
  %v522 = vunpack.c.l.b16 %v26
  %v523 = vunpack.c.h.b16 %v26
  %v524 = vunpack.c.l.b16 %v27
  %v525 = vunpack.c.h.b16 %v27
  %v526 = vunpack.c.l.b16 %v28
  %v527 = vunpack.c.h.b16 %v28
  %v528 = vunpack.c.l.b16 %v29
  %v529 = vunpack.c.h.b16 %v29
  %v530 = vunpack.c.l.b16 %v30
  %v531 = vunpack.c.h.b16 %v30
  %v532 = vunpack.c.l.b16 %v31
  %v533 = vunpack.c.h.b16 %v31
  %v534 = vunpack.c.l.b16 %v32
  %v535 = vunpack.c.h.b16 %v32
  %v536 = vunpack.c.l.b16 %v33
  %v537 = vunpack.c.h.b16 %v33
  %v538 = vunpack.c.l.b16 %v34
  %v539 = vunpack.c.h.b16 %v34
  %v540 = vunpack.c.l.b16 %v35
  %v541 = vunpack.c.h.b16 %v35
  %v542 = vunpack.c.l.b16 %v36
  %v543 = vunpack.c.h.b16 %v36
  %v544 = vunpack.c.l.b16 %v37
  %v545 = vunpack.c.h.b16 %v37
  %v546 = vunpack.c.l.b16 %v38
  %v547 = vunpack.c.h.b16 %v38
  %v548 = vunpack.c.l.b16 %v39
  %v549 = vunpack.c.h.b16 %v39
  %v550 = vunpack.c.l.b16 %v40
  %v551 = vunpack.c.h.b16 %v40
  %v552 = vunpack.c.l.b16 %v41
  %v553 = vunpack.c.h.b16 %v41
  %v554 = vunpack.c.l.b16 %v42
  %v555 = vunpack.c.h.b16 %v42
  %v556 = vunpack.c.l.b16 %v43
  %v557 = vunpack.c.h.b16 %v43
  %v558 = vunpack.c.l.b16 %v44
  %v559 = vunpack.c.h.b16 %v44
  %v560 = vunpack.c.l.b16 %v45
  %v561 = vunpack.c.h.b16 %v45
  %v562 = vunpack.c.l.b16 %v46
  %v563 = vunpack.c.h.b16 %v46
  %v564 = vunpack.c.l.b16 %v47
  %v565 = vunpack.c.h.b16 %v47
  %v566 = vunpack.c.l.b16 %v48
  %v567 = vunpack.c.h.b16 %v48
  %v568 = vunpack.c.l.b16 %v49
  %v569 = vunpack.c.h.b16 %v49
  %v570 = vunpack.c.l.b16 %v50
  %v571 = vunpack.c.h.b16 %v50
  %v572 = vunpack.c.l.b16 %v51
  %v573 = vunpack.c.h.b16 %v51
  %v574 = vunpack.c.l.b16 %v52
  %v575 = vunpack.c.h.b16 %v52
  %v576 = vunpack.c.l.b16 %v53
  %v577 = vunpack.c.h.b16 %v53
  %v578 = vunpack.c.l.b16 %v54
  %v579 = vunpack.c.h.b16 %v54
  %v580 = vunpack.c.l.b16 %v55
  %v581 = vunpack.c.h.b16 %v55
  %v582 = vunpack.c.l.b16 %v56
  %v583 = vunpack.c.h.b16 %v56
  %v584 = vunpack.c.l.b16 %v57
  %v585 = vunpack.c.h.b16 %v57
  %v586 = vunpack.c.l.b16 %v58
  %v587 = vunpack.c.h.b16 %v58
  %v588 = vunpack.c.l.b16 %v59
  %v589 = vunpack.c.h.b16 %v59
  %v590 = vunpack.c.l.b16 %v60
  %v591 = vunpack.c.h.b16 %v60
  %v592 = vunpack.c.l.b16 %v61
  %v593 = vunpack.c.h.b16 %v61
  %v594 = vunpack.c.l.b16 %v62
  %v595 = vunpack.c.h.b16 %v62
  %v596 = vunpack.c.l.b16 %v63
  %v597 = vunpack.c.h.b16 %v63
  %v598 = vunpack.c.l.b16 %v64
  %v599 = vunpack.c.h.b16 %v64
  %v600 = vunpack.c.l.b16 %v65
  %v601 = vunpack.c.h.b16 %v65
  %v602 = vunpack.c.l.b16 %v66
  %v603 = vunpack.c.h.b16 %v66
  %v604 = vunpack.c.l.b16 %v67
  %v605 = vunpack.c.h.b16 %v67
  %v606 = vunpack.c.l.b16 %v68
  %v607 = vunpack.c.h.b16 %v68
  %v608 = vunpack.c.l.b16 %v69
  %v609 = vunpack.c.h.b16 %v69
  %v610 = vunpack.c.l.b16 %v70
  %v611 = vunpack.c.h.b16 %v70
  %v612 = vunpack.c.l.b16 %v71
  %v613 = vunpack.c.h.b16 %v71
  %v614 = vunpack.c.l.b16 %v72
  %v615 = vunpack.c.h.b16 %v72
  %v616 = vunpack.c.l.b16 %v73
  %v617 = vunpack.c.h.b16 %v73
  %v618 = vunpack.c.l.b16 %v74
  %v619 = vunpack.c.h.b16 %v74
  %v620 = vunpack.c.l.b16 %v75
  %v621 = vunpack.c.h.b16 %v75
  %v622 = vunpack.c.l.b16 %v76
  %v623 = vunpack.c.h.b16 %v76
  %v624 = vunpack.c.l.b16 %v77
  %v625 = vunpack.c.h.b16 %v77
  %v626 = vunpack.c.l.b16 %v78
  %v627 = vunpack.c.h.b16 %v78
  %v628 = vunpack.c.l.b16 %v79
  %v629 = vunpack.c.h.b16 %v79
  %v630 = vunpack.c.l.b16 %v80
  %v631 = vunpack.c.h.b16 %v80
  %v632 = vunpack.c.l.b16 %v81
  %v633 = vunpack.c.h.b16 %v81
  %v634 = vunpack.c.l.b16 %v82
  %v635 = vunpack.c.h.b16 %v82
  %v636 = vunpack.c.l.b16 %v83
  %v637 = vunpack.c.h.b16 %v83
  %v638 = vunpack.c.l.b16 %v84
  %v639 = vunpack.c.h.b16 %v84
  %v640 = vunpack.c.l.b16 %v85
  %v641 = vunpack.c.h.b16 %v85
  %v642 = vunpack.c.l.b16 %v86
  %v643 = vunpack.c.h.b16 %v86
  %v644 = vunpack.c.l.b16 %v87
  %v645 = vunpack.c.h.b16 %v87
  %v646 = vunpack.c.l.b16 %v88
  %v647 = vunpack.c.h.b16 %v88
  %v648 = vunpack.c.l.b16 %v89
  %v649 = vunpack.c.h.b16 %v89
  %v650 = vunpack.c.l.b16 %v90
  %v651 = vunpack.c.h.b16 %v90
  %v652 = vunpack.c.l.b16 %v91
  %v653 = vunpack.c.h.b16 %v91
  %v654 = vunpack.c.l.b16 %v92
  %v655 = vunpack.c.h.b16 %v92
  %v656 = vunpack.c.l.b16 %v93
  %v657 = vunpack.c.h.b16 %v93
  %v658 = vunpack.c.l.b16 %v94
  %v659 = vunpack.c.h.b16 %v94
  %v660 = vunpack.c.l.b16 %v95
  %v661 = vunpack.c.h.b16 %v95
  %v662 = vunpack.c.l.b16 %v96
  %v663 = vunpack.c.h.b16 %v96
  %v664 = vunpack.c.l.b16 %v97
  %v665 = vunpack.c.h.b16 %v97
  %v666 = vunpack.c.l.b16 %v98
  %v667 = vunpack.c.h.b16 %v98
  %v668 = vunpack.c.l.b16 %v99
  %v669 = vunpack.c.h.b16 %v99
  %v670 = vunpack.c.l.b16 %v100
  %v671 = vunpack.c.h.b16 %v100
  %v672 = vunpack.c.l.b16 %v101
  %v673 = vunpack.c.h.b16 %v101
  %v674 = vunpack.c.l.b16 %v102
  %v675 = vunpack.c.h.b16 %v102
  %v676 = vunpack.c.l.b16 %v103
  %v677 = vunpack.c.h.b16 %v103
  %v678 = vunpack.c.l.b16 %v104
  %v679 = vunpack.c.h.b16 %v104
  %v680 = vunpack.c.l.b16 %v105
  %v681 = vunpack.c.h.b16 %v105
  %v682 = vunpack.c.l.b16 %v106
  %v683 = vunpack.c.h.b16 %v106
  %v684 = vunpack.c.l.b16 %v107
  %v685 = vunpack.c.h.b16 %v107
  %v686 = vunpack.c.l.b16 %v108
  %v687 = vunpack.c.h.b16 %v108
  %v688 = vunpack.c.l.b16 %v109
  %v689 = vunpack.c.h.b16 %v109
  %v690 = vunpack.c.l.b16 %v110
  %v691 = vunpack.c.h.b16 %v110
  %v692 = vunpack.c.l.b16 %v111
  %v693 = vunpack.c.h.b16 %v111
  %v694 = vunpack.c.l.b16 %v112
  %v695 = vunpack.c.h.b16 %v112
  %v696 = vunpack.c.l.b16 %v113
  %v697 = vunpack.c.h.b16 %v113
  %v698 = vunpack.c.l.b16 %v114
  %v699 = vunpack.c.h.b16 %v114
  %v700 = vunpack.c.l.b16 %v115
  %v701 = vunpack.c.h.b16 %v115
  %v702 = vunpack.c.l.b16 %v116
  %v703 = vunpack.c.h.b16 %v116
  %v704 = vunpack.c.l.b16 %v117
  %v705 = vunpack.c.h.b16 %v117
  %v706 = vunpack.c.l.b16 %v118
  %v707 = vunpack.c.h.b16 %v118
  %v708 = vunpack.c.l.b16 %v119
  %v709 = vunpack.c.h.b16 %v119
  %v710 = vunpack.c.l.b16 %v120
  %v711 = vunpack.c.h.b16 %v120
  %v712 = vunpack.c.l.b16 %v121
  %v713 = vunpack.c.h.b16 %v121
  %v714 = vunpack.c.l.b16 %v122
  %v715 = vunpack.c.h.b16 %v122
  %v716 = vunpack.c.l.b16 %v123
  %v717 = vunpack.c.h.b16 %v123
  %v718 = vunpack.c.l.b16 %v124
  %v719 = vunpack.c.h.b16 %v124
  %v720 = vunpack.c.l.b16 %v125
  %v721 = vunpack.c.h.b16 %v125
  %v722 = vunpack.c.l.b16 %v126
  %v723 = vunpack.c.h.b16 %v126
  %v724 = vunpack.c.l.b16 %v127
  %v725 = vunpack.c.h.b16 %v127
  %v726 = vunpack.c.l.b16 %v128
  %v727 = vunpack.c.h.b16 %v128
  %v728 = vunpack.c.l.b16 %v129
  %v729 = vunpack.c.h.b16 %v129
  %v730 = vunpack.c.l.b16 %v130
  %v731 = vunpack.c.h.b16 %v130
  %v732 = vunpack.c.l.b16 %v131
  %v733 = vunpack.c.h.b16 %v131
  %v734 = vunpack.c.l.b16 %v132
  %v735 = vunpack.c.h.b16 %v132
  %v736 = vunpack.c.l.b16 %v133
  %v737 = vunpack.c.h.b16 %v133
  %v738 = vunpack.c.l.b16 %v134
  %v739 = vunpack.c.h.b16 %v134
  %v740 = vunpack.c.l.b16 %v135
  %v741 = vunpack.c.h.b16 %v135
  %v742 = vunpack.c.l.b16 %v136
  %v743 = vunpack.c.h.b16 %v136
  %v744 = vunpack.c.l.b16 %v137
  %v745 = vunpack.c.h.b16 %v137
  %v746 = vunpack.c.l.b16 %v138
  %v747 = vunpack.c.h.b16 %v138
  %v748 = vunpack.c.l.b16 %v139
  %v749 = vunpack.c.h.b16 %v139
  %v750 = vunpack.c.l.b16 %v140
  %v751 = vunpack.c.h.b16 %v140
  %v752 = vunpack.c.l.b16 %v141
  %v753 = vunpack.c.h.b16 %v141
  %v754 = vunpack.c.l.b16 %v142
  %v755 = vunpack.c.h.b16 %v142
  %v756 = vunpack.c.l.b16 %v143
  %v757 = vunpack.c.h.b16 %v143
  %v758 = vunpack.c.l.b16 %v144
  %v759 = vunpack.c.h.b16 %v144
  %v760 = vunpack.c.l.b16 %v145
  %v761 = vunpack.c.h.b16 %v145
  %v762 = vunpack.c.l.b16 %v146
  %v763 = vunpack.c.h.b16 %v146
  %v764 = vunpack.c.l.b16 %v147
  %v765 = vunpack.c.h.b16 %v147
  %v766 = vunpack.c.l.b16 %v148
  %v767 = vunpack.c.h.b16 %v148
  %v768 = vunpack.c.l.b16 %v149
  %v769 = vunpack.c.h.b16 %v149
  %v770 = vunpack.c.l.b16 %v150
  %v771 = vunpack.c.h.b16 %v150
  %v772 = vunpack.c.l.b16 %v151
  %v773 = vunpack.c.h.b16 %v151
  %v774 = vunpack.c.l.b16 %v152
  %v775 = vunpack.c.h.b16 %v152
  %v776 = vunpack.c.l.b16 %v153
  %v777 = vunpack.c.h.b16 %v153
  %v778 = vunpack.c.l.b16 %v154
  %v779 = vunpack.c.h.b16 %v154
  %v780 = vunpack.c.l.b16 %v155
  %v781 = vunpack.c.h.b16 %v155
  %v782 = vunpack.c.l.b16 %v156
  %v783 = vunpack.c.h.b16 %v156
  %v784 = vunpack.c.l.b16 %v157
  %v785 = vunpack.c.h.b16 %v157
  %v786 = vunpack.c.l.b16 %v158
  %v787 = vunpack.c.h.b16 %v158
  %v788 = vunpack.c.l.b16 %v159
  %v789 = vunpack.c.h.b16 %v159
  %v790 = vunpack.c.l.b16 %v160
  %v791 = vunpack.c.h.b16 %v160
  %v792 = vunpack.c.l.b16 %v161
  %v793 = vunpack.c.h.b16 %v161
  %v794 = vunpack.c.l.b16 %v162
  %v795 = vunpack.c.h.b16 %v162
  %v796 = vunpack.c.l.b16 %v163
  %v797 = vunpack.c.h.b16 %v163
  %v798 = vunpack.c.l.b16 %v164
  %v799 = vunpack.c.h.b16 %v164
  %v800 = vunpack.c.l.b16 %v165
  %v801 = vunpack.c.h.b16 %v165
  %v802 = vunpack.c.l.b16 %v166
  %v803 = vunpack.c.h.b16 %v166
  %v804 = vunpack.c.l.b16 %v167
  %v805 = vunpack.c.h.b16 %v167
  %v806 = vunpack.c.l.b16 %v168
  %v807 = vunpack.c.h.b16 %v168
  %v808 = vunpack.c.l.b16 %v169
  %v809 = vunpack.c.h.b16 %v169
  %v810 = vunpack.c.l.b16 %v170
  %v811 = vunpack.c.h.b16 %v170
  %v812 = vunpack.c.l.b16 %v171
  %v813 = vunpack.c.h.b16 %v171
  %v814 = vunpack.c.l.b16 %v172
  %v815 = vunpack.c.h.b16 %v172
  %v816 = vunpack.c.l.b16 %v173
  %v817 = vunpack.c.h.b16 %v173
  %v818 = vunpack.c.l.b16 %v174
  %v819 = vunpack.c.h.b16 %v174
  %v820 = vunpack.c.l.b16 %v175
  %v821 = vunpack.c.h.b16 %v175
  %v822 = vunpack.c.l.b16 %v176
  %v823 = vunpack.c.h.b16 %v176
  %v824 = vunpack.c.l.b16 %v177
  %v825 = vunpack.c.h.b16 %v177
  %v826 = vunpack.c.l.b16 %v178
  %v827 = vunpack.c.h.b16 %v178
  %v828 = vunpack.c.l.b16 %v179
  %v829 = vunpack.c.h.b16 %v179
  %v830 = vunpack.c.l.b16 %v180
  %v831 = vunpack.c.h.b16 %v180
  %v832 = vunpack.c.l.b16 %v181
  %v833 = vunpack.c.h.b16 %v181
  %v834 = vunpack.c.l.b16 %v182
  %v835 = vunpack.c.h.b16 %v182
  %v836 = vunpack.c.l.b16 %v183
  %v837 = vunpack.c.h.b16 %v183
  %v838 = vunpack.c.l.b16 %v184
  %v839 = vunpack.c.h.b16 %v184
  %v840 = vunpack.c.l.b16 %v185
  %v841 = vunpack.c.h.b16 %v185
  %v842 = vunpack.c.l.b16 %v186
  %v843 = vunpack.c.h.b16 %v186
  %v844 = vunpack.c.l.b16 %v187
  %v845 = vunpack.c.h.b16 %v187
  %v846 = vunpack.c.l.b16 %v188
  %v847 = vunpack.c.h.b16 %v188
  %v848 = vunpack.c.l.b16 %v189
  %v849 = vunpack.c.h.b16 %v189
  %v850 = vunpack.c.l.b16 %v190
  %v851 = vunpack.c.h.b16 %v190
  %v852 = vunpack.c.l.b16 %v191
  %v853 = vunpack.c.h.b16 %v191
  %v854 = vunpack.c.l.b16 %v192
  %v855 = vunpack.c.h.b16 %v192
  %v856 = vunpack.c.l.b16 %v193
  %v857 = vunpack.c.h.b16 %v193
  %v858 = vunpack.c.l.b16 %v194
  %v859 = vunpack.c.h.b16 %v194
  %v860 = vunpack.c.l.b16 %v195
  %v861 = vunpack.c.h.b16 %v195
  %v862 = vunpack.c.l.b16 %v196
  %v863 = vunpack.c.h.b16 %v196
  %v864 = vunpack.c.l.b16 %v197
  %v865 = vunpack.c.h.b16 %v197
  %v866 = vunpack.c.l.b16 %v198
  %v867 = vunpack.c.h.b16 %v198
  %v868 = vunpack.c.l.b16 %v199
  %v869 = vunpack.c.h.b16 %v199
  %v870 = vunpack.c.l.b16 %v200
  %v871 = vunpack.c.h.b16 %v200
  %v872 = vunpack.c.l.b16 %v201
  %v873 = vunpack.c.h.b16 %v201
  %v874 = vunpack.c.l.b16 %v202
  %v875 = vunpack.c.h.b16 %v202
  %v876 = vunpack.c.l.b16 %v203
  %v877 = vunpack.c.h.b16 %v203
  %v878 = vunpack.c.l.b16 %v204
  %v879 = vunpack.c.h.b16 %v204
  %v880 = vunpack.c.l.b16 %v205
  %v881 = vunpack.c.h.b16 %v205
  %v882 = vunpack.c.l.b16 %v206
  %v883 = vunpack.c.h.b16 %v206
  %v884 = vunpack.c.l.b16 %v207
  %v885 = vunpack.c.h.b16 %v207
  %v886 = vunpack.c.l.b16 %v208
  %v887 = vunpack.c.h.b16 %v208
  %v888 = vunpack.c.l.b16 %v209
  %v889 = vunpack.c.h.b16 %v209
  %v890 = vunpack.c.l.b16 %v210
  %v891 = vunpack.c.h.b16 %v210
  %v892 = vunpack.c.l.b16 %v211
  %v893 = vunpack.c.h.b16 %v211
  %v894 = vunpack.c.l.b16 %v212
  %v895 = vunpack.c.h.b16 %v212
  %v896 = vunpack.c.l.b16 %v213
  %v897 = vunpack.c.h.b16 %v213
  %v898 = vunpack.c.l.b16 %v214
  %v899 = vunpack.c.h.b16 %v214
  %v900 = vunpack.c.l.b16 %v215
  %v901 = vunpack.c.h.b16 %v215
  %v902 = vunpack.c.l.b16 %v216
  %v903 = vunpack.c.h.b16 %v216
  %v904 = vunpack.c.l.b16 %v217
  %v905 = vunpack.c.h.b16 %v217
  %v906 = vunpack.c.l.b16 %v218
  %v907 = vunpack.c.h.b16 %v218
  %v908 = vunpack.c.l.b16 %v219
  %v909 = vunpack.c.h.b16 %v219
  %v910 = vunpack.c.l.b16 %v220
  %v911 = vunpack.c.h.b16 %v220
  %v912 = vunpack.c.l.b16 %v221
  %v913 = vunpack.c.h.b16 %v221
  %v914 = vunpack.c.l.b16 %v222
  %v915 = vunpack.c.h.b16 %v222
  %v916 = vunpack.c.l.b16 %v223
  %v917 = vunpack.c.h.b16 %v223
  %v918 = vunpack.c.l.b16 %v224
  %v919 = vunpack.c.h.b16 %v224
  %v920 = vunpack.c.l.b16 %v225
  %v921 = vunpack.c.h.b16 %v225
  %v922 = vunpack.c.l.b16 %v226
  %v923 = vunpack.c.h.b16 %v226
  %v924 = vunpack.c.l.b16 %v227
  %v925 = vunpack.c.h.b16 %v227
  %v926 = vunpack.c.l.b16 %v228
  %v927 = vunpack.c.h.b16 %v228
  %v928 = vunpack.c.l.b16 %v229
  %v929 = vunpack.c.h.b16 %v229
  %v930 = vunpack.c.l.b16 %v230
  %v931 = vunpack.c.h.b16 %v230
  %v932 = vunpack.c.l.b16 %v231
  %v933 = vunpack.c.h.b16 %v231
  %v934 = vunpack.c.l.b16 %v232
  %v935 = vunpack.c.h.b16 %v232
  %v936 = vunpack.c.l.b16 %v233
  %v937 = vunpack.c.h.b16 %v233
  %v938 = vunpack.c.l.b16 %v234
  %v939 = vunpack.c.h.b16 %v234
  %v940 = vunpack.c.l.b16 %v235
  %v941 = vunpack.c.h.b16 %v235
  %v942 = vunpack.c.l.b16 %v236
  %v943 = vunpack.c.h.b16 %v236
  %v944 = vunpack.c.l.b16 %v237
  %v945 = vunpack.c.h.b16 %v237
  %v946 = vunpack.c.l.b16 %v238
  %v947 = vunpack.c.h.b16 %v238
  %v948 = vunpack.c.l.b16 %v239
  %v949 = vunpack.c.h.b16 %v239
  %v950 = vunpack.c.l.b16 %v240
  %v951 = vunpack.c.h.b16 %v240
  %v952 = vunpack.c.l.b16 %v241
  %v953 = vunpack.c.h.b16 %v241
  %v954 = vunpack.c.l.b16 %v242
  %v955 = vunpack.c.h.b16 %v242
  %v956 = vunpack.c.l.b16 %v243
  %v957 = vunpack.c.h.b16 %v243
  %v958 = vunpack.c.l.b16 %v244
  %v959 = vunpack.c.h.b16 %v244
  %v960 = vunpack.c.l.b16 %v245
  %v961 = vunpack.c.h.b16 %v245
  %v962 = vunpack.c.l.b16 %v246
  %v963 = vunpack.c.h.b16 %v246
  %v964 = vunpack.c.l.b16 %v247
  %v965 = vunpack.c.h.b16 %v247
  %v966 = vunpack.c.l.b16 %v248
  %v967 = vunpack.c.h.b16 %v248
  %v968 = vpack.c.b16 %v524, %v520
  %v969 = vpack.c.b16 %v525, %v521
  %v970 = vpack.c.b16 %v526, %v522
  %v971 = vpack.c.b16 %v527, %v523
  %v972 = vpack.c.b16 %v532, %v528
  %v973 = vpack.c.b16 %v533, %v529
  %v974 = vpack.c.b16 %v534, %v530
  %v975 = vpack.c.b16 %v535, %v531
  %v976 = vpack.c.b16 %v540, %v536
  %v977 = vpack.c.b16 %v541, %v537
  %v978 = vpack.c.b16 %v542, %v538
  %v979 = vpack.c.b16 %v543, %v539
  %v980 = vpack.c.b16 %v548, %v544
  %v981 = vpack.c.b16 %v549, %v545
  %v982 = vpack.c.b16 %v550, %v546
  %v983 = vpack.c.b16 %v551, %v547
  %v984 = vpack.c.b16 %v556, %v552
  %v985 = vpack.c.b16 %v557, %v553
  %v986 = vpack.c.b16 %v558, %v554
  %v987 = vpack.c.b16 %v559, %v555
  %v988 = vpack.c.b16 %v564, %v560
  %v989 = vpack.c.b16 %v565, %v561
  %v990 = vpack.c.b16 %v566, %v562
  %v991 = vpack.c.b16 %v567, %v563
  %v992 = vpack.c.b16 %v572, %v568
  %v993 = vpack.c.b16 %v573, %v569
  %v994 = vpack.c.b16 %v574, %v570
  %v995 = vpack.c.b16 %v575, %v571
  %v996 = vpack.c.b16 %v580, %v576
  %v997 = vpack.c.b16 %v581, %v577
  %v998 = vpack.c.b16 %v582, %v578
  %v999 = vpack.c.b16 %v583, %v579
  %v1000 = vpack.c.b16 %v588, %v584
  %v1001 = vpack.c.b16 %v589, %v585
  %v1002 = vpack.c.b16 %v590, %v586
  %v1003 = vpack.c.b16 %v591, %v587
  %v1004 = vpack.c.b16 %v596, %v592
  %v1005 = vpack.c.b16 %v597, %v593
  %v1006 = vpack.c.b16 %v598, %v594
  %v1007 = vpack.c.b16 %v599, %v595
  %v1008 = vpack.c.b16 %v604, %v600
  %v1009 = vpack.c.b16 %v605, %v601
  %v1010 = vpack.c.b16 %v606, %v602
  %v1011 = vpack.c.b16 %v607, %v603
  %v1012 = vpack.c.b16 %v612, %v608
  %v1013 = vpack.c.b16 %v613, %v609
  %v1014 = vpack.c.b16 %v614, %v610
  %v1015 = vpack.c.b16 %v615, %v611
  %v1016 = vpack.c.b16 %v620, %v616
  %v1017 = vpack.c.b16 %v621, %v617
  %v1018 = vpack.c.b16 %v622, %v618
  %v1019 = vpack.c.b16 %v623, %v619
  %v1020 = vpack.c.b16 %v628, %v624
  %v1021 = vpack.c.b16 %v629, %v625
  %v1022 = vpack.c.b16 %v630, %v626
  %v1023 = vpack.c.b16 %v631, %v627
  %v1024 = vpack.c.b16 %v636, %v632
  %v1025 = vpack.c.b16 %v637, %v633
  %v1026 = vpack.c.b16 %v638, %v634
  %v1027 = vpack.c.b16 %v639, %v635
  %v1028 = vpack.c.b16 %v644, %v640
  %v1029 = vpack.c.b16 %v645, %v641
  %v1030 = vpack.c.b16 %v646, %v642
  %v1031 = vpack.c.b16 %v647, %v643
  %v1032 = vpack.c.b16 %v652, %v648
  %v1033 = vpack.c.b16 %v653, %v649
  %v1034 = vpack.c.b16 %v654, %v650
  %v1035 = vpack.c.b16 %v655, %v651
  %v1036 = vpack.c.b16 %v660, %v656
  %v1037 = vpack.c.b16 %v661, %v657
  %v1038 = vpack.c.b16 %v662, %v658
  %v1039 = vpack.c.b16 %v663, %v659
  %v1040 = vpack.c.b16 %v668, %v664
  %v1041 = vpack.c.b16 %v669, %v665
  %v1042 = vpack.c.b16 %v670, %v666
  %v1043 = vpack.c.b16 %v671, %v667
  %v1044 = vpack.c.b16 %v676, %v672
  %v1045 = vpack.c.b16 %v677, %v673
  %v1046 = vpack.c.b16 %v678, %v674
  %v1047 = vpack.c.b16 %v679, %v675
  %v1048 = vpack.c.b16 %v684, %v680
  %v1049 = vpack.c.b16 %v685, %v681
  %v1050 = vpack.c.b16 %v686, %v682
  %v1051 = vpack.c.b16 %v687, %v683
  %v1052 = vpack.c.b16 %v692, %v688
  %v1053 = vpack.c.b16 %v693, %v689
  %v1054 = vpack.c.b16 %v694, %v690
  %v1055 = vpack.c.b16 %v695, %v691
  %v1056 = vpack.c.b16 %v700, %v696
  %v1057 = vpack.c.b16 %v701, %v697
  %v1058 = vpack.c.b16 %v702, %v698
  %v1059 = vpack.c.b16 %v703, %v699
  %v1060 = vpack.c.b16 %v708, %v704
  %v1061 = vpack.c.b16 %v709, %v705
  %v1062 = vpack.c.b16 %v710, %v706
  %v1063 = vpack.c.b16 %v711, %v707
  %v1064 = vpack.c.b16 %v716, %v712
  %v1065 = vpack.c.b16 %v717, %v713
  %v1066 = vpack.c.b16 %v718, %v714
  %v1067 = vpack.c.b16 %v719, %v715
  %v1068 = vpack.c.b16 %v724, %v720
  %v1069 = vpack.c.b16 %v725, %v721
  %v1070 = vpack.c.b16 %v726, %v722
  %v1071 = vpack.c.b16 %v727, %v723
  %v1072 = vpack.c.b16 %v732, %v728
  %v1073 = vpack.c.b16 %v733, %v729
  %v1074 = vpack.c.b16 %v734, %v730
  %v1075 = vpack.c.b16 %v735, %v731
  %v1076 = vpack.c.b16 %v740, %v736
  %v1077 = vpack.c.b16 %v741, %v737
  %v1078 = vpack.c.b16 %v742, %v738
  %v1079 = vpack.c.b16 %v743, %v739
  %v1080 = vpack.c.b16 %v748, %v744
  %v1081 = vpack.c.b16 %v749, %v745
  %v1082 = vpack.c.b16 %v750, %v746
  %v1083 = vpack.c.b16 %v751, %v747
  %v1084 = vpack.c.b16 %v756, %v752
  %v1085 = vpack.c.b16 %v757, %v753
  %v1086 = vpack.c.b16 %v758, %v754
  %v1087 = vpack.c.b16 %v759, %v755
  %v1088 = vpack.c.b16 %v764, %v760
  %v1089 = vpack.c.b16 %v765, %v761
  %v1090 = vpack.c.b16 %v766, %v762
  %v1091 = vpack.c.b16 %v767, %v763
  %v1092 = vpack.c.b16 %v772, %v768
  %v1093 = vpack.c.b16 %v773, %v769
  %v1094 = vpack.c.b16 %v774, %v770
  %v1095 = vpack.c.b16 %v775, %v771
  %v1096 = vpack.c.b16 %v780, %v776
  %v1097 = vpack.c.b16 %v781, %v777
  %v1098 = vpack.c.b16 %v782, %v778
  %v1099 = vpack.c.b16 %v783, %v779
  %v1100 = vpack.c.b16 %v788, %v784
  %v1101 = vpack.c.b16 %v789, %v785
  %v1102 = vpack.c.b16 %v790, %v786
  %v1103 = vpack.c.b16 %v791, %v787
  %v1104 = vpack.c.b16 %v796, %v792
  %v1105 = vpack.c.b16 %v797, %v793
  %v1106 = vpack.c.b16 %v798, %v794
  %v1107 = vpack.c.b16 %v799, %v795
  %v1108 = vpack.c.b16 %v804, %v800
  %v1109 = vpack.c.b16 %v805, %v801
  %v1110 = vpack.c.b16 %v806, %v802
  %v1111 = vpack.c.b16 %v807, %v803
  %v1112 = vpack.c.b16 %v812, %v808
  %v1113 = vpack.c.b16 %v813, %v809
  %v1114 = vpack.c.b16 %v814, %v810
  %v1115 = vpack.c.b16 %v815, %v811
  %v1116 = vpack.c.b16 %v820, %v816
  %v1117 = vpack.c.b16 %v821, %v817
  %v1118 = vpack.c.b16 %v822, %v818
  %v1119 = vpack.c.b16 %v823, %v819
  %v1120 = vpack.c.b16 %v828, %v824
  %v1121 = vpack.c.b16 %v829, %v825
  %v1122 = vpack.c.b16 %v830, %v826
  %v1123 = vpack.c.b16 %v831, %v827
  %v1124 = vpack.c.b16 %v836, %v832
  %v1125 = vpack.c.b16 %v837, %v833
  %v1126 = vpack.c.b16 %v838, %v834
  %v1127 = vpack.c.b16 %v839, %v835
  %v1128 = vpack.c.b16 %v844, %v840
  %v1129 = vpack.c.b16 %v845, %v841
  %v1130 = vpack.c.b16 %v846, %v842
  %v1131 = vpack.c.b16 %v847, %v843
  %v1132 = vpack.c.b16 %v852, %v848
  %v1133 = vpack.c.b16 %v853, %v849
  %v1134 = vpack.c.b16 %v854, %v850
  %v1135 = vpack.c.b16 %v855, %v851
  %v1136 = vpack.c.b16 %v860, %v856
  %v1137 = vpack.c.b16 %v861, %v857
  %v1138 = vpack.c.b16 %v862, %v858
  %v1139 = vpack.c.b16 %v863, %v859
  %v1140 = vpack.c.b16 %v868, %v864
  %v1141 = vpack.c.b16 %v869, %v865
  %v1142 = vpack.c.b16 %v870, %v866
  %v1143 = vpack.c.b16 %v871, %v867
  %v1144 = vpack.c.b16 %v876, %v872
  %v1145 = vpack.c.b16 %v877, %v873
  %v1146 = vpack.c.b16 %v878, %v874
  %v1147 = vpack.c.b16 %v879, %v875
  %v1148 = vpack.c.b16 %v884, %v880
  %v1149 = vpack.c.b16 %v885, %v881
  %v1150 = vpack.c.b16 %v886, %v882
  %v1151 = vpack.c.b16 %v887, %v883
  %v1152 = vpack.c.b16 %v892, %v888
  %v1153 = vpack.c.b16 %v893, %v889
  %v1154 = vpack.c.b16 %v894, %v890
  %v1155 = vpack.c.b16 %v895, %v891
  %v1156 = vpack.c.b16 %v900, %v896
  %v1157 = vpack.c.b16 %v901, %v897
  %v1158 = vpack.c.b16 %v902, %v898
  %v1159 = vpack.c.b16 %v903, %v899
  %v1160 = vpack.c.b16 %v908, %v904
  %v1161 = vpack.c.b16 %v909, %v905
  %v1162 = vpack.c.b16 %v910, %v906
  %v1163 = vpack.c.b16 %v911, %v907
  %v1164 = vpack.c.b16 %v916, %v912
  %v1165 = vpack.c.b16 %v917, %v913
  %v1166 = vpack.c.b16 %v918, %v914
  %v1167 = vpack.c.b16 %v919, %v915
  %v1168 = vpack.c.b16 %v924, %v920
  %v1169 = vpack.c.b16 %v925, %v921
  %v1170 = vpack.c.b16 %v926, %v922
  %v1171 = vpack.c.b16 %v927, %v923
  %v1172 = vpack.c.b16 %v932, %v928
  %v1173 = vpack.c.b16 %v933, %v929
  %v1174 = vpack.c.b16 %v934, %v930
  %v1175 = vpack.c.b16 %v935, %v931
  %v1176 = vpack.c.b16 %v940, %v936
  %v1177 = vpack.c.b16 %v941, %v937
  %v1178 = vpack.c.b16 %v942, %v938
  %v1179 = vpack.c.b16 %v943, %v939
  %v1180 = vpack.c.b16 %v948, %v944
  %v1181 = vpack.c.b16 %v949, %v945
  %v1182 = vpack.c.b16 %v950, %v946
  %v1183 = vpack.c.b16 %v951, %v947
  %v1184 = vpack.c.b16 %v956, %v952
  %v1185 = vpack.c.b16 %v957, %v953
  %v1186 = vpack.c.b16 %v958, %v954
  %v1187 = vpack.c.b16 %v959, %v955
  %v1188 = vpack.c.b16 %v964, %v960
  %v1189 = vpack.c.b16 %v965, %v961
  %v1190 = vpack.c.b16 %v966, %v962
  %v1191 = vpack.c.b16 %v967, %v963
  %1416 = vmatprep.subr.bf16.mxu0 %v997
  %1417 = vmatpush1.bf16.msra.mxu0 %v996
  %1418 = vmatprep.subr.bf16.mxu0 %v993
  %1419 = vmatpush1.bf16.msra.mxu0 %v992
  %1420 = vmatprep.subr.bf16.mxu0 %v989
  %1421 = vmatpush1.bf16.msra.mxu0 %v988
  %1422 = vmatprep.subr.bf16.mxu0 %v985
  %1423 = vmatpush1.bf16.msra.mxu0 %v984
  %1424 = vmatprep.subr.bf16.mxu0 %v981
  %1425 = vmatpush1.bf16.msra.mxu0 %v980
  %1426 = vmatprep.subr.bf16.mxu0 %v977
  %1427 = vmatpush1.bf16.msra.mxu0 %v976
  %1428 = vmatprep.subr.bf16.mxu0 %v973
  %1429 = vmatpush1.bf16.msra.mxu0 %v972
  %1430 = vmatprep.subr.bf16.mxu0 %v969
  %1431 = vmatpush1.bf16.msra.mxu0 %v968
  %1432 = vmatprep.subr.bf16.mxu0 %v1029
  %1433 = vmatpush2.bf16.msra.mxu0 %v1028
  %1434 = vmatprep.subr.bf16.mxu0 %v1025
  %1435 = vmatpush2.bf16.msra.mxu0 %v1024
  %1436 = vmatprep.subr.bf16.mxu0 %v1021
  %1437 = vmatpush2.bf16.msra.mxu0 %v1020
  %1438 = vmatprep.subr.bf16.mxu0 %v1017
  %1439 = vmatpush2.bf16.msra.mxu0 %v1016
  %1440 = vmatprep.subr.bf16.mxu0 %v1013
  %1441 = vmatpush2.bf16.msra.mxu0 %v1012
  %1442 = vmatprep.subr.bf16.mxu0 %v1009
  %1443 = vmatpush2.bf16.msra.mxu0 %v1008
  %1444 = vmatprep.subr.bf16.mxu0 %v1005
  %1445 = vmatpush2.bf16.msra.mxu0 %v1004
  %1446 = vmatprep.subr.bf16.mxu0 %v1001
  %1447 = vmatpush2.bf16.msra.mxu0 %v1000
  %1448 = vmatprep.mubr.bf16.mxu0 %v283
  %1449 = vmatmul.mubr.bf16.gmra.mxu0 %v282
  %v1450 = vpop.f32.mrf.mxu0
  %v1451 = vadd.f32 %v254, %v1450
  %v1452 = vpop.f32.mrf.mxu0
  %v1453 = vadd.f32 %v258, %v1452
  %v1454 = vpop.f32.mrf.mxu0
  %v1455 = vpop.f32.mrf.mxu0
  %1456 = vdwg.mxu0
  %1457 = vmatprep.subr.bf16.mxu0 %v1061
  %1458 = vmatpush1.bf16.msra.mxu0 %v1060
  %1459 = vmatprep.subr.bf16.mxu0 %v1057
  %1460 = vmatpush1.bf16.msra.mxu0 %v1056
  %1461 = vmatprep.subr.bf16.mxu0 %v1053
  %1462 = vmatpush1.bf16.msra.mxu0 %v1052
  %1463 = vmatprep.subr.bf16.mxu0 %v1049
  %1464 = vmatpush1.bf16.msra.mxu0 %v1048
  %1465 = vmatprep.subr.bf16.mxu0 %v1045
  %1466 = vmatpush1.bf16.msra.mxu0 %v1044
  %1467 = vmatprep.subr.bf16.mxu0 %v1041
  %1468 = vmatpush1.bf16.msra.mxu0 %v1040
  %1469 = vmatprep.subr.bf16.mxu0 %v1037
  %1470 = vmatpush1.bf16.msra.mxu0 %v1036
  %1471 = vmatprep.subr.bf16.mxu0 %v1033
  %1472 = vmatpush1.bf16.msra.mxu0 %v1032
  %1473 = vmatprep.subr.bf16.mxu0 %v1093
  %1474 = vmatpush2.bf16.msra.mxu0 %v1092
  %1475 = vmatprep.subr.bf16.mxu0 %v1089
  %1476 = vmatpush2.bf16.msra.mxu0 %v1088
  %1477 = vmatprep.subr.bf16.mxu0 %v1085
  %1478 = vmatpush2.bf16.msra.mxu0 %v1084
  %1479 = vmatprep.subr.bf16.mxu0 %v1081
  %1480 = vmatpush2.bf16.msra.mxu0 %v1080
  %1481 = vmatprep.subr.bf16.mxu0 %v1077
  %1482 = vmatpush2.bf16.msra.mxu0 %v1076
  %1483 = vmatprep.subr.bf16.mxu0 %v1073
  %1484 = vmatpush2.bf16.msra.mxu0 %v1072
  %1485 = vmatprep.subr.bf16.mxu0 %v1069
  %1486 = vmatpush2.bf16.msra.mxu0 %v1068
  %1487 = vmatprep.subr.bf16.mxu0 %v1065
  %1488 = vmatpush2.bf16.msra.mxu0 %v1064
  %1489 = vmatprep.mubr.bf16.mxu0 %v285
  %1490 = vmatmul.mubr.bf16.gmra.mxu0 %v284
  %v1491 = vpop.f32.mrf.mxu0
  %v1492 = vadd.f32 %v1451, %v1491
  %v1493 = vpop.f32.mrf.mxu0
  %v1494 = vadd.f32 %v1453, %v1493
  %v1495 = vpop.f32.mrf.mxu0
  %v1496 = vpop.f32.mrf.mxu0
  %1497 = vdwg.mxu0
  %1498 = vmatprep.subr.bf16.mxu0 %v1125
  %1499 = vmatpush1.bf16.msra.mxu0 %v1124
  %1500 = vmatprep.subr.bf16.mxu0 %v1121
  %1501 = vmatpush1.bf16.msra.mxu0 %v1120
  %1502 = vmatprep.subr.bf16.mxu0 %v1117
  %1503 = vmatpush1.bf16.msra.mxu0 %v1116
  %1504 = vmatprep.subr.bf16.mxu0 %v1113
  %1505 = vmatpush1.bf16.msra.mxu0 %v1112
  %1506 = vmatprep.subr.bf16.mxu0 %v1109
  %1507 = vmatpush1.bf16.msra.mxu0 %v1108
  %1508 = vmatprep.subr.bf16.mxu0 %v1105
  %1509 = vmatpush1.bf16.msra.mxu0 %v1104
  %1510 = vmatprep.subr.bf16.mxu0 %v1101
  %1511 = vmatpush1.bf16.msra.mxu0 %v1100
  %1512 = vmatprep.subr.bf16.mxu0 %v1097
  %1513 = vmatpush1.bf16.msra.mxu0 %v1096
  %1514 = vmatprep.subr.bf16.mxu0 %v1157
  %1515 = vmatpush2.bf16.msra.mxu0 %v1156
  %1516 = vmatprep.subr.bf16.mxu0 %v1153
  %1517 = vmatpush2.bf16.msra.mxu0 %v1152
  %1518 = vmatprep.subr.bf16.mxu0 %v1149
  %1519 = vmatpush2.bf16.msra.mxu0 %v1148
  %1520 = vmatprep.subr.bf16.mxu0 %v1145
  %1521 = vmatpush2.bf16.msra.mxu0 %v1144
  %1522 = vmatprep.subr.bf16.mxu0 %v1141
  %1523 = vmatpush2.bf16.msra.mxu0 %v1140
  %1524 = vmatprep.subr.bf16.mxu0 %v1137
  %1525 = vmatpush2.bf16.msra.mxu0 %v1136
  %1526 = vmatprep.subr.bf16.mxu0 %v1133
  %1527 = vmatpush2.bf16.msra.mxu0 %v1132
  %1528 = vmatprep.subr.bf16.mxu0 %v1129
  %1529 = vmatpush2.bf16.msra.mxu0 %v1128
  %1530 = vmatprep.mubr.bf16.mxu0 %v287
  %1531 = vmatmul.mubr.bf16.gmra.mxu0 %v286
  %v1532 = vpop.f32.mrf.mxu0
  %v1533 = vadd.f32 %v1492, %v1532
  %v1534 = vpop.f32.mrf.mxu0
  %v1535 = vadd.f32 %v1494, %v1534
  %v1536 = vpop.f32.mrf.mxu0
  %v1537 = vpop.f32.mrf.mxu0
  %1538 = vdwg.mxu0
  %1539 = vmatprep.subr.bf16.mxu0 %v1189
  %1540 = vmatpush1.bf16.msra.mxu0 %v1188
  %1541 = vmatprep.subr.bf16.mxu0 %v1185
  %1542 = vmatpush1.bf16.msra.mxu0 %v1184
  %1543 = vmatprep.subr.bf16.mxu0 %v1181
  %1544 = vmatpush1.bf16.msra.mxu0 %v1180
  %1545 = vmatprep.subr.bf16.mxu0 %v1177
  %1546 = vmatpush1.bf16.msra.mxu0 %v1176
  %1547 = vmatprep.subr.bf16.mxu0 %v1173
  %1548 = vmatpush1.bf16.msra.mxu0 %v1172
  %1549 = vmatprep.subr.bf16.mxu0 %v1169
  %1550 = vmatpush1.bf16.msra.mxu0 %v1168
  %1551 = vmatprep.subr.bf16.mxu0 %v1165
  %1552 = vmatpush1.bf16.msra.mxu0 %v1164
  %1553 = vmatprep.subr.bf16.mxu0 %v1161
  %1554 = vmatpush1.bf16.msra.mxu0 %v1160
  %1555 = vmatprep.subr.bf16.mxu0 0
  %1556 = vmatpush2.bf16.msra.mxu0 0
  %1557 = vmatprep.subr.bf16.mxu0 0
  %1558 = vmatpush2.bf16.msra.mxu0 0
  %1559 = vmatprep.subr.bf16.mxu0 0
  %1560 = vmatpush2.bf16.msra.mxu0 0
  %1561 = vmatprep.subr.bf16.mxu0 0
  %1562 = vmatpush2.bf16.msra.mxu0 0
  %1563 = vmatprep.subr.bf16.mxu0 0
  %1564 = vmatpush2.bf16.msra.mxu0 0
  %1565 = vmatprep.subr.bf16.mxu0 0
  %1566 = vmatpush2.bf16.msra.mxu0 0
  %1567 = vmatprep.subr.bf16.mxu0 0
  %1568 = vmatpush2.bf16.msra.mxu0 0
  %1569 = vmatprep.subr.bf16.mxu0 0
  %1570 = vmatpush2.bf16.msra.mxu0 0
  %1571 = vmatprep.mubr.bf16.mxu0 0
  %1572 = vmatmul.mubr.bf16.gmra.mxu0 %v288
  %v1573 = vpop.f32.mrf.mxu0
  %v1574 = vadd.f32 %v1533, %v1573
  %v1575 = vpop.f32.mrf.mxu0
  %v1576 = vadd.f32 %v1535, %v1575
  %v1577 = vpop.f32.mrf.mxu0
  %v1578 = vpop.f32.mrf.mxu0
  %1579 = vdwg.mxu0
  %1580 = vmatprep.subr.bf16.mxu0 %v999
  %1581 = vmatpush1.bf16.msra.mxu0 %v998
  %1582 = vmatprep.subr.bf16.mxu0 %v995
  %1583 = vmatpush1.bf16.msra.mxu0 %v994
  %1584 = vmatprep.subr.bf16.mxu0 %v991
  %1585 = vmatpush1.bf16.msra.mxu0 %v990
  %1586 = vmatprep.subr.bf16.mxu0 %v987
  %1587 = vmatpush1.bf16.msra.mxu0 %v986
  %1588 = vmatprep.subr.bf16.mxu0 %v983
  %1589 = vmatpush1.bf16.msra.mxu0 %v982
  %1590 = vmatprep.subr.bf16.mxu0 %v979
  %1591 = vmatpush1.bf16.msra.mxu0 %v978
  %1592 = vmatprep.subr.bf16.mxu0 %v975
  %1593 = vmatpush1.bf16.msra.mxu0 %v974
  %1594 = vmatprep.subr.bf16.mxu0 %v971
  %1595 = vmatpush1.bf16.msra.mxu0 %v970
  %1596 = vmatprep.subr.bf16.mxu0 %v1031
  %1597 = vmatpush2.bf16.msra.mxu0 %v1030
  %1598 = vmatprep.subr.bf16.mxu0 %v1027
  %1599 = vmatpush2.bf16.msra.mxu0 %v1026
  %1600 = vmatprep.subr.bf16.mxu0 %v1023
  %1601 = vmatpush2.bf16.msra.mxu0 %v1022
  %1602 = vmatprep.subr.bf16.mxu0 %v1019
  %1603 = vmatpush2.bf16.msra.mxu0 %v1018
  %1604 = vmatprep.subr.bf16.mxu0 %v1015
  %1605 = vmatpush2.bf16.msra.mxu0 %v1014
  %1606 = vmatprep.subr.bf16.mxu0 %v1011
  %1607 = vmatpush2.bf16.msra.mxu0 %v1010
  %1608 = vmatprep.subr.bf16.mxu0 %v1007
  %1609 = vmatpush2.bf16.msra.mxu0 %v1006
  %1610 = vmatprep.subr.bf16.mxu0 %v1003
  %1611 = vmatpush2.bf16.msra.mxu0 %v1002
  %1612 = vmatprep.mubr.bf16.mxu0 %v283
  %1613 = vmatmul.mubr.bf16.gmra.mxu0 %v282
  %v1614 = vpop.f32.mrf.mxu0
  %v1615 = vadd.f32 %v262, %v1614
  %v1616 = vpop.f32.mrf.mxu0
  %v1617 = vadd.f32 %v266, %v1616
  %v1618 = vpop.f32.mrf.mxu0
  %v1619 = vpop.f32.mrf.mxu0
  %1620 = vdwg.mxu0
  %1621 = vmatprep.subr.bf16.mxu0 %v1063
  %1622 = vmatpush1.bf16.msra.mxu0 %v1062
  %1623 = vmatprep.subr.bf16.mxu0 %v1059
  %1624 = vmatpush1.bf16.msra.mxu0 %v1058
  %1625 = vmatprep.subr.bf16.mxu0 %v1055
  %1626 = vmatpush1.bf16.msra.mxu0 %v1054
  %1627 = vmatprep.subr.bf16.mxu0 %v1051
  %1628 = vmatpush1.bf16.msra.mxu0 %v1050
  %1629 = vmatprep.subr.bf16.mxu0 %v1047
  %1630 = vmatpush1.bf16.msra.mxu0 %v1046
  %1631 = vmatprep.subr.bf16.mxu0 %v1043
  %1632 = vmatpush1.bf16.msra.mxu0 %v1042
  %1633 = vmatprep.subr.bf16.mxu0 %v1039
  %1634 = vmatpush1.bf16.msra.mxu0 %v1038
  %1635 = vmatprep.subr.bf16.mxu0 %v1035
  %1636 = vmatpush1.bf16.msra.mxu0 %v1034
  %1637 = vmatprep.subr.bf16.mxu0 %v1095
  %1638 = vmatpush2.bf16.msra.mxu0 %v1094
  %1639 = vmatprep.subr.bf16.mxu0 %v1091
  %1640 = vmatpush2.bf16.msra.mxu0 %v1090
  %1641 = vmatprep.subr.bf16.mxu0 %v1087
  %1642 = vmatpush2.bf16.msra.mxu0 %v1086
  %1643 = vmatprep.subr.bf16.mxu0 %v1083
  %1644 = vmatpush2.bf16.msra.mxu0 %v1082
  %1645 = vmatprep.subr.bf16.mxu0 %v1079
  %1646 = vmatpush2.bf16.msra.mxu0 %v1078
  %1647 = vmatprep.subr.bf16.mxu0 %v1075
  %1648 = vmatpush2.bf16.msra.mxu0 %v1074
  %1649 = vmatprep.subr.bf16.mxu0 %v1071
  %1650 = vmatpush2.bf16.msra.mxu0 %v1070
  %1651 = vmatprep.subr.bf16.mxu0 %v1067
  %1652 = vmatpush2.bf16.msra.mxu0 %v1066
  %1653 = vmatprep.mubr.bf16.mxu0 %v285
  %1654 = vmatmul.mubr.bf16.gmra.mxu0 %v284
  %v1655 = vpop.f32.mrf.mxu0
  %v1656 = vadd.f32 %v1615, %v1655
  %v1657 = vpop.f32.mrf.mxu0
  %v1658 = vadd.f32 %v1617, %v1657
  %v1659 = vpop.f32.mrf.mxu0
  %v1660 = vpop.f32.mrf.mxu0
  %1661 = vdwg.mxu0
  %1662 = vmatprep.subr.bf16.mxu0 %v1127
  %1663 = vmatpush1.bf16.msra.mxu0 %v1126
  %1664 = vmatprep.subr.bf16.mxu0 %v1123
  %1665 = vmatpush1.bf16.msra.mxu0 %v1122
  %1666 = vmatprep.subr.bf16.mxu0 %v1119
  %1667 = vmatpush1.bf16.msra.mxu0 %v1118
  %1668 = vmatprep.subr.bf16.mxu0 %v1115
  %1669 = vmatpush1.bf16.msra.mxu0 %v1114
  %1670 = vmatprep.subr.bf16.mxu0 %v1111
  %1671 = vmatpush1.bf16.msra.mxu0 %v1110
  %1672 = vmatprep.subr.bf16.mxu0 %v1107
  %1673 = vmatpush1.bf16.msra.mxu0 %v1106
  %1674 = vmatprep.subr.bf16.mxu0 %v1103
  %1675 = vmatpush1.bf16.msra.mxu0 %v1102
  %1676 = vmatprep.subr.bf16.mxu0 %v1099
  %1677 = vmatpush1.bf16.msra.mxu0 %v1098
  %1678 = vmatprep.subr.bf16.mxu0 %v1159
  %1679 = vmatpush2.bf16.msra.mxu0 %v1158
  %1680 = vmatprep.subr.bf16.mxu0 %v1155
  %1681 = vmatpush2.bf16.msra.mxu0 %v1154
  %1682 = vmatprep.subr.bf16.mxu0 %v1151
  %1683 = vmatpush2.bf16.msra.mxu0 %v1150
  %1684 = vmatprep.subr.bf16.mxu0 %v1147
  %1685 = vmatpush2.bf16.msra.mxu0 %v1146
  %1686 = vmatprep.subr.bf16.mxu0 %v1143
  %1687 = vmatpush2.bf16.msra.mxu0 %v1142
  %1688 = vmatprep.subr.bf16.mxu0 %v1139
  %1689 = vmatpush2.bf16.msra.mxu0 %v1138
  %1690 = vmatprep.subr.bf16.mxu0 %v1135
  %1691 = vmatpush2.bf16.msra.mxu0 %v1134
  %1692 = vmatprep.subr.bf16.mxu0 %v1131
  %1693 = vmatpush2.bf16.msra.mxu0 %v1130
  %1694 = vmatprep.mubr.bf16.mxu0 %v287
  %1695 = vmatmul.mubr.bf16.gmra.mxu0 %v286
  %v1696 = vpop.f32.mrf.mxu0
  %v1697 = vadd.f32 %v1656, %v1696
  %v1698 = vpop.f32.mrf.mxu0
  %v1699 = vadd.f32 %v1658, %v1698
  %v1700 = vpop.f32.mrf.mxu0
  %v1701 = vpop.f32.mrf.mxu0
  %1702 = vdwg.mxu0
  %1703 = vmatprep.subr.bf16.mxu0 %v1191
  %1704 = vmatpush1.bf16.msra.mxu0 %v1190
  %1705 = vmatprep.subr.bf16.mxu0 %v1187
  %1706 = vmatpush1.bf16.msra.mxu0 %v1186
  %1707 = vmatprep.subr.bf16.mxu0 %v1183
  %1708 = vmatpush1.bf16.msra.mxu0 %v1182
  %1709 = vmatprep.subr.bf16.mxu0 %v1179
  %1710 = vmatpush1.bf16.msra.mxu0 %v1178
  %1711 = vmatprep.subr.bf16.mxu0 %v1175
  %1712 = vmatpush1.bf16.msra.mxu0 %v1174
  %1713 = vmatprep.subr.bf16.mxu0 %v1171
  %1714 = vmatpush1.bf16.msra.mxu0 %v1170
  %1715 = vmatprep.subr.bf16.mxu0 %v1167
  %1716 = vmatpush1.bf16.msra.mxu0 %v1166
  %1717 = vmatprep.subr.bf16.mxu0 %v1163
  %1718 = vmatpush1.bf16.msra.mxu0 %v1162
  %1719 = vmatprep.subr.bf16.mxu0 0
  %1720 = vmatpush2.bf16.msra.mxu0 0
  %1721 = vmatprep.subr.bf16.mxu0 0
  %1722 = vmatpush2.bf16.msra.mxu0 0
  %1723 = vmatprep.subr.bf16.mxu0 0
  %1724 = vmatpush2.bf16.msra.mxu0 0
  %1725 = vmatprep.subr.bf16.mxu0 0
  %1726 = vmatpush2.bf16.msra.mxu0 0
  %1727 = vmatprep.subr.bf16.mxu0 0
  %1728 = vmatpush2.bf16.msra.mxu0 0
  %1729 = vmatprep.subr.bf16.mxu0 0
  %1730 = vmatpush2.bf16.msra.mxu0 0
  %1731 = vmatprep.subr.bf16.mxu0 0
  %1732 = vmatpush2.bf16.msra.mxu0 0
  %1733 = vmatprep.subr.bf16.mxu0 0
  %1734 = vmatpush2.bf16.msra.mxu0 0
  %1735 = vmatprep.mubr.bf16.mxu0 0
  %1736 = vmatmul.mubr.bf16.gmra.mxu0 %v288
  %v1737 = vpop.f32.mrf.mxu0
  %v1738 = vadd.f32 %v1697, %v1737
  %v1739 = vpop.f32.mrf.mxu0
  %v1740 = vadd.f32 %v1699, %v1739
  %v1741 = vpop.f32.mrf.mxu0
  %v1742 = vpop.f32.mrf.mxu0
  %1743 = vdwg.mxu0
  %v1744 = vmax.f32 %v1574, 0.0
  %v1745 = vmax.f32 %v1576, 0.0
  %v1746 = vmax.f32 %v1738, 0.0
  %v1747 = vmax.f32 %v1740, 0.0
  %v1748 = vpack.c.bf16 %v1744, %v1744
  %v1749 = vpack.c.bf16 %v1745, %v1745
  %v1750 = vpack.c.bf16 %v1746, %v1746
  %v1751 = vpack.c.bf16 %v1747, %v1747
  %v1752 = vld [vmem:[%s3] sm:$0xf]
  %v1753 = vld [vmem:[%s3 + $0x4] sm:$0xf]
  %v1754 = vld [vmem:[%s3 + $0x8] sm:$0xf]
  %v1755 = vld [vmem:[%s3 + $0xc] sm:$0xf]
  %v1756 = vld [vmem:[%s3 + $0x10] sm:$0xf]
  %v1757 = vld [vmem:[%s3 + $0x14] sm:$0xf]
  %v1758 = vld [vmem:[%s3 + $0x18] sm:$0xf]
  %v1759 = vld [vmem:[%s3 + $0x1c] sm:$0xf]
  %v1760 = vld [vmem:[%s3 + $0x20] sm:$0xf]
  %v1761 = vld [vmem:[%s3 + $0x24] sm:$0xf]
  %v1762 = vld [vmem:[%s3 + $0x28] sm:$0xf]
  %v1763 = vld [vmem:[%s3 + $0x2c] sm:$0xf]
  %v1764 = vld [vmem:[%s3 + $0x30] sm:$0xf]
  %v1765 = vld [vmem:[%s3 + $0x34] sm:$0xf]
  %v1766 = vld [vmem:[%s3 + $0x38] sm:$0xf]
  %v1767 = vld [vmem:[%s3 + $0x3c] sm:$0xf]
  %v1768 = vld [vmem:[%s3 + $0x40] sm:$0xf]
  %v1769 = vld [vmem:[%s3 + $0x44] sm:$0xf]
  %v1770 = vld [vmem:[%s3 + $0x48] sm:$0xf]
  %v1771 = vld [vmem:[%s3 + $0x4c] sm:$0xf]
  %v1772 = vld [vmem:[%s3 + $0x50] sm:$0xf]
  %v1773 = vld [vmem:[%s3 + $0x54] sm:$0xf]
  %v1774 = vld [vmem:[%s3 + $0x58] sm:$0xf]
  %v1775 = vld [vmem:[%s3 + $0x5c] sm:$0xf]
  %v1776 = vld [vmem:[%s3 + $0x60] sm:$0xf]
  %v1777 = vld [vmem:[%s3 + $0x64] sm:$0xf]
  %v1778 = vld [vmem:[%s3 + $0x68] sm:$0xf]
  %v1779 = vld [vmem:[%s3 + $0x6c] sm:$0xf]
  %v1780 = vld [vmem:[%s3 + $0x70] sm:$0xf]
  %v1781 = vld [vmem:[%s3 + $0x74] sm:$0xf]
  %v1782 = vld [vmem:[%s3 + $0x78] sm:$0xf]
  %v1783 = vld [vmem:[%s3 + $0x7c] sm:$0xf]
  %v1784 = vld [vmem:[%s3 + $0x80] sm:$0xf]
  %v1785 = vld [vmem:[%s3 + $0x84] sm:$0xf]
  %v1786 = vld [vmem:[%s3 + $0x88] sm:$0xf]
  %v1787 = vld [vmem:[%s3 + $0x8c] sm:$0xf]
  %v1788 = vld [vmem:[%s3 + $0x90] sm:$0xf]
  %v1789 = vld [vmem:[%s3 + $0x94] sm:$0xf]
  %v1790 = vld [vmem:[%s3 + $0x98] sm:$0xf]
  %v1791 = vld [vmem:[%s3 + $0x9c] sm:$0xf]
  %v1792 = vld [vmem:[%s3 + $0xa0] sm:$0xf]
  %v1793 = vld [vmem:[%s3 + $0xa4] sm:$0xf]
  %v1794 = vld [vmem:[%s3 + $0xa8] sm:$0xf]
  %v1795 = vld [vmem:[%s3 + $0xac] sm:$0xf]
  %v1796 = vld [vmem:[%s3 + $0xb0] sm:$0xf]
  %v1797 = vld [vmem:[%s3 + $0xb4] sm:$0xf]
  %v1798 = vld [vmem:[%s3 + $0xb8] sm:$0xf]
  %v1799 = vld [vmem:[%s3 + $0xbc] sm:$0xf]
  %v1800 = vld [vmem:[%s3 + $0xc0] sm:$0xf]
  %v1801 = vld [vmem:[%s3 + $0xc4] sm:$0xf]
  %v1802 = vld [vmem:[%s3 + $0xc8] sm:$0xf]
  %v1803 = vld [vmem:[%s3 + $0xcc] sm:$0xf]
  %v1804 = vld [vmem:[%s3 + $0xd0] sm:$0xf]
  %v1805 = vld [vmem:[%s3 + $0xd4] sm:$0xf]
  %v1806 = vld [vmem:[%s3 + $0xd8] sm:$0xf]
  %v1807 = vld [vmem:[%s3 + $0xdc] sm:$0xf]
  %v1808 = vld [vmem:[%s3 + $0xe0] sm:$0xf]
  %v1809 = vld [vmem:[%s3 + $0xe4] sm:$0xf]
  %v1810 = vld [vmem:[%s3 + $0xe8] sm:$0xf]
  %v1811 = vld [vmem:[%s3 + $0xec] sm:$0xf]
  %v1812 = vld [vmem:[%s3 + $0xf0] sm:$0xf]
  %v1813 = vld [vmem:[%s3 + $0xf4] sm:$0xf]
  %v1814 = vld [vmem:[%s3 + $0xf8] sm:$0xf]
  %v1815 = vld [vmem:[%s3 + $0xfc] sm:$0xf]
  %v1816 = vld [vmem:[%s4] sm:$0x1]
  %v1818 = vlaneseq
  %v1819 = vshrl.u32 %v1818, 7
  %v1820 = vsub.s32 0, %v1819
  %v1821 = vrot.slane %v1816, %v1820
  %v1887 = vunpack.c.l.b16 %v1752
  %v1888 = vunpack.c.l.b16 %v1753
  %v1889 = vunpack.c.l.b16 %v1754
  %v1890 = vunpack.c.l.b16 %v1755
  %v1891 = vunpack.c.l.b16 %v1756
  %v1892 = vunpack.c.l.b16 %v1757
  %v1893 = vunpack.c.l.b16 %v1758
  %v1894 = vunpack.c.l.b16 %v1759
  %v1895 = vunpack.c.l.b16 %v1760
  %v1896 = vunpack.c.l.b16 %v1761
  %v1897 = vunpack.c.l.b16 %v1762
  %v1898 = vunpack.c.l.b16 %v1763
  %v1899 = vunpack.c.l.b16 %v1764
  %v1900 = vunpack.c.l.b16 %v1765
  %v1901 = vunpack.c.l.b16 %v1766
  %v1902 = vunpack.c.l.b16 %v1767
  %v1903 = vunpack.c.l.b16 %v1768
  %v1904 = vunpack.c.l.b16 %v1769
  %v1905 = vunpack.c.l.b16 %v1770
  %v1906 = vunpack.c.l.b16 %v1771
  %v1907 = vunpack.c.l.b16 %v1772
  %v1908 = vunpack.c.l.b16 %v1773
  %v1909 = vunpack.c.l.b16 %v1774
  %v1910 = vunpack.c.l.b16 %v1775
  %v1911 = vunpack.c.l.b16 %v1776
  %v1912 = vunpack.c.l.b16 %v1777
  %v1913 = vunpack.c.l.b16 %v1778
  %v1914 = vunpack.c.l.b16 %v1779
  %v1915 = vunpack.c.l.b16 %v1780
  %v1916 = vunpack.c.l.b16 %v1781
  %v1917 = vunpack.c.l.b16 %v1782
  %v1918 = vunpack.c.l.b16 %v1783
  %v1919 = vunpack.c.l.b16 %v1784
  %v1920 = vunpack.c.l.b16 %v1785
  %v1921 = vunpack.c.l.b16 %v1786
  %v1922 = vunpack.c.l.b16 %v1787
  %v1923 = vunpack.c.l.b16 %v1788
  %v1924 = vunpack.c.l.b16 %v1789
  %v1925 = vunpack.c.l.b16 %v1790
  %v1926 = vunpack.c.l.b16 %v1791
  %v1927 = vunpack.c.l.b16 %v1792
  %v1928 = vunpack.c.l.b16 %v1793
  %v1929 = vunpack.c.l.b16 %v1794
  %v1930 = vunpack.c.l.b16 %v1795
  %v1931 = vunpack.c.l.b16 %v1796
  %v1932 = vunpack.c.l.b16 %v1797
  %v1933 = vunpack.c.l.b16 %v1798
  %v1934 = vunpack.c.l.b16 %v1799
  %v1935 = vunpack.c.l.b16 %v1800
  %v1936 = vunpack.c.l.b16 %v1801
  %v1937 = vunpack.c.l.b16 %v1802
  %v1938 = vunpack.c.l.b16 %v1803
  %v1939 = vunpack.c.l.b16 %v1804
  %v1940 = vunpack.c.l.b16 %v1805
  %v1941 = vunpack.c.l.b16 %v1806
  %v1942 = vunpack.c.l.b16 %v1807
  %v1943 = vunpack.c.l.b16 %v1808
  %v1944 = vunpack.c.l.b16 %v1809
  %v1945 = vunpack.c.l.b16 %v1810
  %v1946 = vunpack.c.l.b16 %v1811
  %v1947 = vunpack.c.l.b16 %v1812
  %v1948 = vunpack.c.l.b16 %v1813
  %v1949 = vunpack.c.l.b16 %v1814
  %v1950 = vunpack.c.l.b16 %v1815
  %v1951 = vpack.c.b16 %v1888, %v1887
  %v1952 = vpack.c.b16 %v1890, %v1889
  %v1953 = vpack.c.b16 %v1892, %v1891
  %v1954 = vpack.c.b16 %v1894, %v1893
  %v1955 = vpack.c.b16 %v1896, %v1895
  %v1956 = vpack.c.b16 %v1898, %v1897
  %v1957 = vpack.c.b16 %v1900, %v1899
  %v1958 = vpack.c.b16 %v1902, %v1901
  %v1959 = vpack.c.b16 %v1904, %v1903
  %v1960 = vpack.c.b16 %v1906, %v1905
  %v1961 = vpack.c.b16 %v1908, %v1907
  %v1962 = vpack.c.b16 %v1910, %v1909
  %v1963 = vpack.c.b16 %v1912, %v1911
  %v1964 = vpack.c.b16 %v1914, %v1913
  %v1965 = vpack.c.b16 %v1916, %v1915
  %v1966 = vpack.c.b16 %v1918, %v1917
  %v1967 = vpack.c.b16 %v1920, %v1919
  %v1968 = vpack.c.b16 %v1922, %v1921
  %v1969 = vpack.c.b16 %v1924, %v1923
  %v1970 = vpack.c.b16 %v1926, %v1925
  %v1971 = vpack.c.b16 %v1928, %v1927
  %v1972 = vpack.c.b16 %v1930, %v1929
  %v1973 = vpack.c.b16 %v1932, %v1931
  %v1974 = vpack.c.b16 %v1934, %v1933
  %v1975 = vpack.c.b16 %v1936, %v1935
  %v1976 = vpack.c.b16 %v1938, %v1937
  %v1977 = vpack.c.b16 %v1940, %v1939
  %v1978 = vpack.c.b16 %v1942, %v1941
  %v1979 = vpack.c.b16 %v1944, %v1943
  %v1980 = vpack.c.b16 %v1946, %v1945
  %v1981 = vpack.c.b16 %v1948, %v1947
  %v1982 = vpack.c.b16 %v1950, %v1949
  %2015 = vmatprep.subr.bf16.mxu0 0
  %2016 = vmatpush1.bf16.msra.mxu0 %v1958
  %2017 = vmatprep.subr.bf16.mxu0 0
  %2018 = vmatpush1.bf16.msra.mxu0 %v1957
  %2019 = vmatprep.subr.bf16.mxu0 0
  %2020 = vmatpush1.bf16.msra.mxu0 %v1956
  %2021 = vmatprep.subr.bf16.mxu0 0
  %2022 = vmatpush1.bf16.msra.mxu0 %v1955
  %2023 = vmatprep.subr.bf16.mxu0 0
  %2024 = vmatpush1.bf16.msra.mxu0 %v1954
  %2025 = vmatprep.subr.bf16.mxu0 0
  %2026 = vmatpush1.bf16.msra.mxu0 %v1953
  %2027 = vmatprep.subr.bf16.mxu0 0
  %2028 = vmatpush1.bf16.msra.mxu0 %v1952
  %2029 = vmatprep.subr.bf16.mxu0 0
  %2030 = vmatpush1.bf16.msra.mxu0 %v1951
  %2031 = vmatprep.subr.bf16.mxu0 0
  %2032 = vmatpush2.bf16.msra.mxu0 %v1966
  %2033 = vmatprep.subr.bf16.mxu0 0
  %2034 = vmatpush2.bf16.msra.mxu0 %v1965
  %2035 = vmatprep.subr.bf16.mxu0 0
  %2036 = vmatpush2.bf16.msra.mxu0 %v1964
  %2037 = vmatprep.subr.bf16.mxu0 0
  %2038 = vmatpush2.bf16.msra.mxu0 %v1963
  %2039 = vmatprep.subr.bf16.mxu0 0
  %2040 = vmatpush2.bf16.msra.mxu0 %v1962
  %2041 = vmatprep.subr.bf16.mxu0 0
  %2042 = vmatpush2.bf16.msra.mxu0 %v1961
  %2043 = vmatprep.subr.bf16.mxu0 0
  %2044 = vmatpush2.bf16.msra.mxu0 %v1960
  %2045 = vmatprep.subr.bf16.mxu0 0
  %2046 = vmatpush2.bf16.msra.mxu0 %v1959
  %2047 = vmatprep.mubr.bf16.mxu0 %v1749
  %2048 = vmatmul.mubr.bf16.gmra.mxu0 %v1748
  %v2049 = vpop.f32.mrf.mxu0
  %v2050 = vadd.f32 %v1821, %v2049
  %v2051 = vpop.f32.mrf.mxu0
  %v2052 = vpop.f32.mrf.mxu0
  %v2053 = vpop.f32.mrf.mxu0
  %2054 = vdwg.mxu0
  %2055 = vmatprep.subr.bf16.mxu0 0
  %2056 = vmatpush1.bf16.msra.mxu0 %v1974
  %2057 = vmatprep.subr.bf16.mxu0 0
  %2058 = vmatpush1.bf16.msra.mxu0 %v1973
  %2059 = vmatprep.subr.bf16.mxu0 0
  %2060 = vmatpush1.bf16.msra.mxu0 %v1972
  %2061 = vmatprep.subr.bf16.mxu0 0
  %2062 = vmatpush1.bf16.msra.mxu0 %v1971
  %2063 = vmatprep.subr.bf16.mxu0 0
  %2064 = vmatpush1.bf16.msra.mxu0 %v1970
  %2065 = vmatprep.subr.bf16.mxu0 0
  %2066 = vmatpush1.bf16.msra.mxu0 %v1969
  %2067 = vmatprep.subr.bf16.mxu0 0
  %2068 = vmatpush1.bf16.msra.mxu0 %v1968
  %2069 = vmatprep.subr.bf16.mxu0 0
  %2070 = vmatpush1.bf16.msra.mxu0 %v1967
  %2071 = vmatprep.subr.bf16.mxu0 0
  %2072 = vmatpush2.bf16.msra.mxu0 %v1982
  %2073 = vmatprep.subr.bf16.mxu0 0
  %2074 = vmatpush2.bf16.msra.mxu0 %v1981
  %2075 = vmatprep.subr.bf16.mxu0 0
  %2076 = vmatpush2.bf16.msra.mxu0 %v1980
  %2077 = vmatprep.subr.bf16.mxu0 0
  %2078 = vmatpush2.bf16.msra.mxu0 %v1979
  %2079 = vmatprep.subr.bf16.mxu0 0
  %2080 = vmatpush2.bf16.msra.mxu0 %v1978
  %2081 = vmatprep.subr.bf16.mxu0 0
  %2082 = vmatpush2.bf16.msra.mxu0 %v1977
  %2083 = vmatprep.subr.bf16.mxu0 0
  %2084 = vmatpush2.bf16.msra.mxu0 %v1976
  %2085 = vmatprep.subr.bf16.mxu0 0
  %2086 = vmatpush2.bf16.msra.mxu0 %v1975
  %2087 = vmatprep.mubr.bf16.mxu0 %v1751
  %2088 = vmatmul.mubr.bf16.gmra.mxu0 %v1750
  %v2089 = vpop.f32.mrf.mxu0
  %v2090 = vadd.f32 %v2050, %v2089
  %v2091 = vpop.f32.mrf.mxu0
  %v2092 = vpop.f32.mrf.mxu0
  %v2093 = vpop.f32.mrf.mxu0
  %2094 = vdwg.mxu0
  %2095 = vmax.xlane.f32.xlu0 %v2090
  %v2096 = vpop.xlane.xlu0 %2095
  %v2097 = vsub.f32 %v2090, %v2096
  %v2098 = vmul.f32 %v2097, 1.442695
  %v2099 = vpow.pop %v2098
  %2100 = vadd.xlane.f32.xlu0 %v2099
  %v2101 = vpop.xlane.xlu0 %2100
  %v2102 = vlog2.pop %v2101
  %v2103 = vmul.f32 %v2102, 0.6931472
  %v2104 = vsub.f32 %v2097, %v2103
  %2105 = vst [vmem:[%s5] sm:$0xff] %v2104
  // Predicated region
  $region22: #{net_forward.5} parent=0 // pred_check
    _
  $region23: #{net_forward.5} parent=0 // pred_check_branch
    %2107 = sbr.rel (0) target = $region25
  $region24: #{net_forward.5} parent=0 // pred_region
    _
  $region25: #{net_forward.5} parent=0 // pred_fallthru
    _
  // Predicated region
  $region26: #{net_forward.5} parent=0 // pred_check
    _
  $region27: #{net_forward.5} parent=0 // pred_check_branch
    %2109 = sbr.rel (0) target = $region29
  $region28: #{net_forward.5} parent=0 // pred_region
    _
  $region29: #{net_forward.5} parent=0 // pred_fallthru
    _

</llo_original>
